<compile_context>
chip_gen: v7x
topology: tpu7x:2x2x1
jax: 0.10.0
libtpu: 0.0.40
codegen_flags: <defaults>
</compile_context>

<pallas_src>
import functools
import math

import jax
import jax.numpy as jnp
from jax.experimental import pallas as pl
from jax.experimental.pallas import tpu as pltpu


def sr_gnn_kernel(A_ref, h_ref, gid_ref, Wcat_ref, WihT_ref, brz_ref, bin_ref, bhn_ref,
                  out_ref, *, num_layers, hidden, rows, gathered_rows):
    """Batch-blocked GGNN + flattened sequence gather.

    A_ref:    (1, R, R)            f32  block-diagonal adjacency for this batch block
    h_ref:    (R, H)               f32  embedded node features, batch*node flattened
    gid_ref:  (Bblk*L, 1)          i32  global (within-block) node id per sequence slot
    Wcat_ref: (num_layers, H, 4H)  f32  [Wgg[l] | w_hh.T]  (gate cols ordered r, z, n)
    WihT_ref: (H, 4H)              f32  w_ih.T zero-padded from 3H to 4H lanes
    brz_ref:  (1, 2H)              f32  combined (b_ih + b_hh) bias for r and z gates
    bin_ref:  (1, H)               f32  b_ih for the n gate
    bhn_ref:  (1, H)               f32  b_hh for the n gate (stays inside the r* term)
    out_ref:  (Bblk*L, H)          f32  gathered h_seqs rows for this batch block
    """
    H = hidden
    R = rows

    # Hoisted loads (the layer loop below is unrolled; loads would otherwise repeat).
    A_bd = A_ref[0]                    # (R, R)
    hf = h_ref[...]                    # (R, H)
    WihT = WihT_ref[...]               # (H, 4H)
    brz = brz_ref[...]                 # (1, 2H)
    b_in = bin_ref[...]                # (1, H)
    b_hn = bhn_ref[...]                # (1, H)

    for l in range(num_layers):
        # One fused hf-side matmul: [hw | gh_r | gh_z | gh_n], 128-lane-dense output.
        fused = jnp.dot(hf, Wcat_ref[l], preferred_element_type=jnp.float32)   # (R, 4H)
        hw = fused[:, :H]                                                       # (R, H)
        gh_rz = fused[:, H:3 * H]                                               # (R, 2H)
        gh_n = fused[:, 3 * H:]                                                 # (R, H)

        # Message passing: one block-diagonal full-MXU pass instead of Bblk tiny einsums.
        m = jnp.dot(A_bd, hw, preferred_element_type=jnp.float32)               # (R, H)

        # GRU input-side gates (columns 3H:4H are the zero pad and are ignored).
        gi = jnp.dot(m, WihT, preferred_element_type=jnp.float32)               # (R, 4H)

        rz = jax.nn.sigmoid(gi[:, :2 * H] + gh_rz + brz)                        # (R, 2H)
        r = rz[:, :H]
        z = rz[:, H:]
        n = jnp.tanh(gi[:, 2 * H:3 * H] + b_in + r * (gh_n + b_hn))
        hf = (1.0 - z) * n + z * hf                                             # (R, H)

    # h_seqs[b, l] = h[b, alias[b, l]]  -- flattened one-hot gather, single MXU pass.
    gid = gid_ref[...]                                                          # (Bblk*L, 1)
    col = jax.lax.broadcasted_iota(jnp.int32, (gathered_rows, R), 1)
    onehot = (gid == col).astype(jnp.float32)                                   # (Bblk*L, R)
    out_ref[...] = jnp.dot(onehot, hf, preferred_element_type=jnp.float32)      # (Bblk*L, H)
    # TODO(synk): a 256-lane (Bblk, L*H) output slab would need a sublane->lane (L,H)->(L*H)
    # fold in-kernel, which Mosaic may refuse/relayout at H=32; kept (Bblk*L, H) for safety.


def _choose_bblk(batch, n_node, device_kind=""):
    """Pick a batch block: fill MXU rows; grid=1 on single-TC chips, >=2 steps on v7x."""
    kind = (device_kind or "").lower()
    multi_tc = ("v7" in kind) or ("7x" in kind)           # v7x has 2 TensorCores / chip
    max_rows = 512                                        # cap (R,R) block <= 1 MiB f32
    divs = [d for d in range(1, batch + 1)
            if batch % d == 0 and (d % 8 == 0 or d == batch)]
    fit = [d for d in divs if d * n_node <= max_rows] or [min(divs)]
    if multi_tc:
        cand = [d for d in fit if batch // d >= 4 and d * n_node >= 128]
        if not cand:
            cand = [d for d in fit if batch // d >= 2]
        if not cand:
            cand = fit
        return max(cand)
    # single TensorCore (v5e / v6e / unknown): biggest block, targeting 256 MXU rows
    cand = [d for d in fit if d * n_node >= 256]
    return min(cand) if cand else max(fit)


def sr_gnn_forward(params, A, items, seq_alias, bblk=None):
    """SR_GNN.forward(A, items, seq_alias) -> h_seqs  [B, L, H]."""
    B, N, _ = A.shape
    L = seq_alias.shape[1]
    H = params["embedding"].shape[1]
    num_layers = params["Wgg"].shape[0]
    if bblk is None:
        try:
            kind = jax.devices()[0].device_kind
        except Exception:  # pragma: no cover - defensive
            kind = ""
        bblk = _choose_bblk(B, N, kind)
    assert B % bblk == 0
    nblk = B // bblk
    R = bblk * N

    # glue: embedding lookup (table gather) + layout prep stay in plain JAX
    h0 = params["embedding"][items].astype(jnp.float32).reshape(B * N, H)       # (B*N, H)

    # block-diagonal adjacency: A_bd[g, b*N+i, c*N+j] = A[g*bblk+b, i, j] * (b == c)
    Af = A.astype(jnp.float32).reshape(nblk, bblk, N, N)
    eye = jnp.eye(bblk, dtype=jnp.float32)
    A_bd = Af[:, :, None, :, :] * eye[None, :, :, None, None]                   # (g,b,c,N,N)
    A_bd = A_bd.transpose(0, 1, 3, 2, 4).reshape(nblk, R, R)

    # global (within-block) gather ids: row b*L+l selects node (b % bblk)*N + alias[b, l]
    boff = ((jnp.arange(B, dtype=jnp.int32) % bblk) * N)[:, None]                # (B, 1)
    gid = (seq_alias.astype(jnp.int32) + boff).reshape(B * L, 1)                 # (B*L, 1)

    # fused weights: Wcat[l] = [Wgg[l] | w_hh.T]  (H, 4H); WihT padded (H, 3H) -> (H, 4H)
    WhhT = params["w_hh"].T.astype(jnp.float32)                                  # (H, 3H)
    Wcat = jnp.concatenate(
        [params["Wgg"].astype(jnp.float32),
         jnp.broadcast_to(WhhT[None], (num_layers, H, 3 * H))], axis=2)          # (l, H, 4H)
    WihT = jnp.pad(params["w_ih"].T.astype(jnp.float32), ((0, 0), (0, H)))       # (H, 4H)
    b_rz = (params["b_ih"][:2 * H] + params["b_hh"][:2 * H]).reshape(1, 2 * H).astype(jnp.float32)
    b_in = params["b_ih"][2 * H:].reshape(1, H).astype(jnp.float32)
    b_hn = params["b_hh"][2 * H:].reshape(1, H).astype(jnp.float32)

    kernel = functools.partial(sr_gnn_kernel, num_layers=num_layers, hidden=H,
                               rows=R, gathered_rows=bblk * L)

    out = pl.pallas_call(
        kernel,
        out_shape=jax.ShapeDtypeStruct((B * L, H), jnp.float32),
        grid_spec=pltpu.PrefetchScalarGridSpec(
            num_scalar_prefetch=0,
            grid=(nblk,),
            in_specs=[
                pl.BlockSpec((1, R, R), lambda b: (b, 0, 0)),          # A_bd
                pl.BlockSpec((R, H), lambda b: (b, 0)),                # h0 (flattened)
                pl.BlockSpec((bblk * L, 1), lambda b: (b, 0)),         # gather ids
                pl.BlockSpec((num_layers, H, 4 * H), lambda b: (0, 0, 0)),
                pl.BlockSpec((H, 4 * H), lambda b: (0, 0)),
                pl.BlockSpec((1, 2 * H), lambda b: (0, 0)),
                pl.BlockSpec((1, H), lambda b: (0, 0)),
                pl.BlockSpec((1, H), lambda b: (0, 0)),
            ],
            out_specs=pl.BlockSpec((bblk * L, H), lambda b: (b, 0)),
        ),
        compiler_params=pltpu.CompilerParams(
            dimension_semantics=("parallel",)),
    )(A_bd, h0, gid, Wcat, WihT, b_rz, b_in, b_hn)

    return out.reshape(B, L, H)   # bitcast-free row-major reshape in the wrapper


def sr_gnn_ref(params, A, items, seq_alias):
    """Pure-JAX reference of the same forward pass (for correctness check)."""
    H = params["embedding"].shape[1]
    hp = jax.lax.Precision.HIGHEST
    h = params["embedding"][items].astype(jnp.float32)
    for l in range(params["Wgg"].shape[0]):
        hw = jnp.einsum("bnh,hk->bnk", h, params["Wgg"][l], precision=hp)
        m = jnp.einsum("bnm,bmh->bnh", A.astype(jnp.float32), hw, precision=hp)
        gi = jnp.einsum("bnh,gh->bng", m, params["w_ih"], precision=hp) + params["b_ih"]
        gh = jnp.einsum("bnh,gh->bng", h, params["w_hh"], precision=hp) + params["b_hh"]
        i_r, i_z, i_n = gi[..., :H], gi[..., H:2 * H], gi[..., 2 * H:]
        h_r, h_z, h_n = gh[..., :H], gh[..., H:2 * H], gh[..., 2 * H:]
        r = jax.nn.sigmoid(i_r + h_r)
        z = jax.nn.sigmoid(i_z + h_z)
        n = jnp.tanh(i_n + r * h_n)
        h = (1.0 - z) * n + z * h
    return jnp.take_along_axis(h, seq_alias[..., None], axis=1)


if __name__ == "__main__":
    # small shapes consistent with the module's forward; batch large enough to exercise
    # the batch-blocked grid / block-diagonal message passing
    B = 32           # batch_size
    N = 8            # nodes (unique items) per session
    L = 8            # sequence length (seq_alias length)
    H = 32           # hidden_size
    NUM_ITEM = 50    # num_item
    LAYER_GNN = 2    # layer_gnn

    std = 1.0 / math.sqrt(H)
    key = jax.random.PRNGKey(0)
    k_emb, k_w, k_wih, k_whh, k_bih, k_bhh, k_items, k_A, k_alias = jax.random.split(key, 9)

    # parameters are initialised uniform(-1/sqrt(H), 1/sqrt(H)), matching the module's init
    params = {
        "embedding": jax.random.uniform(k_emb, (NUM_ITEM + 1, H), jnp.float32, -std, std),
        "Wgg":       jax.random.uniform(k_w, (LAYER_GNN, H, H), jnp.float32, -std, std),
        "w_ih":      jax.random.uniform(k_wih, (3 * H, H), jnp.float32, -std, std),
        "w_hh":      jax.random.uniform(k_whh, (3 * H, H), jnp.float32, -std, std),
        "b_ih":      jax.random.uniform(k_bih, (3 * H,), jnp.float32, -std, std),
        "b_hh":      jax.random.uniform(k_bhh, (3 * H,), jnp.float32, -std, std),
    }
    # fc1/fc2/fc3 of SR_GNN are only used in .predict(), not in .forward().

    # deterministic inputs
    items = jax.random.randint(k_items, (B, N), 0, NUM_ITEM + 1, dtype=jnp.int32)
    A = jax.random.uniform(k_A, (B, N, N), jnp.float32, 0.0, 1.0)
    A = A / jnp.maximum(A.sum(-1, keepdims=True), 1e-6)          # row-normalised adjacency
    seq_alias = jax.random.randint(k_alias, (B, L), 0, N, dtype=jnp.int32)

    h_seqs = sr_gnn_forward(params, A, items, seq_alias)
    h_seqs = jax.block_until_ready(h_seqs)

    h_ref = sr_gnn_ref(params, A, items, seq_alias)
    assert h_seqs.shape == (B, L, H)
    assert jnp.allclose(h_seqs, h_ref, atol=1e-3, rtol=1e-3), "mismatch vs pure-JAX reference"

    print("KERNEL_OK")
</pallas_src>

<mosaic_0001>
module attributes {stable_mosaic.version = 11 : i64} {
  func.func @sr_gnn_kernel(%arg0: i32, %arg1: memref<1x256x256xf32, #tpu.memory_space<vmem>>, %arg2: memref<256x32xf32, #tpu.memory_space<vmem>>, %arg3: memref<256x1xi32, #tpu.memory_space<vmem>>, %arg4: memref<2x32x128xf32, #tpu.memory_space<vmem>>, %arg5: memref<32x128xf32, #tpu.memory_space<vmem>>, %arg6: memref<1x64xf32, #tpu.memory_space<vmem>>, %arg7: memref<1x32xf32, #tpu.memory_space<vmem>>, %arg8: memref<1x32xf32, #tpu.memory_space<vmem>>, %arg9: memref<256x32xf32, #tpu.memory_space<vmem>>) attributes {dimension_semantics = [#tpu.dimension_semantics<parallel>], iteration_bounds = array<i64: 1>, scalar_prefetch = 0 : i64, scratch_operands = 0 : i64, tpu.core_type = #tpu.core_type<tc>, window_params = [{transform_indices = @transform_0, window_bounds = array<i64: 1, 256, 256>}, {transform_indices = @transform_1, window_bounds = array<i64: 256, 32>}, {transform_indices = @transform_2, window_bounds = array<i64: 256, 1>}, {pipeline_mode = #tpu.pipeline_mode<synchronous>, transform_indices = @transform_3, window_bounds = array<i64: 2, 32, 128>}, {pipeline_mode = #tpu.pipeline_mode<synchronous>, transform_indices = @transform_4, window_bounds = array<i64: 32, 128>}, {pipeline_mode = #tpu.pipeline_mode<synchronous>, transform_indices = @transform_5, window_bounds = array<i64: 1, 64>}, {pipeline_mode = #tpu.pipeline_mode<synchronous>, transform_indices = @transform_6, window_bounds = array<i64: 1, 32>}, {pipeline_mode = #tpu.pipeline_mode<synchronous>, transform_indices = @transform_7, window_bounds = array<i64: 1, 32>}, {transform_indices = @transform_8, window_bounds = array<i64: 256, 32>}]} {
    %c0 = arith.constant 0 : index
    %c0_0 = arith.constant 0 : index
    %c0_1 = arith.constant 0 : index
    %0 = vector.load %arg1[%c0, %c0_0, %c0_1] : memref<1x256x256xf32, #tpu.memory_space<vmem>>, vector<1x256x256xf32>
    %1 = vector.shape_cast %0 : vector<1x256x256xf32> to vector<256x256xf32>
    %c0_2 = arith.constant 0 : index
    %c0_3 = arith.constant 0 : index
    %2 = vector.load %arg2[%c0_2, %c0_3] : memref<256x32xf32, #tpu.memory_space<vmem>>, vector<256x32xf32>
    %c0_4 = arith.constant 0 : index
    %c0_5 = arith.constant 0 : index
    %3 = vector.load %arg5[%c0_4, %c0_5] : memref<32x128xf32, #tpu.memory_space<vmem>>, vector<32x128xf32>
    %c0_6 = arith.constant 0 : index
    %c0_7 = arith.constant 0 : index
    %4 = vector.load %arg6[%c0_6, %c0_7] : memref<1x64xf32, #tpu.memory_space<vmem>>, vector<1x64xf32>
    %c0_8 = arith.constant 0 : index
    %c0_9 = arith.constant 0 : index
    %5 = vector.load %arg7[%c0_8, %c0_9] : memref<1x32xf32, #tpu.memory_space<vmem>>, vector<1x32xf32>
    %c0_10 = arith.constant 0 : index
    %c0_11 = arith.constant 0 : index
    %6 = vector.load %arg8[%c0_10, %c0_11] : memref<1x32xf32, #tpu.memory_space<vmem>>, vector<1x32xf32>
    %c0_12 = arith.constant 0 : index
    %c0_13 = arith.constant 0 : index
    %c0_14 = arith.constant 0 : index
    %7 = vector.load %arg4[%c0_12, %c0_13, %c0_14] : memref<2x32x128xf32, #tpu.memory_space<vmem>>, vector<1x32x128xf32>
    %8 = vector.shape_cast %7 : vector<1x32x128xf32> to vector<32x128xf32>
    %cst = arith.constant dense<0.000000e+00> : vector<256x128xf32>
    %9 = tpu.matmul %2, %8, %cst {dimension_numbers = #tpu.dot_dimension_numbers<[1], [0], [0], [1], [0, 0, 1, 1], [], []>} : vector<256x32xf32>, vector<32x128xf32>, vector<256x128xf32> -> vector<256x128xf32>
    %10 = vector.extract_strided_slice %9 {offsets = [0, 0], sizes = [256, 32], strides = [1, 1]} : vector<256x128xf32> to vector<256x32xf32>
    %11 = vector.extract_strided_slice %9 {offsets = [0, 32], sizes = [256, 64], strides = [1, 1]} : vector<256x128xf32> to vector<256x64xf32>
    %12 = vector.extract_strided_slice %9 {offsets = [0, 96], sizes = [256, 32], strides = [1, 1]} : vector<256x128xf32> to vector<256x32xf32>
    %cst_15 = arith.constant dense<0.000000e+00> : vector<256x32xf32>
    %13 = tpu.matmul %1, %10, %cst_15 {dimension_numbers = #tpu.dot_dimension_numbers<[1], [0], [0], [1], [0, 0, 1, 1], [], []>} : vector<256x256xf32>, vector<256x32xf32>, vector<256x32xf32> -> vector<256x32xf32>
    %cst_16 = arith.constant dense<0.000000e+00> : vector<256x128xf32>
    %14 = tpu.matmul %13, %3, %cst_16 {dimension_numbers = #tpu.dot_dimension_numbers<[1], [0], [0], [1], [0, 0, 1, 1], [], []>} : vector<256x32xf32>, vector<32x128xf32>, vector<256x128xf32> -> vector<256x128xf32>
    %15 = vector.extract_strided_slice %14 {offsets = [0, 0], sizes = [256, 64], strides = [1, 1]} : vector<256x128xf32> to vector<256x64xf32>
    %16 = arith.addf %15, %11 : vector<256x64xf32>
    %17 = vector.broadcast %4 : vector<1x64xf32> to vector<256x64xf32>
    %18 = arith.addf %16, %17 : vector<256x64xf32>
    %19 = arith.negf %18 : vector<256x64xf32>
    %20 = math.exp %19 : vector<256x64xf32>
    %cst_17 = arith.constant 1.000000e+00 : f32
    %21 = vector.broadcast %cst_17 : f32 to vector<256x64xf32>
    %22 = arith.addf %21, %20 : vector<256x64xf32>
    %23 = arith.divf %21, %22 : vector<256x64xf32>
    %24 = vector.extract_strided_slice %23 {offsets = [0, 0], sizes = [256, 32], strides = [1, 1]} : vector<256x64xf32> to vector<256x32xf32>
    %25 = vector.extract_strided_slice %23 {offsets = [0, 32], sizes = [256, 32], strides = [1, 1]} : vector<256x64xf32> to vector<256x32xf32>
    %26 = vector.extract_strided_slice %14 {offsets = [0, 64], sizes = [256, 32], strides = [1, 1]} : vector<256x128xf32> to vector<256x32xf32>
    %27 = vector.broadcast %5 : vector<1x32xf32> to vector<256x32xf32>
    %28 = arith.addf %26, %27 : vector<256x32xf32>
    %29 = vector.broadcast %6 : vector<1x32xf32> to vector<256x32xf32>
    %30 = arith.addf %12, %29 : vector<256x32xf32>
    %31 = arith.mulf %24, %30 : vector<256x32xf32>
    %32 = arith.addf %28, %31 : vector<256x32xf32>
    %33 = math.tanh %32 : vector<256x32xf32>
    %cst_18 = arith.constant 1.000000e+00 : f32
    %34 = vector.broadcast %cst_18 : f32 to vector<256x32xf32>
    %35 = arith.subf %34, %25 : vector<256x32xf32>
    %36 = arith.mulf %35, %33 : vector<256x32xf32>
    %37 = arith.mulf %25, %2 : vector<256x32xf32>
    %38 = arith.addf %36, %37 : vector<256x32xf32>
    %c1 = arith.constant 1 : index
    %c0_19 = arith.constant 0 : index
    %c0_20 = arith.constant 0 : index
    %39 = vector.load %arg4[%c1, %c0_19, %c0_20] : memref<2x32x128xf32, #tpu.memory_space<vmem>>, vector<1x32x128xf32>
    %40 = vector.shape_cast %39 : vector<1x32x128xf32> to vector<32x128xf32>
    %cst_21 = arith.constant dense<0.000000e+00> : vector<256x128xf32>
    %41 = tpu.matmul %38, %40, %cst_21 {dimension_numbers = #tpu.dot_dimension_numbers<[1], [0], [0], [1], [0, 0, 1, 1], [], []>} : vector<256x32xf32>, vector<32x128xf32>, vector<256x128xf32> -> vector<256x128xf32>
    %42 = vector.extract_strided_slice %41 {offsets = [0, 0], sizes = [256, 32], strides = [1, 1]} : vector<256x128xf32> to vector<256x32xf32>
    %43 = vector.extract_strided_slice %41 {offsets = [0, 32], sizes = [256, 64], strides = [1, 1]} : vector<256x128xf32> to vector<256x64xf32>
    %44 = vector.extract_strided_slice %41 {offsets = [0, 96], sizes = [256, 32], strides = [1, 1]} : vector<256x128xf32> to vector<256x32xf32>
    %cst_22 = arith.constant dense<0.000000e+00> : vector<256x32xf32>
    %45 = tpu.matmul %1, %42, %cst_22 {dimension_numbers = #tpu.dot_dimension_numbers<[1], [0], [0], [1], [0, 0, 1, 1], [], []>} : vector<256x256xf32>, vector<256x32xf32>, vector<256x32xf32> -> vector<256x32xf32>
    %cst_23 = arith.constant dense<0.000000e+00> : vector<256x128xf32>
    %46 = tpu.matmul %45, %3, %cst_23 {dimension_numbers = #tpu.dot_dimension_numbers<[1], [0], [0], [1], [0, 0, 1, 1], [], []>} : vector<256x32xf32>, vector<32x128xf32>, vector<256x128xf32> -> vector<256x128xf32>
    %47 = vector.extract_strided_slice %46 {offsets = [0, 0], sizes = [256, 64], strides = [1, 1]} : vector<256x128xf32> to vector<256x64xf32>
    %48 = arith.addf %47, %43 : vector<256x64xf32>
    %49 = vector.broadcast %4 : vector<1x64xf32> to vector<256x64xf32>
    %50 = arith.addf %48, %49 : vector<256x64xf32>
    %51 = arith.negf %50 : vector<256x64xf32>
    %52 = math.exp %51 : vector<256x64xf32>
    %cst_24 = arith.constant 1.000000e+00 : f32
    %53 = vector.broadcast %cst_24 : f32 to vector<256x64xf32>
    %54 = arith.addf %53, %52 : vector<256x64xf32>
    %55 = arith.divf %53, %54 : vector<256x64xf32>
    %56 = vector.extract_strided_slice %55 {offsets = [0, 0], sizes = [256, 32], strides = [1, 1]} : vector<256x64xf32> to vector<256x32xf32>
    %57 = vector.extract_strided_slice %55 {offsets = [0, 32], sizes = [256, 32], strides = [1, 1]} : vector<256x64xf32> to vector<256x32xf32>
    %58 = vector.extract_strided_slice %46 {offsets = [0, 64], sizes = [256, 32], strides = [1, 1]} : vector<256x128xf32> to vector<256x32xf32>
    %59 = vector.broadcast %5 : vector<1x32xf32> to vector<256x32xf32>
    %60 = arith.addf %58, %59 : vector<256x32xf32>
    %61 = vector.broadcast %6 : vector<1x32xf32> to vector<256x32xf32>
    %62 = arith.addf %44, %61 : vector<256x32xf32>
    %63 = arith.mulf %56, %62 : vector<256x32xf32>
    %64 = arith.addf %60, %63 : vector<256x32xf32>
    %65 = math.tanh %64 : vector<256x32xf32>
    %cst_25 = arith.constant 1.000000e+00 : f32
    %66 = vector.broadcast %cst_25 : f32 to vector<256x32xf32>
    %67 = arith.subf %66, %57 : vector<256x32xf32>
    %68 = arith.mulf %67, %65 : vector<256x32xf32>
    %69 = arith.mulf %57, %38 : vector<256x32xf32>
    %70 = arith.addf %68, %69 : vector<256x32xf32>
    %c0_26 = arith.constant 0 : index
    %c0_27 = arith.constant 0 : index
    %71 = vector.load %arg3[%c0_26, %c0_27] : memref<256x1xi32, #tpu.memory_space<vmem>>, vector<256x1xi32>
    %72 = tpu.iota {dimensions = array<i32: 1>} : vector<256x256xi32>
    %73 = vector.broadcast %71 : vector<256x1xi32> to vector<256x256xi32>
    %74 = arith.cmpi eq, %73, %72 : vector<256x256xi32>
    %75 = arith.extui %74 : vector<256x256xi1> to vector<256x256xi32>
    %76 = arith.sitofp %75 : vector<256x256xi32> to vector<256x256xf32>
    %cst_28 = arith.constant dense<0.000000e+00> : vector<256x32xf32>
    %77 = tpu.matmul %76, %70, %cst_28 {dimension_numbers = #tpu.dot_dimension_numbers<[1], [0], [0], [1], [0, 0, 1, 1], [], []>} : vector<256x256xf32>, vector<256x32xf32>, vector<256x32xf32> -> vector<256x32xf32>
    %c0_29 = arith.constant 0 : index
    %c0_30 = arith.constant 0 : index
    %78 = vector.load %arg9[%c0_29, %c0_30] : memref<256x32xf32, #tpu.memory_space<vmem>>, vector<256x32xf32>
    tpu.vector_store %arg9[%c0_29, %c0_30], %77 {strides = array<i32>} : memref<256x32xf32, #tpu.memory_space<vmem>>, vector<256x32xf32>,
    return
  }
  func.func @transform_0(%arg0: i32) -> (i32, i32, i32) {
    %c0_i32 = arith.constant 0 : i32
    %c0_i32_0 = arith.constant 0 : i32
    %c0_i32_1 = arith.constant 0 : i32
    return %arg0, %c0_i32, %c0_i32_0 : i32, i32, i32
  }
  func.func @transform_1(%arg0: i32) -> (i32, i32) {
    %c0_i32 = arith.constant 0 : i32
    %c0_i32_0 = arith.constant 0 : i32
    return %arg0, %c0_i32 : i32, i32
  }
  func.func @transform_2(%arg0: i32) -> (i32, i32) {
    %c0_i32 = arith.constant 0 : i32
    %c0_i32_0 = arith.constant 0 : i32
    return %arg0, %c0_i32 : i32, i32
  }
  func.func @transform_3(%arg0: i32) -> (i32, i32, i32) {
    %c0_i32 = arith.constant 0 : i32
    %c0_i32_0 = arith.constant 0 : i32
    %c0_i32_1 = arith.constant 0 : i32
    %c0_i32_2 = arith.constant 0 : i32
    return %c0_i32, %c0_i32_0, %c0_i32_1 : i32, i32, i32
  }
  func.func @transform_4(%arg0: i32) -> (i32, i32) {
    %c0_i32 = arith.constant 0 : i32
    %c0_i32_0 = arith.constant 0 : i32
    %c0_i32_1 = arith.constant 0 : i32
    return %c0_i32, %c0_i32_0 : i32, i32
  }
  func.func @transform_5(%arg0: i32) -> (i32, i32) {
    %c0_i32 = arith.constant 0 : i32
    %c0_i32_0 = arith.constant 0 : i32
    %c0_i32_1 = arith.constant 0 : i32
    return %c0_i32, %c0_i32_0 : i32, i32
  }
  func.func @transform_6(%arg0: i32) -> (i32, i32) {
    %c0_i32 = arith.constant 0 : i32
    %c0_i32_0 = arith.constant 0 : i32
    %c0_i32_1 = arith.constant 0 : i32
    return %c0_i32, %c0_i32_0 : i32, i32
  }
  func.func @transform_7(%arg0: i32) -> (i32, i32) {
    %c0_i32 = arith.constant 0 : i32
    %c0_i32_0 = arith.constant 0 : i32
    %c0_i32_1 = arith.constant 0 : i32
    return %c0_i32, %c0_i32_0 : i32, i32
  }
  func.func @transform_8(%arg0: i32) -> (i32, i32) {
    %c0_i32 = arith.constant 0 : i32
    %c0_i32_0 = arith.constant 0 : i32
    return %arg0, %c0_i32 : i32, i32
  }
}

</mosaic_0001>

<llo_original>
// kernel: tpu_custom_call.1
$region0: #{tpu_custom_call.1}
  #allocation0 [shape = 'u32[]', space=smem, size = 0x4, offset = 0x4, fixed_abs, tag = 'smem constant byte address 0x4 - core index']
  #allocation1 [shape = 'u32[144,128]{1,0:T(1,128)}', space=vmem, size = 0x12000, scoped, tag = 'internal scratch']
  %s0 = inlined_call_operand.vmem [shape: f32[1,256,256], index: 0, kind: input, shape index: {}]
  %s1 = inlined_call_operand.vmem [shape: f32[256,32], index: 1, kind: input, shape index: {}]
  %s2 = inlined_call_operand.vmem [shape: s32[256,1], index: 2, kind: input, shape index: {}]
  %s3 = inlined_call_operand.vmem [shape: f32[2,32,128], index: 3, kind: input, shape index: {}]
  %s4 = inlined_call_operand.hbm [shape: f32[32,128], index: 4, kind: input, shape index: {}]
  %s5 = inlined_call_operand.vmem [shape: f32[1,64], index: 5, kind: input, shape index: {}]
  %s6 = inlined_call_operand.vmem [shape: f32[1,32], index: 6, kind: input, shape index: {}]
  %s7 = inlined_call_operand.vmem [shape: f32[1,32], index: 7, kind: input, shape index: {}]
  %s8 = inlined_call_operand.vmem [shape: f32[256,32], index: 8, kind: output, shape index: {}]
  %s9 = sld [smem:[#allocation0]]
  $region46: #{tpu_custom_call.1} parent=0
    _
  %s11 = ssub.s32 1, %s9
  %s12 = scalar_select 0, %s11, %s9
  $region1: #{tpu_custom_call.1} parent=0
    #allocation2 [shape = 'u8[16384]{0}', space=vmem, size = 0x4000, scoped, tag = 'input window, operand 4, single buffered']
    #allocation3 [shape = 's32[1]{0}', space=sflag, size = 0x4, scoped, tag = 'scoped memory for tpu_custom_call.1']
    %13 = vsyncpa [#allocation3], 0
    // Predicated region
    $region2: #{tpu_custom_call.1} parent=1 // pred_check
      _
    $region3: #{tpu_custom_call.1} parent=1 // pred_check_branch
      %15 = sbr.rel (0) target = $region5
    $region4: #{tpu_custom_call.1} parent=1 // pred_region
      _
    $region5: #{tpu_custom_call.1} parent=1 // pred_fallthru
      _
    // Predicated region
    $region6: #{tpu_custom_call.1} parent=1 // pred_check
      _
    $region7: #{tpu_custom_call.1} parent=1 // pred_check_branch
      %17 = sbr.rel (0) target = $region9
    $region8: #{tpu_custom_call.1} parent=1 // pred_region
      _
    $region9: #{tpu_custom_call.1} parent=1 // pred_fallthru
      _
    // Predicated region
    $region10: #{tpu_custom_call.1} parent=1 // pred_check
      _
    $region11: #{tpu_custom_call.1} parent=1 // pred_check_branch
      %19 = sbr.rel (0) target = $region13
    $region12: #{tpu_custom_call.1} parent=1 // pred_region
      _
    $region13: #{tpu_custom_call.1} parent=1 // pred_fallthru
      _
    // Predicated region
    $region14: #{tpu_custom_call.1} parent=1 // pred_check
      _
    $region15: #{tpu_custom_call.1} parent=1 // pred_check_branch
      %21 = sbr.rel (0) target = $region17
    $region16: #{tpu_custom_call.1} parent=1 // pred_region
      _
    $region17: #{tpu_custom_call.1} parent=1 // pred_fallthru
      _
    // Predicated region
    $region18: #{tpu_custom_call.1} parent=1 // pred_check
      _
    $region19: #{tpu_custom_call.1} parent=1 // pred_check_branch
      %23 = sbr.rel (0) target = $region21
    $region20: #{tpu_custom_call.1} parent=1 // pred_region
      %s25 = ssub.s32 512, 512
      %26 = vsyncadd [#allocation3], %s25
      %s27 = sshll.u32 [#allocation2], 4
      %s28 = int_to_ptr.vmem [resolvable:$true] %s27
      %33 = dma.hbm_to_vmem [thread:$0]  %s4, 512, %s28, [#allocation3], 128, 128, 8
    $region21: #{tpu_custom_call.1} parent=1 // pred_fallthru
      _
    // Predicated region
    $region22: #{tpu_custom_call.1} parent=1 // pred_check
      _
    $region23: #{tpu_custom_call.1} parent=1 // pred_check_branch
      %35 = sbr.rel (0) target = $region25
    $region24: #{tpu_custom_call.1} parent=1 // pred_region
      _
    $region25: #{tpu_custom_call.1} parent=1 // pred_fallthru
      _
    // Predicated region
    $region26: #{tpu_custom_call.1} parent=1 // pred_check
      _
    $region27: #{tpu_custom_call.1} parent=1 // pred_check_branch
      %37 = sbr.rel (0) target = $region29
    $region28: #{tpu_custom_call.1} parent=1 // pred_region
      _
    $region29: #{tpu_custom_call.1} parent=1 // pred_fallthru
      _
    // Predicated region
    $region30: #{tpu_custom_call.1} parent=1 // pred_check
      _
    $region31: #{tpu_custom_call.1} parent=1 // pred_check_branch
      %39 = sbr.rel (0) target = $region33
    $region32: #{tpu_custom_call.1} parent=1 // pred_region
      _
    $region33: #{tpu_custom_call.1} parent=1 // pred_fallthru
      _
    // Predicated region
    $region34: #{tpu_custom_call.1} parent=1 // pred_check
      _
    $region35: #{tpu_custom_call.1} parent=1 // pred_check_branch
      %41 = sbr.rel (0) target = $region37
    $region36: #{tpu_custom_call.1} parent=1 // pred_region
      %42 = dma.done [#allocation3], 512
    $region37: #{tpu_custom_call.1} parent=1 // pred_fallthru
      _
    %v43 = vld [vmem:[%s0] sm:$0xff]
    %v44 = vld [vmem:[%s0 + $0x8] sm:$0xff]
    %v45 = vld [vmem:[%s0 + $0x10] sm:$0xff]
    %v46 = vld [vmem:[%s0 + $0x18] sm:$0xff]
    %v47 = vld [vmem:[%s0 + $0x20] sm:$0xff]
    %v48 = vld [vmem:[%s0 + $0x28] sm:$0xff]
    %v49 = vld [vmem:[%s0 + $0x30] sm:$0xff]
    %v50 = vld [vmem:[%s0 + $0x38] sm:$0xff]
    %v51 = vld [vmem:[%s0 + $0x40] sm:$0xff]
    %v52 = vld [vmem:[%s0 + $0x48] sm:$0xff]
    %v53 = vld [vmem:[%s0 + $0x50] sm:$0xff]
    %v54 = vld [vmem:[%s0 + $0x58] sm:$0xff]
    %v55 = vld [vmem:[%s0 + $0x60] sm:$0xff]
    %v56 = vld [vmem:[%s0 + $0x68] sm:$0xff]
    %v57 = vld [vmem:[%s0 + $0x70] sm:$0xff]
    %v58 = vld [vmem:[%s0 + $0x78] sm:$0xff]
    %v59 = vld [vmem:[%s0 + $0x80] sm:$0xff]
    %v60 = vld [vmem:[%s0 + $0x88] sm:$0xff]
    %v61 = vld [vmem:[%s0 + $0x90] sm:$0xff]
    %v62 = vld [vmem:[%s0 + $0x98] sm:$0xff]
    %v63 = vld [vmem:[%s0 + $0xa0] sm:$0xff]
    %v64 = vld [vmem:[%s0 + $0xa8] sm:$0xff]
    %v65 = vld [vmem:[%s0 + $0xb0] sm:$0xff]
    %v66 = vld [vmem:[%s0 + $0xb8] sm:$0xff]
    %v67 = vld [vmem:[%s0 + $0xc0] sm:$0xff]
    %v68 = vld [vmem:[%s0 + $0xc8] sm:$0xff]
    %v69 = vld [vmem:[%s0 + $0xd0] sm:$0xff]
    %v70 = vld [vmem:[%s0 + $0xd8] sm:$0xff]
    %v71 = vld [vmem:[%s0 + $0xe0] sm:$0xff]
    %v72 = vld [vmem:[%s0 + $0xe8] sm:$0xff]
    %v73 = vld [vmem:[%s0 + $0xf0] sm:$0xff]
    %v74 = vld [vmem:[%s0 + $0xf8] sm:$0xff]
    %v75 = vld [vmem:[%s0 + $0x100] sm:$0xff]
    %v76 = vld [vmem:[%s0 + $0x108] sm:$0xff]
    %v77 = vld [vmem:[%s0 + $0x110] sm:$0xff]
    %v78 = vld [vmem:[%s0 + $0x118] sm:$0xff]
    %v79 = vld [vmem:[%s0 + $0x120] sm:$0xff]
    %v80 = vld [vmem:[%s0 + $0x128] sm:$0xff]
    %v81 = vld [vmem:[%s0 + $0x130] sm:$0xff]
    %v82 = vld [vmem:[%s0 + $0x138] sm:$0xff]
    %v83 = vld [vmem:[%s0 + $0x140] sm:$0xff]
    %v84 = vld [vmem:[%s0 + $0x148] sm:$0xff]
    %v85 = vld [vmem:[%s0 + $0x150] sm:$0xff]
    %v86 = vld [vmem:[%s0 + $0x158] sm:$0xff]
    %v87 = vld [vmem:[%s0 + $0x160] sm:$0xff]
    %v88 = vld [vmem:[%s0 + $0x168] sm:$0xff]
    %v89 = vld [vmem:[%s0 + $0x170] sm:$0xff]
    %v90 = vld [vmem:[%s0 + $0x178] sm:$0xff]
    %v91 = vld [vmem:[%s0 + $0x180] sm:$0xff]
    %v92 = vld [vmem:[%s0 + $0x188] sm:$0xff]
    %v93 = vld [vmem:[%s0 + $0x190] sm:$0xff]
    %v94 = vld [vmem:[%s0 + $0x198] sm:$0xff]
    %v95 = vld [vmem:[%s0 + $0x1a0] sm:$0xff]
    %v96 = vld [vmem:[%s0 + $0x1a8] sm:$0xff]
    %v97 = vld [vmem:[%s0 + $0x1b0] sm:$0xff]
    %v98 = vld [vmem:[%s0 + $0x1b8] sm:$0xff]
    %v99 = vld [vmem:[%s0 + $0x1c0] sm:$0xff]
    %v100 = vld [vmem:[%s0 + $0x1c8] sm:$0xff]
    %v101 = vld [vmem:[%s0 + $0x1d0] sm:$0xff]
    %v102 = vld [vmem:[%s0 + $0x1d8] sm:$0xff]
    %v103 = vld [vmem:[%s0 + $0x1e0] sm:$0xff]
    %v104 = vld [vmem:[%s0 + $0x1e8] sm:$0xff]
    %v105 = vld [vmem:[%s0 + $0x1f0] sm:$0xff]
    %v106 = vld [vmem:[%s0 + $0x1f8] sm:$0xff]
    %v107 = vld [vmem:[%s1] sm:$0xff]
    %v108 = vld [vmem:[%s1 + $0x8] sm:$0xff]
    %v109 = vld [vmem:[%s1 + $0x10] sm:$0xff]
    %v110 = vld [vmem:[%s1 + $0x18] sm:$0xff]
    %v111 = vld [vmem:[%s1 + $0x20] sm:$0xff]
    %v112 = vld [vmem:[%s1 + $0x28] sm:$0xff]
    %v113 = vld [vmem:[%s1 + $0x30] sm:$0xff]
    %v114 = vld [vmem:[%s1 + $0x38] sm:$0xff]
    %v115 = vld [vmem:[%s1 + $0x40] sm:$0xff]
    %v116 = vld [vmem:[%s1 + $0x48] sm:$0xff]
    %v117 = vld [vmem:[%s1 + $0x50] sm:$0xff]
    %v118 = vld [vmem:[%s1 + $0x58] sm:$0xff]
    %v119 = vld [vmem:[%s1 + $0x60] sm:$0xff]
    %v120 = vld [vmem:[%s1 + $0x68] sm:$0xff]
    %v121 = vld [vmem:[%s1 + $0x70] sm:$0xff]
    %v122 = vld [vmem:[%s1 + $0x78] sm:$0xff]
    %v123 = vld [vmem:[%s1 + $0x80] sm:$0xff]
    %v124 = vld [vmem:[%s1 + $0x88] sm:$0xff]
    %v125 = vld [vmem:[%s1 + $0x90] sm:$0xff]
    %v126 = vld [vmem:[%s1 + $0x98] sm:$0xff]
    %v127 = vld [vmem:[%s1 + $0xa0] sm:$0xff]
    %v128 = vld [vmem:[%s1 + $0xa8] sm:$0xff]
    %v129 = vld [vmem:[%s1 + $0xb0] sm:$0xff]
    %v130 = vld [vmem:[%s1 + $0xb8] sm:$0xff]
    %v131 = vld [vmem:[%s1 + $0xc0] sm:$0xff]
    %v132 = vld [vmem:[%s1 + $0xc8] sm:$0xff]
    %v133 = vld [vmem:[%s1 + $0xd0] sm:$0xff]
    %v134 = vld [vmem:[%s1 + $0xd8] sm:$0xff]
    %v135 = vld [vmem:[%s1 + $0xe0] sm:$0xff]
    %v136 = vld [vmem:[%s1 + $0xe8] sm:$0xff]
    %v137 = vld [vmem:[%s1 + $0xf0] sm:$0xff]
    %v138 = vld [vmem:[%s1 + $0xf8] sm:$0xff]
    %v139 = vld [vmem:[#allocation2] sm:$0xff]
    %v140 = vld [vmem:[#allocation2 + $0x8] sm:$0xff]
    %v141 = vld [vmem:[#allocation2 + $0x10] sm:$0xff]
    %v142 = vld [vmem:[#allocation2 + $0x18] sm:$0xff]
    %v143 = vld [vmem:[%s5] sm:$0x1]
    %v144 = vld [vmem:[%s6] sm:$0x1]
    %v145 = vld [vmem:[%s7] sm:$0x1]
    %v146 = vld [vmem:[%s3] sm:$0xff]
    %v147 = vld [vmem:[%s3 + $0x8] sm:$0xff]
    %v148 = vld [vmem:[%s3 + $0x10] sm:$0xff]
    %v149 = vld [vmem:[%s3 + $0x18] sm:$0xff]
    %vm150 = vcmask 261120
    %v152 = vsel %vm150, %v107, 0
    %v155 = vsel %vm150, %v108, 0
    %v158 = vsel %vm150, %v109, 0
    %v161 = vsel %vm150, %v110, 0
    %v164 = vsel %vm150, %v111, 0
    %v167 = vsel %vm150, %v112, 0
    %v170 = vsel %vm150, %v113, 0
    %v173 = vsel %vm150, %v114, 0
    %v176 = vsel %vm150, %v115, 0
    %v179 = vsel %vm150, %v116, 0
    %v182 = vsel %vm150, %v117, 0
    %v185 = vsel %vm150, %v118, 0
    %v188 = vsel %vm150, %v119, 0
    %v191 = vsel %vm150, %v120, 0
    %v194 = vsel %vm150, %v121, 0
    %v197 = vsel %vm150, %v122, 0
    %v200 = vsel %vm150, %v123, 0
    %v203 = vsel %vm150, %v124, 0
    %v206 = vsel %vm150, %v125, 0
    %v209 = vsel %vm150, %v126, 0
    %v212 = vsel %vm150, %v127, 0
    %v215 = vsel %vm150, %v128, 0
    %v218 = vsel %vm150, %v129, 0
    %v221 = vsel %vm150, %v130, 0
    %v224 = vsel %vm150, %v131, 0
    %v227 = vsel %vm150, %v132, 0
    %v230 = vsel %vm150, %v133, 0
    %v233 = vsel %vm150, %v134, 0
    %v236 = vsel %vm150, %v135, 0
    %v239 = vsel %vm150, %v136, 0
    %v242 = vsel %vm150, %v137, 0
    %v245 = vsel %vm150, %v138, 0
    %247 = vmatprep.subr.mxu0 0.0
    %248 = vmatpush1.msra.mxu0 %v146
    %249 = vmatprep.subr.mxu0 0.0
    %250 = vmatpush1.msra.mxu0 %v147
    %251 = vmatprep.subr.mxu0 0.0
    %252 = vmatpush1.msra.mxu0 %v148
    %253 = vmatprep.subr.mxu0 0.0
    %254 = vmatpush1.msra.mxu0 %v149
    %255 = vmatprep.subr.mxu0 0.0
    %256 = vmatpush1.msra.mxu0 0.0
    %257 = vmatprep.subr.mxu0 0.0
    %258 = vmatpush1.msra.mxu0 0.0
    %259 = vmatprep.subr.mxu0 0.0
    %260 = vmatpush1.msra.mxu0 0.0
    %261 = vmatprep.subr.mxu0 0.0
    %262 = vmatpush1.msra.mxu0 0.0
    %263 = vmatprep.subr.mxu0 0.0
    %264 = vmatpush1.msra.mxu0 0.0
    %265 = vmatprep.subr.mxu0 0.0
    %266 = vmatpush1.msra.mxu0 0.0
    %267 = vmatprep.subr.mxu0 0.0
    %268 = vmatpush1.msra.mxu0 0.0
    %269 = vmatprep.subr.mxu0 0.0
    %270 = vmatpush1.msra.mxu0 0.0
    %271 = vmatprep.subr.mxu0 0.0
    %272 = vmatpush1.msra.mxu0 0.0
    %273 = vmatprep.subr.mxu0 0.0
    %274 = vmatpush1.msra.mxu0 0.0
    %275 = vmatprep.subr.mxu0 0.0
    %276 = vmatpush1.msra.mxu0 0.0
    %277 = vmatprep.subr.mxu0 0.0
    %278 = vmatpush1.msra.mxu0 0.0
    %279 = vmatprep.subr.mxu0 0.0
    %280 = vmatpush1.msra.mxu0 0.0
    %281 = vmatprep.subr.mxu0 0.0
    %282 = vmatpush1.msra.mxu0 0.0
    %283 = vmatprep.subr.mxu0 0.0
    %284 = vmatpush1.msra.mxu0 0.0
    %285 = vmatprep.subr.mxu0 0.0
    %286 = vmatpush1.msra.mxu0 0.0
    %287 = vmatprep.subr.mxu0 0.0
    %288 = vmatpush1.msra.mxu0 0.0
    %289 = vmatprep.subr.mxu0 0.0
    %290 = vmatpush1.msra.mxu0 0.0
    %291 = vmatprep.subr.mxu0 0.0
    %292 = vmatpush1.msra.mxu0 0.0
    %293 = vmatprep.subr.mxu0 0.0
    %294 = vmatpush1.msra.mxu0 0.0
    %295 = vmatprep.subr.mxu0 0.0
    %296 = vmatpush1.msra.mxu0 0.0
    %297 = vmatprep.subr.mxu0 0.0
    %298 = vmatpush1.msra.mxu0 0.0
    %299 = vmatprep.subr.mxu0 0.0
    %300 = vmatpush1.msra.mxu0 0.0
    %301 = vmatprep.subr.mxu0 0.0
    %302 = vmatpush1.msra.mxu0 0.0
    %303 = vmatprep.subr.mxu0 0.0
    %304 = vmatpush1.msra.mxu0 0.0
    %305 = vmatprep.subr.mxu0 0.0
    %306 = vmatpush1.msra.mxu0 0.0
    %307 = vmatprep.subr.mxu0 0.0
    %308 = vmatpush1.msra.mxu0 0.0
    %309 = vmatprep.subr.mxu0 0.0
    %310 = vmatpush1.msra.mxu0 0.0
    %311 = vmatprep.mubr.f32.mxu0 0.0
    %312 = vmatmul.mubr.f32.gmra.mrb[0].mxu0 %v152
    %v313 = vpop.f32.mrb[0].mxu0
    %v314 = vadd.f32 0.0, %v313
    %v315 = vpop.f32.mrb[0].mxu0
    %316 = vmatprep.mubr.f32.mxu0 0.0
    %317 = vmatmul.mubr.f32.gmra.mrb[0].mxu0 %v155
    %v318 = vpop.f32.mrb[0].mxu0
    %v319 = vadd.f32 0.0, %v318
    %v320 = vpop.f32.mrb[0].mxu0
    %321 = vmatprep.mubr.f32.mxu0 0.0
    %322 = vmatmul.mubr.f32.gmra.mrb[0].mxu0 %v158
    %v323 = vpop.f32.mrb[0].mxu0
    %v324 = vadd.f32 0.0, %v323
    %v325 = vpop.f32.mrb[0].mxu0
    %326 = vmatprep.mubr.f32.mxu0 0.0
    %327 = vmatmul.mubr.f32.gmra.mrb[0].mxu0 %v161
    %v328 = vpop.f32.mrb[0].mxu0
    %v329 = vadd.f32 0.0, %v328
    %v330 = vpop.f32.mrb[0].mxu0
    %331 = vmatprep.mubr.f32.mxu0 0.0
    %332 = vmatmul.mubr.f32.gmra.mrb[0].mxu0 %v164
    %v333 = vpop.f32.mrb[0].mxu0
    %v334 = vadd.f32 0.0, %v333
    %v335 = vpop.f32.mrb[0].mxu0
    %336 = vmatprep.mubr.f32.mxu0 0.0
    %337 = vmatmul.mubr.f32.gmra.mrb[0].mxu0 %v167
    %v338 = vpop.f32.mrb[0].mxu0
    %v339 = vadd.f32 0.0, %v338
    %v340 = vpop.f32.mrb[0].mxu0
    %341 = vmatprep.mubr.f32.mxu0 0.0
    %342 = vmatmul.mubr.f32.gmra.mrb[0].mxu0 %v170
    %v343 = vpop.f32.mrb[0].mxu0
    %v344 = vadd.f32 0.0, %v343
    %v345 = vpop.f32.mrb[0].mxu0
    %346 = vmatprep.mubr.f32.mxu0 0.0
    %347 = vmatmul.mubr.f32.gmra.mrb[0].mxu0 %v173
    %v348 = vpop.f32.mrb[0].mxu0
    %v349 = vadd.f32 0.0, %v348
    %v350 = vpop.f32.mrb[0].mxu0
    %351 = vmatprep.mubr.f32.mxu0 0.0
    %352 = vmatmul.mubr.f32.gmra.mrb[0].mxu0 %v176
    %v353 = vpop.f32.mrb[0].mxu0
    %v354 = vadd.f32 0.0, %v353
    %v355 = vpop.f32.mrb[0].mxu0
    %356 = vmatprep.mubr.f32.mxu0 0.0
    %357 = vmatmul.mubr.f32.gmra.mrb[0].mxu0 %v179
    %v358 = vpop.f32.mrb[0].mxu0
    %v359 = vadd.f32 0.0, %v358
    %v360 = vpop.f32.mrb[0].mxu0
    %361 = vmatprep.mubr.f32.mxu0 0.0
    %362 = vmatmul.mubr.f32.gmra.mrb[0].mxu0 %v182
    %v363 = vpop.f32.mrb[0].mxu0
    %v364 = vadd.f32 0.0, %v363
    %v365 = vpop.f32.mrb[0].mxu0
    %366 = vmatprep.mubr.f32.mxu0 0.0
    %367 = vmatmul.mubr.f32.gmra.mrb[0].mxu0 %v185
    %v368 = vpop.f32.mrb[0].mxu0
    %v369 = vadd.f32 0.0, %v368
    %v370 = vpop.f32.mrb[0].mxu0
    %371 = vmatprep.mubr.f32.mxu0 0.0
    %372 = vmatmul.mubr.f32.gmra.mrb[0].mxu0 %v188
    %v373 = vpop.f32.mrb[0].mxu0
    %v374 = vadd.f32 0.0, %v373
    %v375 = vpop.f32.mrb[0].mxu0
    %376 = vmatprep.mubr.f32.mxu0 0.0
    %377 = vmatmul.mubr.f32.gmra.mrb[0].mxu0 %v191
    %v378 = vpop.f32.mrb[0].mxu0
    %v379 = vadd.f32 0.0, %v378
    %v380 = vpop.f32.mrb[0].mxu0
    %381 = vmatprep.mubr.f32.mxu0 0.0
    %382 = vmatmul.mubr.f32.gmra.mrb[0].mxu0 %v194
    %v383 = vpop.f32.mrb[0].mxu0
    %v384 = vadd.f32 0.0, %v383
    %v385 = vpop.f32.mrb[0].mxu0
    %386 = vmatprep.mubr.f32.mxu0 0.0
    %387 = vmatmul.mubr.f32.gmra.mrb[0].mxu0 %v197
    %v388 = vpop.f32.mrb[0].mxu0
    %v389 = vadd.f32 0.0, %v388
    %v390 = vpop.f32.mrb[0].mxu0
    %391 = vmatprep.mubr.f32.mxu0 0.0
    %392 = vmatmul.mubr.f32.gmra.mrb[0].mxu0 %v200
    %v393 = vpop.f32.mrb[0].mxu0
    %v394 = vadd.f32 0.0, %v393
    %v395 = vpop.f32.mrb[0].mxu0
    %396 = vmatprep.mubr.f32.mxu0 0.0
    %397 = vmatmul.mubr.f32.gmra.mrb[0].mxu0 %v203
    %v398 = vpop.f32.mrb[0].mxu0
    %v399 = vadd.f32 0.0, %v398
    %v400 = vpop.f32.mrb[0].mxu0
    %401 = vmatprep.mubr.f32.mxu0 0.0
    %402 = vmatmul.mubr.f32.gmra.mrb[0].mxu0 %v206
    %v403 = vpop.f32.mrb[0].mxu0
    %v404 = vadd.f32 0.0, %v403
    %v405 = vpop.f32.mrb[0].mxu0
    %406 = vmatprep.mubr.f32.mxu0 0.0
    %407 = vmatmul.mubr.f32.gmra.mrb[0].mxu0 %v209
    %v408 = vpop.f32.mrb[0].mxu0
    %v409 = vadd.f32 0.0, %v408
    %v410 = vpop.f32.mrb[0].mxu0
    %411 = vmatprep.mubr.f32.mxu0 0.0
    %412 = vmatmul.mubr.f32.gmra.mrb[0].mxu0 %v212
    %v413 = vpop.f32.mrb[0].mxu0
    %v414 = vadd.f32 0.0, %v413
    %v415 = vpop.f32.mrb[0].mxu0
    %416 = vmatprep.mubr.f32.mxu0 0.0
    %417 = vmatmul.mubr.f32.gmra.mrb[0].mxu0 %v215
    %v418 = vpop.f32.mrb[0].mxu0
    %v419 = vadd.f32 0.0, %v418
    %v420 = vpop.f32.mrb[0].mxu0
    %421 = vmatprep.mubr.f32.mxu0 0.0
    %422 = vmatmul.mubr.f32.gmra.mrb[0].mxu0 %v218
    %v423 = vpop.f32.mrb[0].mxu0
    %v424 = vadd.f32 0.0, %v423
    %v425 = vpop.f32.mrb[0].mxu0
    %426 = vmatprep.mubr.f32.mxu0 0.0
    %427 = vmatmul.mubr.f32.gmra.mrb[0].mxu0 %v221
    %v428 = vpop.f32.mrb[0].mxu0
    %v429 = vadd.f32 0.0, %v428
    %v430 = vpop.f32.mrb[0].mxu0
    %431 = vmatprep.mubr.f32.mxu0 0.0
    %432 = vmatmul.mubr.f32.gmra.mrb[0].mxu0 %v224
    %v433 = vpop.f32.mrb[0].mxu0
    %v434 = vadd.f32 0.0, %v433
    %v435 = vpop.f32.mrb[0].mxu0
    %436 = vmatprep.mubr.f32.mxu0 0.0
    %437 = vmatmul.mubr.f32.gmra.mrb[0].mxu0 %v227
    %v438 = vpop.f32.mrb[0].mxu0
    %v439 = vadd.f32 0.0, %v438
    %v440 = vpop.f32.mrb[0].mxu0
    %441 = vmatprep.mubr.f32.mxu0 0.0
    %442 = vmatmul.mubr.f32.gmra.mrb[0].mxu0 %v230
    %v443 = vpop.f32.mrb[0].mxu0
    %v444 = vadd.f32 0.0, %v443
    %v445 = vpop.f32.mrb[0].mxu0
    %446 = vmatprep.mubr.f32.mxu0 0.0
    %447 = vmatmul.mubr.f32.gmra.mrb[0].mxu0 %v233
    %v448 = vpop.f32.mrb[0].mxu0
    %v449 = vadd.f32 0.0, %v448
    %v450 = vpop.f32.mrb[0].mxu0
    %451 = vmatprep.mubr.f32.mxu0 0.0
    %452 = vmatmul.mubr.f32.gmra.mrb[0].mxu0 %v236
    %v453 = vpop.f32.mrb[0].mxu0
    %v454 = vadd.f32 0.0, %v453
    %v455 = vpop.f32.mrb[0].mxu0
    %456 = vmatprep.mubr.f32.mxu0 0.0
    %457 = vmatmul.mubr.f32.gmra.mrb[0].mxu0 %v239
    %v458 = vpop.f32.mrb[0].mxu0
    %v459 = vadd.f32 0.0, %v458
    %v460 = vpop.f32.mrb[0].mxu0
    %461 = vmatprep.mubr.f32.mxu0 0.0
    %462 = vmatmul.mubr.f32.gmra.mrb[0].mxu0 %v242
    %v463 = vpop.f32.mrb[0].mxu0
    %v464 = vadd.f32 0.0, %v463
    %v465 = vpop.f32.mrb[0].mxu0
    %466 = vmatprep.mubr.f32.mxu0 0.0
    %467 = vmatmul.mubr.f32.gmra.mrb[0].mxu0 %v245
    %v468 = vpop.f32.mrb[0].mxu0
    %v469 = vadd.f32 0.0, %v468
    %v470 = vpop.f32.mrb[0].mxu0
    %471 = vdwg.mxu0
    %472 = vmatprep.subr.mxu0 0.0
    %473 = vmatpush1.msra.mxu0 %v314
    %474 = vmatprep.subr.mxu0 0.0
    %475 = vmatpush1.msra.mxu0 %v319
    %476 = vmatprep.subr.mxu0 0.0
    %477 = vmatpush1.msra.mxu0 %v324
    %478 = vmatprep.subr.mxu0 0.0
    %479 = vmatpush1.msra.mxu0 %v329
    %480 = vmatprep.subr.mxu0 0.0
    %481 = vmatpush1.msra.mxu0 %v334
    %482 = vmatprep.subr.mxu0 0.0
    %483 = vmatpush1.msra.mxu0 %v339
    %484 = vmatprep.subr.mxu0 0.0
    %485 = vmatpush1.msra.mxu0 %v344
    %486 = vmatprep.subr.mxu0 0.0
    %487 = vmatpush1.msra.mxu0 %v349
    %488 = vmatprep.subr.mxu0 0.0
    %489 = vmatpush1.msra.mxu0 %v354
    %490 = vmatprep.subr.mxu0 0.0
    %491 = vmatpush1.msra.mxu0 %v359
    %492 = vmatprep.subr.mxu0 0.0
    %493 = vmatpush1.msra.mxu0 %v364
    %494 = vmatprep.subr.mxu0 0.0
    %495 = vmatpush1.msra.mxu0 %v369
    %496 = vmatprep.subr.mxu0 0.0
    %497 = vmatpush1.msra.mxu0 %v374
    %498 = vmatprep.subr.mxu0 0.0
    %499 = vmatpush1.msra.mxu0 %v379
    %500 = vmatprep.subr.mxu0 0.0
    %501 = vmatpush1.msra.mxu0 %v384
    %502 = vmatprep.subr.mxu0 0.0
    %503 = vmatpush1.msra.mxu0 %v389
    %504 = vmatprep.subr.mxu0 0.0
    %505 = vmatpush1.msra.mxu0 %v394
    %506 = vmatprep.subr.mxu0 0.0
    %507 = vmatpush1.msra.mxu0 %v399
    %508 = vmatprep.subr.mxu0 0.0
    %509 = vmatpush1.msra.mxu0 %v404
    %510 = vmatprep.subr.mxu0 0.0
    %511 = vmatpush1.msra.mxu0 %v409
    %512 = vmatprep.subr.mxu0 0.0
    %513 = vmatpush1.msra.mxu0 %v414
    %514 = vmatprep.subr.mxu0 0.0
    %515 = vmatpush1.msra.mxu0 %v419
    %516 = vmatprep.subr.mxu0 0.0
    %517 = vmatpush1.msra.mxu0 %v424
    %518 = vmatprep.subr.mxu0 0.0
    %519 = vmatpush1.msra.mxu0 %v429
    %520 = vmatprep.subr.mxu0 0.0
    %521 = vmatpush1.msra.mxu0 %v434
    %522 = vmatprep.subr.mxu0 0.0
    %523 = vmatpush1.msra.mxu0 %v439
    %524 = vmatprep.subr.mxu0 0.0
    %525 = vmatpush1.msra.mxu0 %v444
    %526 = vmatprep.subr.mxu0 0.0
    %527 = vmatpush1.msra.mxu0 %v449
    %528 = vmatprep.subr.mxu0 0.0
    %529 = vmatpush1.msra.mxu0 %v454
    %530 = vmatprep.subr.mxu0 0.0
    %531 = vmatpush1.msra.mxu0 %v459
    %532 = vmatprep.subr.mxu0 0.0
    %533 = vmatpush1.msra.mxu0 %v464
    %534 = vmatprep.subr.mxu0 0.0
    %535 = vmatpush1.msra.mxu0 %v469
    %536 = vmatprep.mubr.f32.mxu0 %v44
    %537 = vmatmul.mubr.f32.gmra.mrb[0].mxu0 %v43
    %v538 = vpop.f32.mrb[0].mxu0
    %v539 = vadd.f32 0.0, %v538
    %v540 = vpop.f32.mrb[0].mxu0
    %541 = vmatprep.mubr.f32.mxu0 %v46
    %542 = vmatmul.mubr.f32.gmra.mrb[0].mxu0 %v45
    %v543 = vpop.f32.mrb[0].mxu0
    %v544 = vadd.f32 0.0, %v543
    %v545 = vpop.f32.mrb[0].mxu0
    %546 = vmatprep.mubr.f32.mxu0 %v48
    %547 = vmatmul.mubr.f32.gmra.mrb[0].mxu0 %v47
    %v548 = vpop.f32.mrb[0].mxu0
    %v549 = vadd.f32 0.0, %v548
    %v550 = vpop.f32.mrb[0].mxu0
    %551 = vmatprep.mubr.f32.mxu0 %v50
    %552 = vmatmul.mubr.f32.gmra.mrb[0].mxu0 %v49
    %v553 = vpop.f32.mrb[0].mxu0
    %v554 = vadd.f32 0.0, %v553
    %v555 = vpop.f32.mrb[0].mxu0
    %556 = vmatprep.mubr.f32.mxu0 %v52
    %557 = vmatmul.mubr.f32.gmra.mrb[0].mxu0 %v51
    %v558 = vpop.f32.mrb[0].mxu0
    %v559 = vadd.f32 0.0, %v558
    %v560 = vpop.f32.mrb[0].mxu0
    %561 = vmatprep.mubr.f32.mxu0 %v54
    %562 = vmatmul.mubr.f32.gmra.mrb[0].mxu0 %v53
    %v563 = vpop.f32.mrb[0].mxu0
    %v564 = vadd.f32 0.0, %v563
    %v565 = vpop.f32.mrb[0].mxu0
    %566 = vmatprep.mubr.f32.mxu0 %v56
    %567 = vmatmul.mubr.f32.gmra.mrb[0].mxu0 %v55
    %v568 = vpop.f32.mrb[0].mxu0
    %v569 = vadd.f32 0.0, %v568
    %v570 = vpop.f32.mrb[0].mxu0
    %571 = vmatprep.mubr.f32.mxu0 %v58
    %572 = vmatmul.mubr.f32.gmra.mrb[0].mxu0 %v57
    %v573 = vpop.f32.mrb[0].mxu0
    %v574 = vadd.f32 0.0, %v573
    %v575 = vpop.f32.mrb[0].mxu0
    %576 = vmatprep.mubr.f32.mxu0 %v60
    %577 = vmatmul.mubr.f32.gmra.mrb[0].mxu0 %v59
    %v578 = vpop.f32.mrb[0].mxu0
    %v579 = vadd.f32 0.0, %v578
    %v580 = vpop.f32.mrb[0].mxu0
    %581 = vmatprep.mubr.f32.mxu0 %v62
    %582 = vmatmul.mubr.f32.gmra.mrb[0].mxu0 %v61
    %v583 = vpop.f32.mrb[0].mxu0
    %v584 = vadd.f32 0.0, %v583
    %v585 = vpop.f32.mrb[0].mxu0
    %586 = vmatprep.mubr.f32.mxu0 %v64
    %587 = vmatmul.mubr.f32.gmra.mrb[0].mxu0 %v63
    %v588 = vpop.f32.mrb[0].mxu0
    %v589 = vadd.f32 0.0, %v588
    %v590 = vpop.f32.mrb[0].mxu0
    %591 = vmatprep.mubr.f32.mxu0 %v66
    %592 = vmatmul.mubr.f32.gmra.mrb[0].mxu0 %v65
    %v593 = vpop.f32.mrb[0].mxu0
    %v594 = vadd.f32 0.0, %v593
    %v595 = vpop.f32.mrb[0].mxu0
    %596 = vmatprep.mubr.f32.mxu0 %v68
    %597 = vmatmul.mubr.f32.gmra.mrb[0].mxu0 %v67
    %v598 = vpop.f32.mrb[0].mxu0
    %v599 = vadd.f32 0.0, %v598
    %v600 = vpop.f32.mrb[0].mxu0
    %601 = vmatprep.mubr.f32.mxu0 %v70
    %602 = vmatmul.mubr.f32.gmra.mrb[0].mxu0 %v69
    %v603 = vpop.f32.mrb[0].mxu0
    %v604 = vadd.f32 0.0, %v603
    %v605 = vpop.f32.mrb[0].mxu0
    %606 = vmatprep.mubr.f32.mxu0 %v72
    %607 = vmatmul.mubr.f32.gmra.mrb[0].mxu0 %v71
    %v608 = vpop.f32.mrb[0].mxu0
    %v609 = vadd.f32 0.0, %v608
    %v610 = vpop.f32.mrb[0].mxu0
    %611 = vmatprep.mubr.f32.mxu0 %v74
    %612 = vmatmul.mubr.f32.gmra.mrb[0].mxu0 %v73
    %v613 = vpop.f32.mrb[0].mxu0
    %v614 = vadd.f32 0.0, %v613
    %v615 = vpop.f32.mrb[0].mxu0
    %616 = vmatprep.mubr.f32.mxu0 %v76
    %617 = vmatmul.mubr.f32.gmra.mrb[0].mxu0 %v75
    %v618 = vpop.f32.mrb[0].mxu0
    %v619 = vadd.f32 0.0, %v618
    %v620 = vpop.f32.mrb[0].mxu0
    %621 = vmatprep.mubr.f32.mxu0 %v78
    %622 = vmatmul.mubr.f32.gmra.mrb[0].mxu0 %v77
    %v623 = vpop.f32.mrb[0].mxu0
    %v624 = vadd.f32 0.0, %v623
    %v625 = vpop.f32.mrb[0].mxu0
    %626 = vmatprep.mubr.f32.mxu0 %v80
    %627 = vmatmul.mubr.f32.gmra.mrb[0].mxu0 %v79
    %v628 = vpop.f32.mrb[0].mxu0
    %v629 = vadd.f32 0.0, %v628
    %v630 = vpop.f32.mrb[0].mxu0
    %631 = vmatprep.mubr.f32.mxu0 %v82
    %632 = vmatmul.mubr.f32.gmra.mrb[0].mxu0 %v81
    %v633 = vpop.f32.mrb[0].mxu0
    %v634 = vadd.f32 0.0, %v633
    %v635 = vpop.f32.mrb[0].mxu0
    %636 = vmatprep.mubr.f32.mxu0 %v84
    %637 = vmatmul.mubr.f32.gmra.mrb[0].mxu0 %v83
    %v638 = vpop.f32.mrb[0].mxu0
    %v639 = vadd.f32 0.0, %v638
    %v640 = vpop.f32.mrb[0].mxu0
    %641 = vmatprep.mubr.f32.mxu0 %v86
    %642 = vmatmul.mubr.f32.gmra.mrb[0].mxu0 %v85
    %v643 = vpop.f32.mrb[0].mxu0
    %v644 = vadd.f32 0.0, %v643
    %v645 = vpop.f32.mrb[0].mxu0
    %646 = vmatprep.mubr.f32.mxu0 %v88
    %647 = vmatmul.mubr.f32.gmra.mrb[0].mxu0 %v87
    %v648 = vpop.f32.mrb[0].mxu0
    %v649 = vadd.f32 0.0, %v648
    %v650 = vpop.f32.mrb[0].mxu0
    %651 = vmatprep.mubr.f32.mxu0 %v90
    %652 = vmatmul.mubr.f32.gmra.mrb[0].mxu0 %v89
    %v653 = vpop.f32.mrb[0].mxu0
    %v654 = vadd.f32 0.0, %v653
    %v655 = vpop.f32.mrb[0].mxu0
    %656 = vmatprep.mubr.f32.mxu0 %v92
    %657 = vmatmul.mubr.f32.gmra.mrb[0].mxu0 %v91
    %v658 = vpop.f32.mrb[0].mxu0
    %v659 = vadd.f32 0.0, %v658
    %v660 = vpop.f32.mrb[0].mxu0
    %661 = vmatprep.mubr.f32.mxu0 %v94
    %662 = vmatmul.mubr.f32.gmra.mrb[0].mxu0 %v93
    %v663 = vpop.f32.mrb[0].mxu0
    %v664 = vadd.f32 0.0, %v663
    %v665 = vpop.f32.mrb[0].mxu0
    %666 = vmatprep.mubr.f32.mxu0 %v96
    %667 = vmatmul.mubr.f32.gmra.mrb[0].mxu0 %v95
    %v668 = vpop.f32.mrb[0].mxu0
    %v669 = vadd.f32 0.0, %v668
    %v670 = vpop.f32.mrb[0].mxu0
    %671 = vmatprep.mubr.f32.mxu0 %v98
    %672 = vmatmul.mubr.f32.gmra.mrb[0].mxu0 %v97
    %v673 = vpop.f32.mrb[0].mxu0
    %v674 = vadd.f32 0.0, %v673
    %v675 = vpop.f32.mrb[0].mxu0
    %676 = vmatprep.mubr.f32.mxu0 %v100
    %677 = vmatmul.mubr.f32.gmra.mrb[0].mxu0 %v99
    %v678 = vpop.f32.mrb[0].mxu0
    %v679 = vadd.f32 0.0, %v678
    %v680 = vpop.f32.mrb[0].mxu0
    %681 = vmatprep.mubr.f32.mxu0 %v102
    %682 = vmatmul.mubr.f32.gmra.mrb[0].mxu0 %v101
    %v683 = vpop.f32.mrb[0].mxu0
    %v684 = vadd.f32 0.0, %v683
    %v685 = vpop.f32.mrb[0].mxu0
    %686 = vmatprep.mubr.f32.mxu0 %v104
    %687 = vmatmul.mubr.f32.gmra.mrb[0].mxu0 %v103
    %v688 = vpop.f32.mrb[0].mxu0
    %v689 = vadd.f32 0.0, %v688
    %v690 = vpop.f32.mrb[0].mxu0
    %691 = vmatprep.mubr.f32.mxu0 %v106
    %692 = vmatmul.mubr.f32.gmra.mrb[0].mxu0 %v105
    %v693 = vpop.f32.mrb[0].mxu0
    %v694 = vadd.f32 0.0, %v693
    %v695 = vpop.f32.mrb[0].mxu0
    %696 = vdwg.mxu0
    %v698 = vsel %vm150, %v539, 0
    %v701 = vsel %vm150, %v544, 0
    %v704 = vsel %vm150, %v549, 0
    %v707 = vsel %vm150, %v554, 0
    %v710 = vsel %vm150, %v559, 0
    %v713 = vsel %vm150, %v564, 0
    %v716 = vsel %vm150, %v569, 0
    %v719 = vsel %vm150, %v574, 0
    %v722 = vsel %vm150, %v579, 0
    %v725 = vsel %vm150, %v584, 0
    %v728 = vsel %vm150, %v589, 0
    %v731 = vsel %vm150, %v594, 0
    %v734 = vsel %vm150, %v599, 0
    %v737 = vsel %vm150, %v604, 0
    %v740 = vsel %vm150, %v609, 0
    %v743 = vsel %vm150, %v614, 0
    %v746 = vsel %vm150, %v619, 0
    %v749 = vsel %vm150, %v624, 0
    %v752 = vsel %vm150, %v629, 0
    %v755 = vsel %vm150, %v634, 0
    %v758 = vsel %vm150, %v639, 0
    %v761 = vsel %vm150, %v644, 0
    %v764 = vsel %vm150, %v649, 0
    %v767 = vsel %vm150, %v654, 0
    %v770 = vsel %vm150, %v659, 0
    %v773 = vsel %vm150, %v664, 0
    %v776 = vsel %vm150, %v669, 0
    %v779 = vsel %vm150, %v674, 0
    %v782 = vsel %vm150, %v679, 0
    %v785 = vsel %vm150, %v684, 0
    %v788 = vsel %vm150, %v689, 0
    %v791 = vsel %vm150, %v694, 0
    %793 = vmatprep.subr.mxu0 0.0
    %794 = vmatpush1.msra.mxu0 %v139
    %795 = vmatprep.subr.mxu0 0.0
    %796 = vmatpush1.msra.mxu0 %v140
    %797 = vmatprep.subr.mxu0 0.0
    %798 = vmatpush1.msra.mxu0 %v141
    %799 = vmatprep.subr.mxu0 0.0
    %800 = vmatpush1.msra.mxu0 %v142
    %801 = vmatprep.subr.mxu0 0.0
    %802 = vmatpush1.msra.mxu0 0.0
    %803 = vmatprep.subr.mxu0 0.0
    %804 = vmatpush1.msra.mxu0 0.0
    %805 = vmatprep.subr.mxu0 0.0
    %806 = vmatpush1.msra.mxu0 0.0
    %807 = vmatprep.subr.mxu0 0.0
    %808 = vmatpush1.msra.mxu0 0.0
    %809 = vmatprep.subr.mxu0 0.0
    %810 = vmatpush1.msra.mxu0 0.0
    %811 = vmatprep.subr.mxu0 0.0
    %812 = vmatpush1.msra.mxu0 0.0
    %813 = vmatprep.subr.mxu0 0.0
    %814 = vmatpush1.msra.mxu0 0.0
    %815 = vmatprep.subr.mxu0 0.0
    %816 = vmatpush1.msra.mxu0 0.0
    %817 = vmatprep.subr.mxu0 0.0
    %818 = vmatpush1.msra.mxu0 0.0
    %819 = vmatprep.subr.mxu0 0.0
    %820 = vmatpush1.msra.mxu0 0.0
    %821 = vmatprep.subr.mxu0 0.0
    %822 = vmatpush1.msra.mxu0 0.0
    %823 = vmatprep.subr.mxu0 0.0
    %824 = vmatpush1.msra.mxu0 0.0
    %825 = vmatprep.subr.mxu0 0.0
    %826 = vmatpush1.msra.mxu0 0.0
    %827 = vmatprep.subr.mxu0 0.0
    %828 = vmatpush1.msra.mxu0 0.0
    %829 = vmatprep.subr.mxu0 0.0
    %830 = vmatpush1.msra.mxu0 0.0
    %831 = vmatprep.subr.mxu0 0.0
    %832 = vmatpush1.msra.mxu0 0.0
    %833 = vmatprep.subr.mxu0 0.0
    %834 = vmatpush1.msra.mxu0 0.0
    %835 = vmatprep.subr.mxu0 0.0
    %836 = vmatpush1.msra.mxu0 0.0
    %837 = vmatprep.subr.mxu0 0.0
    %838 = vmatpush1.msra.mxu0 0.0
    %839 = vmatprep.subr.mxu0 0.0
    %840 = vmatpush1.msra.mxu0 0.0
    %841 = vmatprep.subr.mxu0 0.0
    %842 = vmatpush1.msra.mxu0 0.0
    %843 = vmatprep.subr.mxu0 0.0
    %844 = vmatpush1.msra.mxu0 0.0
    %845 = vmatprep.subr.mxu0 0.0
    %846 = vmatpush1.msra.mxu0 0.0
    %847 = vmatprep.subr.mxu0 0.0
    %848 = vmatpush1.msra.mxu0 0.0
    %849 = vmatprep.subr.mxu0 0.0
    %850 = vmatpush1.msra.mxu0 0.0
    %851 = vmatprep.subr.mxu0 0.0
    %852 = vmatpush1.msra.mxu0 0.0
    %853 = vmatprep.subr.mxu0 0.0
    %854 = vmatpush1.msra.mxu0 0.0
    %855 = vmatprep.subr.mxu0 0.0
    %856 = vmatpush1.msra.mxu0 0.0
    %857 = vmatprep.mubr.f32.mxu0 0.0
    %858 = vmatmul.mubr.f32.gmra.mrb[0].mxu0 %v698
    %v859 = vpop.f32.mrb[0].mxu0
    %v860 = vadd.f32 0.0, %v859
    %v861 = vpop.f32.mrb[0].mxu0
    %862 = vmatprep.mubr.f32.mxu0 0.0
    %863 = vmatmul.mubr.f32.gmra.mrb[0].mxu0 %v701
    %v864 = vpop.f32.mrb[0].mxu0
    %v865 = vadd.f32 0.0, %v864
    %v866 = vpop.f32.mrb[0].mxu0
    %867 = vmatprep.mubr.f32.mxu0 0.0
    %868 = vmatmul.mubr.f32.gmra.mrb[0].mxu0 %v704
    %v869 = vpop.f32.mrb[0].mxu0
    %v870 = vadd.f32 0.0, %v869
    %v871 = vpop.f32.mrb[0].mxu0
    %872 = vmatprep.mubr.f32.mxu0 0.0
    %873 = vmatmul.mubr.f32.gmra.mrb[0].mxu0 %v707
    %v874 = vpop.f32.mrb[0].mxu0
    %v875 = vadd.f32 0.0, %v874
    %v876 = vpop.f32.mrb[0].mxu0
    %877 = vmatprep.mubr.f32.mxu0 0.0
    %878 = vmatmul.mubr.f32.gmra.mrb[0].mxu0 %v710
    %v879 = vpop.f32.mrb[0].mxu0
    %v880 = vadd.f32 0.0, %v879
    %v881 = vpop.f32.mrb[0].mxu0
    %882 = vmatprep.mubr.f32.mxu0 0.0
    %883 = vmatmul.mubr.f32.gmra.mrb[0].mxu0 %v713
    %v884 = vpop.f32.mrb[0].mxu0
    %v885 = vadd.f32 0.0, %v884
    %v886 = vpop.f32.mrb[0].mxu0
    %887 = vmatprep.mubr.f32.mxu0 0.0
    %888 = vmatmul.mubr.f32.gmra.mrb[0].mxu0 %v716
    %v889 = vpop.f32.mrb[0].mxu0
    %v890 = vadd.f32 0.0, %v889
    %v891 = vpop.f32.mrb[0].mxu0
    %892 = vmatprep.mubr.f32.mxu0 0.0
    %893 = vmatmul.mubr.f32.gmra.mrb[0].mxu0 %v719
    %v894 = vpop.f32.mrb[0].mxu0
    %v895 = vadd.f32 0.0, %v894
    %v896 = vpop.f32.mrb[0].mxu0
    %897 = vmatprep.mubr.f32.mxu0 0.0
    %898 = vmatmul.mubr.f32.gmra.mrb[0].mxu0 %v722
    %v899 = vpop.f32.mrb[0].mxu0
    %v900 = vadd.f32 0.0, %v899
    %v901 = vpop.f32.mrb[0].mxu0
    %902 = vmatprep.mubr.f32.mxu0 0.0
    %903 = vmatmul.mubr.f32.gmra.mrb[0].mxu0 %v725
    %v904 = vpop.f32.mrb[0].mxu0
    %v905 = vadd.f32 0.0, %v904
    %v906 = vpop.f32.mrb[0].mxu0
    %907 = vmatprep.mubr.f32.mxu0 0.0
    %908 = vmatmul.mubr.f32.gmra.mrb[0].mxu0 %v728
    %v909 = vpop.f32.mrb[0].mxu0
    %v910 = vadd.f32 0.0, %v909
    %v911 = vpop.f32.mrb[0].mxu0
    %912 = vmatprep.mubr.f32.mxu0 0.0
    %913 = vmatmul.mubr.f32.gmra.mrb[0].mxu0 %v731
    %v914 = vpop.f32.mrb[0].mxu0
    %v915 = vadd.f32 0.0, %v914
    %v916 = vpop.f32.mrb[0].mxu0
    %917 = vmatprep.mubr.f32.mxu0 0.0
    %918 = vmatmul.mubr.f32.gmra.mrb[0].mxu0 %v734
    %v919 = vpop.f32.mrb[0].mxu0
    %v920 = vadd.f32 0.0, %v919
    %v921 = vpop.f32.mrb[0].mxu0
    %922 = vmatprep.mubr.f32.mxu0 0.0
    %923 = vmatmul.mubr.f32.gmra.mrb[0].mxu0 %v737
    %v924 = vpop.f32.mrb[0].mxu0
    %v925 = vadd.f32 0.0, %v924
    %v926 = vpop.f32.mrb[0].mxu0
    %927 = vmatprep.mubr.f32.mxu0 0.0
    %928 = vmatmul.mubr.f32.gmra.mrb[0].mxu0 %v740
    %v929 = vpop.f32.mrb[0].mxu0
    %v930 = vadd.f32 0.0, %v929
    %v931 = vpop.f32.mrb[0].mxu0
    %932 = vmatprep.mubr.f32.mxu0 0.0
    %933 = vmatmul.mubr.f32.gmra.mrb[0].mxu0 %v743
    %v934 = vpop.f32.mrb[0].mxu0
    %v935 = vadd.f32 0.0, %v934
    %v936 = vpop.f32.mrb[0].mxu0
    %937 = vmatprep.mubr.f32.mxu0 0.0
    %938 = vmatmul.mubr.f32.gmra.mrb[0].mxu0 %v746
    %v939 = vpop.f32.mrb[0].mxu0
    %v940 = vadd.f32 0.0, %v939
    %v941 = vpop.f32.mrb[0].mxu0
    %942 = vmatprep.mubr.f32.mxu0 0.0
    %943 = vmatmul.mubr.f32.gmra.mrb[0].mxu0 %v749
    %v944 = vpop.f32.mrb[0].mxu0
    %v945 = vadd.f32 0.0, %v944
    %v946 = vpop.f32.mrb[0].mxu0
    %947 = vmatprep.mubr.f32.mxu0 0.0
    %948 = vmatmul.mubr.f32.gmra.mrb[0].mxu0 %v752
    %v949 = vpop.f32.mrb[0].mxu0
    %v950 = vadd.f32 0.0, %v949
    %v951 = vpop.f32.mrb[0].mxu0
    %952 = vmatprep.mubr.f32.mxu0 0.0
    %953 = vmatmul.mubr.f32.gmra.mrb[0].mxu0 %v755
    %v954 = vpop.f32.mrb[0].mxu0
    %v955 = vadd.f32 0.0, %v954
    %v956 = vpop.f32.mrb[0].mxu0
    %957 = vmatprep.mubr.f32.mxu0 0.0
    %958 = vmatmul.mubr.f32.gmra.mrb[0].mxu0 %v758
    %v959 = vpop.f32.mrb[0].mxu0
    %v960 = vadd.f32 0.0, %v959
    %v961 = vpop.f32.mrb[0].mxu0
    %962 = vmatprep.mubr.f32.mxu0 0.0
    %963 = vmatmul.mubr.f32.gmra.mrb[0].mxu0 %v761
    %v964 = vpop.f32.mrb[0].mxu0
    %v965 = vadd.f32 0.0, %v964
    %v966 = vpop.f32.mrb[0].mxu0
    %967 = vmatprep.mubr.f32.mxu0 0.0
    %968 = vmatmul.mubr.f32.gmra.mrb[0].mxu0 %v764
    %v969 = vpop.f32.mrb[0].mxu0
    %v970 = vadd.f32 0.0, %v969
    %v971 = vpop.f32.mrb[0].mxu0
    %972 = vmatprep.mubr.f32.mxu0 0.0
    %973 = vmatmul.mubr.f32.gmra.mrb[0].mxu0 %v767
    %v974 = vpop.f32.mrb[0].mxu0
    %v975 = vadd.f32 0.0, %v974
    %v976 = vpop.f32.mrb[0].mxu0
    %977 = vmatprep.mubr.f32.mxu0 0.0
    %978 = vmatmul.mubr.f32.gmra.mrb[0].mxu0 %v770
    %v979 = vpop.f32.mrb[0].mxu0
    %v980 = vadd.f32 0.0, %v979
    %v981 = vpop.f32.mrb[0].mxu0
    %982 = vmatprep.mubr.f32.mxu0 0.0
    %983 = vmatmul.mubr.f32.gmra.mrb[0].mxu0 %v773
    %v984 = vpop.f32.mrb[0].mxu0
    %v985 = vadd.f32 0.0, %v984
    %v986 = vpop.f32.mrb[0].mxu0
    %987 = vmatprep.mubr.f32.mxu0 0.0
    %988 = vmatmul.mubr.f32.gmra.mrb[0].mxu0 %v776
    %v989 = vpop.f32.mrb[0].mxu0
    %v990 = vadd.f32 0.0, %v989
    %v991 = vpop.f32.mrb[0].mxu0
    %992 = vmatprep.mubr.f32.mxu0 0.0
    %993 = vmatmul.mubr.f32.gmra.mrb[0].mxu0 %v779
    %v994 = vpop.f32.mrb[0].mxu0
    %v995 = vadd.f32 0.0, %v994
    %v996 = vpop.f32.mrb[0].mxu0
    %997 = vmatprep.mubr.f32.mxu0 0.0
    %998 = vmatmul.mubr.f32.gmra.mrb[0].mxu0 %v782
    %v999 = vpop.f32.mrb[0].mxu0
    %v1000 = vadd.f32 0.0, %v999
    %v1001 = vpop.f32.mrb[0].mxu0
    %1002 = vmatprep.mubr.f32.mxu0 0.0
    %1003 = vmatmul.mubr.f32.gmra.mrb[0].mxu0 %v785
    %v1004 = vpop.f32.mrb[0].mxu0
    %v1005 = vadd.f32 0.0, %v1004
    %v1006 = vpop.f32.mrb[0].mxu0
    %1007 = vmatprep.mubr.f32.mxu0 0.0
    %1008 = vmatmul.mubr.f32.gmra.mrb[0].mxu0 %v788
    %v1009 = vpop.f32.mrb[0].mxu0
    %v1010 = vadd.f32 0.0, %v1009
    %v1011 = vpop.f32.mrb[0].mxu0
    %1012 = vmatprep.mubr.f32.mxu0 0.0
    %1013 = vmatmul.mubr.f32.gmra.mrb[0].mxu0 %v791
    %v1014 = vpop.f32.mrb[0].mxu0
    %v1015 = vadd.f32 0.0, %v1014
    %v1016 = vpop.f32.mrb[0].mxu0
    %1017 = vdwg.mxu0
    %1050 = vrot.lane.b32.xlu0 %v314, 96
    %v1051 = vpop.permute.xlu0 %1050
    %1052 = vrot.lane.b32.xlu0 %v319, 96
    %v1053 = vpop.permute.xlu0 %1052
    %1054 = vrot.lane.b32.xlu0 %v324, 96
    %v1055 = vpop.permute.xlu0 %1054
    %1056 = vrot.lane.b32.xlu0 %v329, 96
    %v1057 = vpop.permute.xlu0 %1056
    %1058 = vrot.lane.b32.xlu0 %v334, 96
    %v1059 = vpop.permute.xlu0 %1058
    %1060 = vrot.lane.b32.xlu0 %v339, 96
    %v1061 = vpop.permute.xlu0 %1060
    %1062 = vrot.lane.b32.xlu0 %v344, 96
    %v1063 = vpop.permute.xlu0 %1062
    %1064 = vrot.lane.b32.xlu0 %v349, 96
    %v1065 = vpop.permute.xlu0 %1064
    %1066 = vrot.lane.b32.xlu0 %v354, 96
    %v1067 = vpop.permute.xlu0 %1066
    %1068 = vrot.lane.b32.xlu0 %v359, 96
    %v1069 = vpop.permute.xlu0 %1068
    %1070 = vrot.lane.b32.xlu0 %v364, 96
    %v1071 = vpop.permute.xlu0 %1070
    %1072 = vrot.lane.b32.xlu0 %v369, 96
    %v1073 = vpop.permute.xlu0 %1072
    %1074 = vrot.lane.b32.xlu0 %v374, 96
    %v1075 = vpop.permute.xlu0 %1074
    %1076 = vrot.lane.b32.xlu0 %v379, 96
    %v1077 = vpop.permute.xlu0 %1076
    %1078 = vrot.lane.b32.xlu0 %v384, 96
    %v1079 = vpop.permute.xlu0 %1078
    %1080 = vrot.lane.b32.xlu0 %v389, 96
    %v1081 = vpop.permute.xlu0 %1080
    %1082 = vrot.lane.b32.xlu0 %v394, 96
    %v1083 = vpop.permute.xlu0 %1082
    %1084 = vrot.lane.b32.xlu0 %v399, 96
    %v1085 = vpop.permute.xlu0 %1084
    %1086 = vrot.lane.b32.xlu0 %v404, 96
    %v1087 = vpop.permute.xlu0 %1086
    %1088 = vrot.lane.b32.xlu0 %v409, 96
    %v1089 = vpop.permute.xlu0 %1088
    %1090 = vrot.lane.b32.xlu0 %v414, 96
    %v1091 = vpop.permute.xlu0 %1090
    %1092 = vrot.lane.b32.xlu0 %v419, 96
    %v1093 = vpop.permute.xlu0 %1092
    %1094 = vrot.lane.b32.xlu0 %v424, 96
    %v1095 = vpop.permute.xlu0 %1094
    %1096 = vrot.lane.b32.xlu0 %v429, 96
    %v1097 = vpop.permute.xlu0 %1096
    %1098 = vrot.lane.b32.xlu0 %v434, 96
    %v1099 = vpop.permute.xlu0 %1098
    %1100 = vrot.lane.b32.xlu0 %v439, 96
    %v1101 = vpop.permute.xlu0 %1100
    %1102 = vrot.lane.b32.xlu0 %v444, 96
    %v1103 = vpop.permute.xlu0 %1102
    %1104 = vrot.lane.b32.xlu0 %v449, 96
    %v1105 = vpop.permute.xlu0 %1104
    %1106 = vrot.lane.b32.xlu0 %v454, 96
    %v1107 = vpop.permute.xlu0 %1106
    %1108 = vrot.lane.b32.xlu0 %v459, 96
    %v1109 = vpop.permute.xlu0 %1108
    %1110 = vrot.lane.b32.xlu0 %v464, 96
    %v1111 = vpop.permute.xlu0 %1110
    %1112 = vrot.lane.b32.xlu0 %v469, 96
    %v1113 = vpop.permute.xlu0 %1112
    %v1146 = vadd.f32 %v860, %v1051
    %v1147 = vadd.f32 %v865, %v1053
    %v1148 = vadd.f32 %v870, %v1055
    %v1149 = vadd.f32 %v875, %v1057
    %v1150 = vadd.f32 %v880, %v1059
    %v1151 = vadd.f32 %v885, %v1061
    %v1152 = vadd.f32 %v890, %v1063
    %v1153 = vadd.f32 %v895, %v1065
    %v1154 = vadd.f32 %v900, %v1067
    %v1155 = vadd.f32 %v905, %v1069
    %v1156 = vadd.f32 %v910, %v1071
    %v1157 = vadd.f32 %v915, %v1073
    %v1158 = vadd.f32 %v920, %v1075
    %v1159 = vadd.f32 %v925, %v1077
    %v1160 = vadd.f32 %v930, %v1079
    %v1161 = vadd.f32 %v935, %v1081
    %v1162 = vadd.f32 %v940, %v1083
    %v1163 = vadd.f32 %v945, %v1085
    %v1164 = vadd.f32 %v950, %v1087
    %v1165 = vadd.f32 %v955, %v1089
    %v1166 = vadd.f32 %v960, %v1091
    %v1167 = vadd.f32 %v965, %v1093
    %v1168 = vadd.f32 %v970, %v1095
    %v1169 = vadd.f32 %v975, %v1097
    %v1170 = vadd.f32 %v980, %v1099
    %v1171 = vadd.f32 %v985, %v1101
    %v1172 = vadd.f32 %v990, %v1103
    %v1173 = vadd.f32 %v995, %v1105
    %v1174 = vadd.f32 %v1000, %v1107
    %v1175 = vadd.f32 %v1005, %v1109
    %v1176 = vadd.f32 %v1010, %v1111
    %v1177 = vadd.f32 %v1015, %v1113
    %v1179 = vlaneseq
    %v1180 = vshrl.u32 %v1179, 7
    %v1181 = vsub.s32 0, %v1180
    %v1182 = vrot.slane %v143, %v1181
    %v1184 = vadd.f32 %v1146, %v1182
    %v1185 = vadd.f32 %v1147, %v1182
    %v1186 = vadd.f32 %v1148, %v1182
    %v1187 = vadd.f32 %v1149, %v1182
    %v1188 = vadd.f32 %v1150, %v1182
    %v1189 = vadd.f32 %v1151, %v1182
    %v1190 = vadd.f32 %v1152, %v1182
    %v1191 = vadd.f32 %v1153, %v1182
    %v1192 = vadd.f32 %v1154, %v1182
    %v1193 = vadd.f32 %v1155, %v1182
    %v1194 = vadd.f32 %v1156, %v1182
    %v1195 = vadd.f32 %v1157, %v1182
    %v1196 = vadd.f32 %v1158, %v1182
    %v1197 = vadd.f32 %v1159, %v1182
    %v1198 = vadd.f32 %v1160, %v1182
    %v1199 = vadd.f32 %v1161, %v1182
    %v1200 = vadd.f32 %v1162, %v1182
    %v1201 = vadd.f32 %v1163, %v1182
    %v1202 = vadd.f32 %v1164, %v1182
    %v1203 = vadd.f32 %v1165, %v1182
    %v1204 = vadd.f32 %v1166, %v1182
    %v1205 = vadd.f32 %v1167, %v1182
    %v1206 = vadd.f32 %v1168, %v1182
    %v1207 = vadd.f32 %v1169, %v1182
    %v1208 = vadd.f32 %v1170, %v1182
    %v1209 = vadd.f32 %v1171, %v1182
    %v1210 = vadd.f32 %v1172, %v1182
    %v1211 = vadd.f32 %v1173, %v1182
    %v1212 = vadd.f32 %v1174, %v1182
    %v1213 = vadd.f32 %v1175, %v1182
    %v1214 = vadd.f32 %v1176, %v1182
    %v1215 = vadd.f32 %v1177, %v1182
    %v1216 = vxor.u32 %v1184, 2147483648
    %v1217 = vxor.u32 %v1185, 2147483648
    %v1218 = vxor.u32 %v1186, 2147483648
    %v1219 = vxor.u32 %v1187, 2147483648
    %v1220 = vxor.u32 %v1188, 2147483648
    %v1221 = vxor.u32 %v1189, 2147483648
    %v1222 = vxor.u32 %v1190, 2147483648
    %v1223 = vxor.u32 %v1191, 2147483648
    %v1224 = vxor.u32 %v1192, 2147483648
    %v1225 = vxor.u32 %v1193, 2147483648
    %v1226 = vxor.u32 %v1194, 2147483648
    %v1227 = vxor.u32 %v1195, 2147483648
    %v1228 = vxor.u32 %v1196, 2147483648
    %v1229 = vxor.u32 %v1197, 2147483648
    %v1230 = vxor.u32 %v1198, 2147483648
    %v1231 = vxor.u32 %v1199, 2147483648
    %v1232 = vxor.u32 %v1200, 2147483648
    %v1233 = vxor.u32 %v1201, 2147483648
    %v1234 = vxor.u32 %v1202, 2147483648
    %v1235 = vxor.u32 %v1203, 2147483648
    %v1236 = vxor.u32 %v1204, 2147483648
    %v1237 = vxor.u32 %v1205, 2147483648
    %v1238 = vxor.u32 %v1206, 2147483648
    %v1239 = vxor.u32 %v1207, 2147483648
    %v1240 = vxor.u32 %v1208, 2147483648
    %v1241 = vxor.u32 %v1209, 2147483648
    %v1242 = vxor.u32 %v1210, 2147483648
    %v1243 = vxor.u32 %v1211, 2147483648
    %v1244 = vxor.u32 %v1212, 2147483648
    %v1245 = vxor.u32 %v1213, 2147483648
    %v1246 = vxor.u32 %v1214, 2147483648
    %v1247 = vxor.u32 %v1215, 2147483648
    %v1248 = vmul.f32 %v1216, 1.442695
    %v1249 = vpow.pop %v1248
    %v1250 = vmul.f32 %v1217, 1.442695
    %v1251 = vpow.pop %v1250
    %v1252 = vmul.f32 %v1218, 1.442695
    %v1253 = vpow.pop %v1252
    %v1254 = vmul.f32 %v1219, 1.442695
    %v1255 = vpow.pop %v1254
    %v1256 = vmul.f32 %v1220, 1.442695
    %v1257 = vpow.pop %v1256
    %v1258 = vmul.f32 %v1221, 1.442695
    %v1259 = vpow.pop %v1258
    %v1260 = vmul.f32 %v1222, 1.442695
    %v1261 = vpow.pop %v1260
    %v1262 = vmul.f32 %v1223, 1.442695
    %v1263 = vpow.pop %v1262
    %v1264 = vmul.f32 %v1224, 1.442695
    %v1265 = vpow.pop %v1264
    %v1266 = vmul.f32 %v1225, 1.442695
    %v1267 = vpow.pop %v1266
    %v1268 = vmul.f32 %v1226, 1.442695
    %v1269 = vpow.pop %v1268
    %v1270 = vmul.f32 %v1227, 1.442695
    %v1271 = vpow.pop %v1270
    %v1272 = vmul.f32 %v1228, 1.442695
    %v1273 = vpow.pop %v1272
    %v1274 = vmul.f32 %v1229, 1.442695
    %v1275 = vpow.pop %v1274
    %v1276 = vmul.f32 %v1230, 1.442695
    %v1277 = vpow.pop %v1276
    %v1278 = vmul.f32 %v1231, 1.442695
    %v1279 = vpow.pop %v1278
    %v1280 = vmul.f32 %v1232, 1.442695
    %v1281 = vpow.pop %v1280
    %v1282 = vmul.f32 %v1233, 1.442695
    %v1283 = vpow.pop %v1282
    %v1284 = vmul.f32 %v1234, 1.442695
    %v1285 = vpow.pop %v1284
    %v1286 = vmul.f32 %v1235, 1.442695
    %v1287 = vpow.pop %v1286
    %v1288 = vmul.f32 %v1236, 1.442695
    %v1289 = vpow.pop %v1288
    %v1290 = vmul.f32 %v1237, 1.442695
    %v1291 = vpow.pop %v1290
    %v1292 = vmul.f32 %v1238, 1.442695
    %v1293 = vpow.pop %v1292
    %v1294 = vmul.f32 %v1239, 1.442695
    %v1295 = vpow.pop %v1294
    %v1296 = vmul.f32 %v1240, 1.442695
    %v1297 = vpow.pop %v1296
    %v1298 = vmul.f32 %v1241, 1.442695
    %v1299 = vpow.pop %v1298
    %v1300 = vmul.f32 %v1242, 1.442695
    %v1301 = vpow.pop %v1300
    %v1302 = vmul.f32 %v1243, 1.442695
    %v1303 = vpow.pop %v1302
    %v1304 = vmul.f32 %v1244, 1.442695
    %v1305 = vpow.pop %v1304
    %v1306 = vmul.f32 %v1245, 1.442695
    %v1307 = vpow.pop %v1306
    %v1308 = vmul.f32 %v1246, 1.442695
    %v1309 = vpow.pop %v1308
    %v1310 = vmul.f32 %v1247, 1.442695
    %v1311 = vpow.pop %v1310
    %v1312 = vadd.f32 %v1249, 1.0
    %v1313 = vadd.f32 %v1251, 1.0
    %v1314 = vadd.f32 %v1253, 1.0
    %v1315 = vadd.f32 %v1255, 1.0
    %v1316 = vadd.f32 %v1257, 1.0
    %v1317 = vadd.f32 %v1259, 1.0
    %v1318 = vadd.f32 %v1261, 1.0
    %v1319 = vadd.f32 %v1263, 1.0
    %v1320 = vadd.f32 %v1265, 1.0
    %v1321 = vadd.f32 %v1267, 1.0
    %v1322 = vadd.f32 %v1269, 1.0
    %v1323 = vadd.f32 %v1271, 1.0
    %v1324 = vadd.f32 %v1273, 1.0
    %v1325 = vadd.f32 %v1275, 1.0
    %v1326 = vadd.f32 %v1277, 1.0
    %v1327 = vadd.f32 %v1279, 1.0
    %v1328 = vadd.f32 %v1281, 1.0
    %v1329 = vadd.f32 %v1283, 1.0
    %v1330 = vadd.f32 %v1285, 1.0
    %v1331 = vadd.f32 %v1287, 1.0
    %v1332 = vadd.f32 %v1289, 1.0
    %v1333 = vadd.f32 %v1291, 1.0
    %v1334 = vadd.f32 %v1293, 1.0
    %v1335 = vadd.f32 %v1295, 1.0
    %v1336 = vadd.f32 %v1297, 1.0
    %v1337 = vadd.f32 %v1299, 1.0
    %v1338 = vadd.f32 %v1301, 1.0
    %v1339 = vadd.f32 %v1303, 1.0
    %v1340 = vadd.f32 %v1305, 1.0
    %v1341 = vadd.f32 %v1307, 1.0
    %v1342 = vadd.f32 %v1309, 1.0
    %v1343 = vadd.f32 %v1311, 1.0
    %v1344 = vrcp.pop %v1312
    %v1345 = vmul.f32 1.0, %v1344
    %v1346 = vrcp.pop %v1313
    %v1347 = vmul.f32 1.0, %v1346
    %v1348 = vrcp.pop %v1314
    %v1349 = vmul.f32 1.0, %v1348
    %v1350 = vrcp.pop %v1315
    %v1351 = vmul.f32 1.0, %v1350
    %v1352 = vrcp.pop %v1316
    %v1353 = vmul.f32 1.0, %v1352
    %v1354 = vrcp.pop %v1317
    %v1355 = vmul.f32 1.0, %v1354
    %v1356 = vrcp.pop %v1318
    %v1357 = vmul.f32 1.0, %v1356
    %v1358 = vrcp.pop %v1319
    %v1359 = vmul.f32 1.0, %v1358
    %v1360 = vrcp.pop %v1320
    %v1361 = vmul.f32 1.0, %v1360
    %v1362 = vrcp.pop %v1321
    %v1363 = vmul.f32 1.0, %v1362
    %v1364 = vrcp.pop %v1322
    %v1365 = vmul.f32 1.0, %v1364
    %v1366 = vrcp.pop %v1323
    %v1367 = vmul.f32 1.0, %v1366
    %v1368 = vrcp.pop %v1324
    %v1369 = vmul.f32 1.0, %v1368
    %v1370 = vrcp.pop %v1325
    %v1371 = vmul.f32 1.0, %v1370
    %v1372 = vrcp.pop %v1326
    %v1373 = vmul.f32 1.0, %v1372
    %v1374 = vrcp.pop %v1327
    %v1375 = vmul.f32 1.0, %v1374
    %v1376 = vrcp.pop %v1328
    %v1377 = vmul.f32 1.0, %v1376
    %v1378 = vrcp.pop %v1329
    %v1379 = vmul.f32 1.0, %v1378
    %v1380 = vrcp.pop %v1330
    %v1381 = vmul.f32 1.0, %v1380
    %v1382 = vrcp.pop %v1331
    %v1383 = vmul.f32 1.0, %v1382
    %v1384 = vrcp.pop %v1332
    %v1385 = vmul.f32 1.0, %v1384
    %v1386 = vrcp.pop %v1333
    %v1387 = vmul.f32 1.0, %v1386
    %v1388 = vrcp.pop %v1334
    %v1389 = vmul.f32 1.0, %v1388
    %v1390 = vrcp.pop %v1335
    %v1391 = vmul.f32 1.0, %v1390
    %v1392 = vrcp.pop %v1336
    %v1393 = vmul.f32 1.0, %v1392
    %v1394 = vrcp.pop %v1337
    %v1395 = vmul.f32 1.0, %v1394
    %v1396 = vrcp.pop %v1338
    %v1397 = vmul.f32 1.0, %v1396
    %v1398 = vrcp.pop %v1339
    %v1399 = vmul.f32 1.0, %v1398
    %v1400 = vrcp.pop %v1340
    %v1401 = vmul.f32 1.0, %v1400
    %v1402 = vrcp.pop %v1341
    %v1403 = vmul.f32 1.0, %v1402
    %v1404 = vrcp.pop %v1342
    %v1405 = vmul.f32 1.0, %v1404
    %v1406 = vrcp.pop %v1343
    %v1407 = vmul.f32 1.0, %v1406
    %v1409 = vlaneseq
    %v1410 = vshrl.u32 %v1409, 7
    %v1411 = vsub.s32 0, %v1410
    %v1412 = vrot.slane %v144, %v1411
    %1413 = vrot.lane.b32.xlu0 %v1412, 64
    %v1414 = vpop.permute.xlu0 %1413
    %v1416 = vadd.f32 %v860, %v1414
    %v1417 = vadd.f32 %v865, %v1414
    %v1418 = vadd.f32 %v870, %v1414
    %v1419 = vadd.f32 %v875, %v1414
    %v1420 = vadd.f32 %v880, %v1414
    %v1421 = vadd.f32 %v885, %v1414
    %v1422 = vadd.f32 %v890, %v1414
    %v1423 = vadd.f32 %v895, %v1414
    %v1424 = vadd.f32 %v900, %v1414
    %v1425 = vadd.f32 %v905, %v1414
    %v1426 = vadd.f32 %v910, %v1414
    %v1427 = vadd.f32 %v915, %v1414
    %v1428 = vadd.f32 %v920, %v1414
    %v1429 = vadd.f32 %v925, %v1414
    %v1430 = vadd.f32 %v930, %v1414
    %v1431 = vadd.f32 %v935, %v1414
    %v1432 = vadd.f32 %v940, %v1414
    %v1433 = vadd.f32 %v945, %v1414
    %v1434 = vadd.f32 %v950, %v1414
    %v1435 = vadd.f32 %v955, %v1414
    %v1436 = vadd.f32 %v960, %v1414
    %v1437 = vadd.f32 %v965, %v1414
    %v1438 = vadd.f32 %v970, %v1414
    %v1439 = vadd.f32 %v975, %v1414
    %v1440 = vadd.f32 %v980, %v1414
    %v1441 = vadd.f32 %v985, %v1414
    %v1442 = vadd.f32 %v990, %v1414
    %v1443 = vadd.f32 %v995, %v1414
    %v1444 = vadd.f32 %v1000, %v1414
    %v1445 = vadd.f32 %v1005, %v1414
    %v1446 = vadd.f32 %v1010, %v1414
    %v1447 = vadd.f32 %v1015, %v1414
    %v1449 = vlaneseq
    %v1450 = vshrl.u32 %v1449, 7
    %v1451 = vsub.s32 0, %v1450
    %v1452 = vrot.slane %v145, %v1451
    %1453 = vrot.lane.b32.xlu0 %v1452, 96
    %v1454 = vpop.permute.xlu0 %1453
    %v1456 = vadd.f32 %v314, %v1454
    %v1457 = vadd.f32 %v319, %v1454
    %v1458 = vadd.f32 %v324, %v1454
    %v1459 = vadd.f32 %v329, %v1454
    %v1460 = vadd.f32 %v334, %v1454
    %v1461 = vadd.f32 %v339, %v1454
    %v1462 = vadd.f32 %v344, %v1454
    %v1463 = vadd.f32 %v349, %v1454
    %v1464 = vadd.f32 %v354, %v1454
    %v1465 = vadd.f32 %v359, %v1454
    %v1466 = vadd.f32 %v364, %v1454
    %v1467 = vadd.f32 %v369, %v1454
    %v1468 = vadd.f32 %v374, %v1454
    %v1469 = vadd.f32 %v379, %v1454
    %v1470 = vadd.f32 %v384, %v1454
    %v1471 = vadd.f32 %v389, %v1454
    %v1472 = vadd.f32 %v394, %v1454
    %v1473 = vadd.f32 %v399, %v1454
    %v1474 = vadd.f32 %v404, %v1454
    %v1475 = vadd.f32 %v409, %v1454
    %v1476 = vadd.f32 %v414, %v1454
    %v1477 = vadd.f32 %v419, %v1454
    %v1478 = vadd.f32 %v424, %v1454
    %v1479 = vadd.f32 %v429, %v1454
    %v1480 = vadd.f32 %v434, %v1454
    %v1481 = vadd.f32 %v439, %v1454
    %v1482 = vadd.f32 %v444, %v1454
    %v1483 = vadd.f32 %v449, %v1454
    %v1484 = vadd.f32 %v454, %v1454
    %v1485 = vadd.f32 %v459, %v1454
    %v1486 = vadd.f32 %v464, %v1454
    %v1487 = vadd.f32 %v469, %v1454
    %1520 = vrot.lane.b32.xlu0 %v1456, 32
    %v1521 = vpop.permute.xlu0 %1520
    %1522 = vrot.lane.b32.xlu0 %v1457, 32
    %v1523 = vpop.permute.xlu0 %1522
    %1524 = vrot.lane.b32.xlu0 %v1458, 32
    %v1525 = vpop.permute.xlu0 %1524
    %1526 = vrot.lane.b32.xlu0 %v1459, 32
    %v1527 = vpop.permute.xlu0 %1526
    %1528 = vrot.lane.b32.xlu0 %v1460, 32
    %v1529 = vpop.permute.xlu0 %1528
    %1530 = vrot.lane.b32.xlu0 %v1461, 32
    %v1531 = vpop.permute.xlu0 %1530
    %1532 = vrot.lane.b32.xlu0 %v1462, 32
    %v1533 = vpop.permute.xlu0 %1532
    %1534 = vrot.lane.b32.xlu0 %v1463, 32
    %v1535 = vpop.permute.xlu0 %1534
    %1536 = vrot.lane.b32.xlu0 %v1464, 32
    %v1537 = vpop.permute.xlu0 %1536
    %1538 = vrot.lane.b32.xlu0 %v1465, 32
    %v1539 = vpop.permute.xlu0 %1538
    %1540 = vrot.lane.b32.xlu0 %v1466, 32
    %v1541 = vpop.permute.xlu0 %1540
    %1542 = vrot.lane.b32.xlu0 %v1467, 32
    %v1543 = vpop.permute.xlu0 %1542
    %1544 = vrot.lane.b32.xlu0 %v1468, 32
    %v1545 = vpop.permute.xlu0 %1544
    %1546 = vrot.lane.b32.xlu0 %v1469, 32
    %v1547 = vpop.permute.xlu0 %1546
    %1548 = vrot.lane.b32.xlu0 %v1470, 32
    %v1549 = vpop.permute.xlu0 %1548
    %1550 = vrot.lane.b32.xlu0 %v1471, 32
    %v1551 = vpop.permute.xlu0 %1550
    %1552 = vrot.lane.b32.xlu0 %v1472, 32
    %v1553 = vpop.permute.xlu0 %1552
    %1554 = vrot.lane.b32.xlu0 %v1473, 32
    %v1555 = vpop.permute.xlu0 %1554
    %1556 = vrot.lane.b32.xlu0 %v1474, 32
    %v1557 = vpop.permute.xlu0 %1556
    %1558 = vrot.lane.b32.xlu0 %v1475, 32
    %v1559 = vpop.permute.xlu0 %1558
    %1560 = vrot.lane.b32.xlu0 %v1476, 32
    %v1561 = vpop.permute.xlu0 %1560
    %1562 = vrot.lane.b32.xlu0 %v1477, 32
    %v1563 = vpop.permute.xlu0 %1562
    %1564 = vrot.lane.b32.xlu0 %v1478, 32
    %v1565 = vpop.permute.xlu0 %1564
    %1566 = vrot.lane.b32.xlu0 %v1479, 32
    %v1567 = vpop.permute.xlu0 %1566
    %1568 = vrot.lane.b32.xlu0 %v1480, 32
    %v1569 = vpop.permute.xlu0 %1568
    %1570 = vrot.lane.b32.xlu0 %v1481, 32
    %v1571 = vpop.permute.xlu0 %1570
    %1572 = vrot.lane.b32.xlu0 %v1482, 32
    %v1573 = vpop.permute.xlu0 %1572
    %1574 = vrot.lane.b32.xlu0 %v1483, 32
    %v1575 = vpop.permute.xlu0 %1574
    %1576 = vrot.lane.b32.xlu0 %v1484, 32
    %v1577 = vpop.permute.xlu0 %1576
    %1578 = vrot.lane.b32.xlu0 %v1485, 32
    %v1579 = vpop.permute.xlu0 %1578
    %1580 = vrot.lane.b32.xlu0 %v1486, 32
    %v1581 = vpop.permute.xlu0 %1580
    %1582 = vrot.lane.b32.xlu0 %v1487, 32
    %v1583 = vpop.permute.xlu0 %1582
    %v1616 = vmul.f32 %v1345, %v1521
    %v1617 = vmul.f32 %v1347, %v1523
    %v1618 = vmul.f32 %v1349, %v1525
    %v1619 = vmul.f32 %v1351, %v1527
    %v1620 = vmul.f32 %v1353, %v1529
    %v1621 = vmul.f32 %v1355, %v1531
    %v1622 = vmul.f32 %v1357, %v1533
    %v1623 = vmul.f32 %v1359, %v1535
    %v1624 = vmul.f32 %v1361, %v1537
    %v1625 = vmul.f32 %v1363, %v1539
    %v1626 = vmul.f32 %v1365, %v1541
    %v1627 = vmul.f32 %v1367, %v1543
    %v1628 = vmul.f32 %v1369, %v1545
    %v1629 = vmul.f32 %v1371, %v1547
    %v1630 = vmul.f32 %v1373, %v1549
    %v1631 = vmul.f32 %v1375, %v1551
    %v1632 = vmul.f32 %v1377, %v1553
    %v1633 = vmul.f32 %v1379, %v1555
    %v1634 = vmul.f32 %v1381, %v1557
    %v1635 = vmul.f32 %v1383, %v1559
    %v1636 = vmul.f32 %v1385, %v1561
    %v1637 = vmul.f32 %v1387, %v1563
    %v1638 = vmul.f32 %v1389, %v1565
    %v1639 = vmul.f32 %v1391, %v1567
    %v1640 = vmul.f32 %v1393, %v1569
    %v1641 = vmul.f32 %v1395, %v1571
    %v1642 = vmul.f32 %v1397, %v1573
    %v1643 = vmul.f32 %v1399, %v1575
    %v1644 = vmul.f32 %v1401, %v1577
    %v1645 = vmul.f32 %v1403, %v1579
    %v1646 = vmul.f32 %v1405, %v1581
    %v1647 = vmul.f32 %v1407, %v1583
    %1680 = vrot.lane.b32.xlu0 %v1616, 64
    %v1681 = vpop.permute.xlu0 %1680
    %1682 = vrot.lane.b32.xlu0 %v1617, 64
    %v1683 = vpop.permute.xlu0 %1682
    %1684 = vrot.lane.b32.xlu0 %v1618, 64
    %v1685 = vpop.permute.xlu0 %1684
    %1686 = vrot.lane.b32.xlu0 %v1619, 64
    %v1687 = vpop.permute.xlu0 %1686
    %1688 = vrot.lane.b32.xlu0 %v1620, 64
    %v1689 = vpop.permute.xlu0 %1688
    %1690 = vrot.lane.b32.xlu0 %v1621, 64
    %v1691 = vpop.permute.xlu0 %1690
    %1692 = vrot.lane.b32.xlu0 %v1622, 64
    %v1693 = vpop.permute.xlu0 %1692
    %1694 = vrot.lane.b32.xlu0 %v1623, 64
    %v1695 = vpop.permute.xlu0 %1694
    %1696 = vrot.lane.b32.xlu0 %v1624, 64
    %v1697 = vpop.permute.xlu0 %1696
    %1698 = vrot.lane.b32.xlu0 %v1625, 64
    %v1699 = vpop.permute.xlu0 %1698
    %1700 = vrot.lane.b32.xlu0 %v1626, 64
    %v1701 = vpop.permute.xlu0 %1700
    %1702 = vrot.lane.b32.xlu0 %v1627, 64
    %v1703 = vpop.permute.xlu0 %1702
    %1704 = vrot.lane.b32.xlu0 %v1628, 64
    %v1705 = vpop.permute.xlu0 %1704
    %1706 = vrot.lane.b32.xlu0 %v1629, 64
    %v1707 = vpop.permute.xlu0 %1706
    %1708 = vrot.lane.b32.xlu0 %v1630, 64
    %v1709 = vpop.permute.xlu0 %1708
    %1710 = vrot.lane.b32.xlu0 %v1631, 64
    %v1711 = vpop.permute.xlu0 %1710
    %1712 = vrot.lane.b32.xlu0 %v1632, 64
    %v1713 = vpop.permute.xlu0 %1712
    %1714 = vrot.lane.b32.xlu0 %v1633, 64
    %v1715 = vpop.permute.xlu0 %1714
    %1716 = vrot.lane.b32.xlu0 %v1634, 64
    %v1717 = vpop.permute.xlu0 %1716
    %1718 = vrot.lane.b32.xlu0 %v1635, 64
    %v1719 = vpop.permute.xlu0 %1718
    %1720 = vrot.lane.b32.xlu0 %v1636, 64
    %v1721 = vpop.permute.xlu0 %1720
    %1722 = vrot.lane.b32.xlu0 %v1637, 64
    %v1723 = vpop.permute.xlu0 %1722
    %1724 = vrot.lane.b32.xlu0 %v1638, 64
    %v1725 = vpop.permute.xlu0 %1724
    %1726 = vrot.lane.b32.xlu0 %v1639, 64
    %v1727 = vpop.permute.xlu0 %1726
    %1728 = vrot.lane.b32.xlu0 %v1640, 64
    %v1729 = vpop.permute.xlu0 %1728
    %1730 = vrot.lane.b32.xlu0 %v1641, 64
    %v1731 = vpop.permute.xlu0 %1730
    %1732 = vrot.lane.b32.xlu0 %v1642, 64
    %v1733 = vpop.permute.xlu0 %1732
    %1734 = vrot.lane.b32.xlu0 %v1643, 64
    %v1735 = vpop.permute.xlu0 %1734
    %1736 = vrot.lane.b32.xlu0 %v1644, 64
    %v1737 = vpop.permute.xlu0 %1736
    %1738 = vrot.lane.b32.xlu0 %v1645, 64
    %v1739 = vpop.permute.xlu0 %1738
    %1740 = vrot.lane.b32.xlu0 %v1646, 64
    %v1741 = vpop.permute.xlu0 %1740
    %1742 = vrot.lane.b32.xlu0 %v1647, 64
    %v1743 = vpop.permute.xlu0 %1742
    %v1776 = vadd.f32 %v1416, %v1681
    %v1777 = vadd.f32 %v1417, %v1683
    %v1778 = vadd.f32 %v1418, %v1685
    %v1779 = vadd.f32 %v1419, %v1687
    %v1780 = vadd.f32 %v1420, %v1689
    %v1781 = vadd.f32 %v1421, %v1691
    %v1782 = vadd.f32 %v1422, %v1693
    %v1783 = vadd.f32 %v1423, %v1695
    %v1784 = vadd.f32 %v1424, %v1697
    %v1785 = vadd.f32 %v1425, %v1699
    %v1786 = vadd.f32 %v1426, %v1701
    %v1787 = vadd.f32 %v1427, %v1703
    %v1788 = vadd.f32 %v1428, %v1705
    %v1789 = vadd.f32 %v1429, %v1707
    %v1790 = vadd.f32 %v1430, %v1709
    %v1791 = vadd.f32 %v1431, %v1711
    %v1792 = vadd.f32 %v1432, %v1713
    %v1793 = vadd.f32 %v1433, %v1715
    %v1794 = vadd.f32 %v1434, %v1717
    %v1795 = vadd.f32 %v1435, %v1719
    %v1796 = vadd.f32 %v1436, %v1721
    %v1797 = vadd.f32 %v1437, %v1723
    %v1798 = vadd.f32 %v1438, %v1725
    %v1799 = vadd.f32 %v1439, %v1727
    %v1800 = vadd.f32 %v1440, %v1729
    %v1801 = vadd.f32 %v1441, %v1731
    %v1802 = vadd.f32 %v1442, %v1733
    %v1803 = vadd.f32 %v1443, %v1735
    %v1804 = vadd.f32 %v1444, %v1737
    %v1805 = vadd.f32 %v1445, %v1739
    %v1806 = vadd.f32 %v1446, %v1741
    %v1807 = vadd.f32 %v1447, %v1743
    %v1808 = vtanh.pop %v1776
    %v1809 = vtanh.pop %v1777
    %v1810 = vtanh.pop %v1778
    %v1811 = vtanh.pop %v1779
    %v1812 = vtanh.pop %v1780
    %v1813 = vtanh.pop %v1781
    %v1814 = vtanh.pop %v1782
    %v1815 = vtanh.pop %v1783
    %v1816 = vtanh.pop %v1784
    %v1817 = vtanh.pop %v1785
    %v1818 = vtanh.pop %v1786
    %v1819 = vtanh.pop %v1787
    %v1820 = vtanh.pop %v1788
    %v1821 = vtanh.pop %v1789
    %v1822 = vtanh.pop %v1790
    %v1823 = vtanh.pop %v1791
    %v1824 = vtanh.pop %v1792
    %v1825 = vtanh.pop %v1793
    %v1826 = vtanh.pop %v1794
    %v1827 = vtanh.pop %v1795
    %v1828 = vtanh.pop %v1796
    %v1829 = vtanh.pop %v1797
    %v1830 = vtanh.pop %v1798
    %v1831 = vtanh.pop %v1799
    %v1832 = vtanh.pop %v1800
    %v1833 = vtanh.pop %v1801
    %v1834 = vtanh.pop %v1802
    %v1835 = vtanh.pop %v1803
    %v1836 = vtanh.pop %v1804
    %v1837 = vtanh.pop %v1805
    %v1838 = vtanh.pop %v1806
    %v1839 = vtanh.pop %v1807
    %v1840 = vsub.f32 1.0, %v1345
    %v1841 = vsub.f32 1.0, %v1347
    %v1842 = vsub.f32 1.0, %v1349
    %v1843 = vsub.f32 1.0, %v1351
    %v1844 = vsub.f32 1.0, %v1353
    %v1845 = vsub.f32 1.0, %v1355
    %v1846 = vsub.f32 1.0, %v1357
    %v1847 = vsub.f32 1.0, %v1359
    %v1848 = vsub.f32 1.0, %v1361
    %v1849 = vsub.f32 1.0, %v1363
    %v1850 = vsub.f32 1.0, %v1365
    %v1851 = vsub.f32 1.0, %v1367
    %v1852 = vsub.f32 1.0, %v1369
    %v1853 = vsub.f32 1.0, %v1371
    %v1854 = vsub.f32 1.0, %v1373
    %v1855 = vsub.f32 1.0, %v1375
    %v1856 = vsub.f32 1.0, %v1377
    %v1857 = vsub.f32 1.0, %v1379
    %v1858 = vsub.f32 1.0, %v1381
    %v1859 = vsub.f32 1.0, %v1383
    %v1860 = vsub.f32 1.0, %v1385
    %v1861 = vsub.f32 1.0, %v1387
    %v1862 = vsub.f32 1.0, %v1389
    %v1863 = vsub.f32 1.0, %v1391
    %v1864 = vsub.f32 1.0, %v1393
    %v1865 = vsub.f32 1.0, %v1395
    %v1866 = vsub.f32 1.0, %v1397
    %v1867 = vsub.f32 1.0, %v1399
    %v1868 = vsub.f32 1.0, %v1401
    %v1869 = vsub.f32 1.0, %v1403
    %v1870 = vsub.f32 1.0, %v1405
    %v1871 = vsub.f32 1.0, %v1407
    %1904 = vrot.lane.b32.xlu0 %v1808, 96
    %v1905 = vpop.permute.xlu0 %1904
    %1906 = vrot.lane.b32.xlu0 %v1809, 96
    %v1907 = vpop.permute.xlu0 %1906
    %1908 = vrot.lane.b32.xlu0 %v1810, 96
    %v1909 = vpop.permute.xlu0 %1908
    %1910 = vrot.lane.b32.xlu0 %v1811, 96
    %v1911 = vpop.permute.xlu0 %1910
    %1912 = vrot.lane.b32.xlu0 %v1812, 96
    %v1913 = vpop.permute.xlu0 %1912
    %1914 = vrot.lane.b32.xlu0 %v1813, 96
    %v1915 = vpop.permute.xlu0 %1914
    %1916 = vrot.lane.b32.xlu0 %v1814, 96
    %v1917 = vpop.permute.xlu0 %1916
    %1918 = vrot.lane.b32.xlu0 %v1815, 96
    %v1919 = vpop.permute.xlu0 %1918
    %1920 = vrot.lane.b32.xlu0 %v1816, 96
    %v1921 = vpop.permute.xlu0 %1920
    %1922 = vrot.lane.b32.xlu0 %v1817, 96
    %v1923 = vpop.permute.xlu0 %1922
    %1924 = vrot.lane.b32.xlu0 %v1818, 96
    %v1925 = vpop.permute.xlu0 %1924
    %1926 = vrot.lane.b32.xlu0 %v1819, 96
    %v1927 = vpop.permute.xlu0 %1926
    %1928 = vrot.lane.b32.xlu0 %v1820, 96
    %v1929 = vpop.permute.xlu0 %1928
    %1930 = vrot.lane.b32.xlu0 %v1821, 96
    %v1931 = vpop.permute.xlu0 %1930
    %1932 = vrot.lane.b32.xlu0 %v1822, 96
    %v1933 = vpop.permute.xlu0 %1932
    %1934 = vrot.lane.b32.xlu0 %v1823, 96
    %v1935 = vpop.permute.xlu0 %1934
    %1936 = vrot.lane.b32.xlu0 %v1824, 96
    %v1937 = vpop.permute.xlu0 %1936
    %1938 = vrot.lane.b32.xlu0 %v1825, 96
    %v1939 = vpop.permute.xlu0 %1938
    %1940 = vrot.lane.b32.xlu0 %v1826, 96
    %v1941 = vpop.permute.xlu0 %1940
    %1942 = vrot.lane.b32.xlu0 %v1827, 96
    %v1943 = vpop.permute.xlu0 %1942
    %1944 = vrot.lane.b32.xlu0 %v1828, 96
    %v1945 = vpop.permute.xlu0 %1944
    %1946 = vrot.lane.b32.xlu0 %v1829, 96
    %v1947 = vpop.permute.xlu0 %1946
    %1948 = vrot.lane.b32.xlu0 %v1830, 96
    %v1949 = vpop.permute.xlu0 %1948
    %1950 = vrot.lane.b32.xlu0 %v1831, 96
    %v1951 = vpop.permute.xlu0 %1950
    %1952 = vrot.lane.b32.xlu0 %v1832, 96
    %v1953 = vpop.permute.xlu0 %1952
    %1954 = vrot.lane.b32.xlu0 %v1833, 96
    %v1955 = vpop.permute.xlu0 %1954
    %1956 = vrot.lane.b32.xlu0 %v1834, 96
    %v1957 = vpop.permute.xlu0 %1956
    %1958 = vrot.lane.b32.xlu0 %v1835, 96
    %v1959 = vpop.permute.xlu0 %1958
    %1960 = vrot.lane.b32.xlu0 %v1836, 96
    %v1961 = vpop.permute.xlu0 %1960
    %1962 = vrot.lane.b32.xlu0 %v1837, 96
    %v1963 = vpop.permute.xlu0 %1962
    %1964 = vrot.lane.b32.xlu0 %v1838, 96
    %v1965 = vpop.permute.xlu0 %1964
    %1966 = vrot.lane.b32.xlu0 %v1839, 96
    %v1967 = vpop.permute.xlu0 %1966
    %v2000 = vmul.f32 %v1840, %v1905
    %v2001 = vmul.f32 %v1841, %v1907
    %v2002 = vmul.f32 %v1842, %v1909
    %v2003 = vmul.f32 %v1843, %v1911
    %v2004 = vmul.f32 %v1844, %v1913
    %v2005 = vmul.f32 %v1845, %v1915
    %v2006 = vmul.f32 %v1846, %v1917
    %v2007 = vmul.f32 %v1847, %v1919
    %v2008 = vmul.f32 %v1848, %v1921
    %v2009 = vmul.f32 %v1849, %v1923
    %v2010 = vmul.f32 %v1850, %v1925
    %v2011 = vmul.f32 %v1851, %v1927
    %v2012 = vmul.f32 %v1852, %v1929
    %v2013 = vmul.f32 %v1853, %v1931
    %v2014 = vmul.f32 %v1854, %v1933
    %v2015 = vmul.f32 %v1855, %v1935
    %v2016 = vmul.f32 %v1856, %v1937
    %v2017 = vmul.f32 %v1857, %v1939
    %v2018 = vmul.f32 %v1858, %v1941
    %v2019 = vmul.f32 %v1859, %v1943
    %v2020 = vmul.f32 %v1860, %v1945
    %v2021 = vmul.f32 %v1861, %v1947
    %v2022 = vmul.f32 %v1862, %v1949
    %v2023 = vmul.f32 %v1863, %v1951
    %v2024 = vmul.f32 %v1864, %v1953
    %v2025 = vmul.f32 %v1865, %v1955
    %v2026 = vmul.f32 %v1866, %v1957
    %v2027 = vmul.f32 %v1867, %v1959
    %v2028 = vmul.f32 %v1868, %v1961
    %v2029 = vmul.f32 %v1869, %v1963
    %v2030 = vmul.f32 %v1870, %v1965
    %v2031 = vmul.f32 %v1871, %v1967
    %2032 = vrot.lane.b32.xlu0 %v107, 32
    %v2033 = vpop.permute.xlu0 %2032
    %2034 = vrot.lane.b32.xlu0 %v108, 32
    %v2035 = vpop.permute.xlu0 %2034
    %2036 = vrot.lane.b32.xlu0 %v109, 32
    %v2037 = vpop.permute.xlu0 %2036
    %2038 = vrot.lane.b32.xlu0 %v110, 32
    %v2039 = vpop.permute.xlu0 %2038
    %2040 = vrot.lane.b32.xlu0 %v111, 32
    %v2041 = vpop.permute.xlu0 %2040
    %2042 = vrot.lane.b32.xlu0 %v112, 32
    %v2043 = vpop.permute.xlu0 %2042
    %2044 = vrot.lane.b32.xlu0 %v113, 32
    %v2045 = vpop.permute.xlu0 %2044
    %2046 = vrot.lane.b32.xlu0 %v114, 32
    %v2047 = vpop.permute.xlu0 %2046
    %2048 = vrot.lane.b32.xlu0 %v115, 32
    %v2049 = vpop.permute.xlu0 %2048
    %2050 = vrot.lane.b32.xlu0 %v116, 32
    %v2051 = vpop.permute.xlu0 %2050
    %2052 = vrot.lane.b32.xlu0 %v117, 32
    %v2053 = vpop.permute.xlu0 %2052
    %2054 = vrot.lane.b32.xlu0 %v118, 32
    %v2055 = vpop.permute.xlu0 %2054
    %2056 = vrot.lane.b32.xlu0 %v119, 32
    %v2057 = vpop.permute.xlu0 %2056
    %2058 = vrot.lane.b32.xlu0 %v120, 32
    %v2059 = vpop.permute.xlu0 %2058
    %2060 = vrot.lane.b32.xlu0 %v121, 32
    %v2061 = vpop.permute.xlu0 %2060
    %2062 = vrot.lane.b32.xlu0 %v122, 32
    %v2063 = vpop.permute.xlu0 %2062
    %2064 = vrot.lane.b32.xlu0 %v123, 32
    %v2065 = vpop.permute.xlu0 %2064
    %2066 = vrot.lane.b32.xlu0 %v124, 32
    %v2067 = vpop.permute.xlu0 %2066
    %2068 = vrot.lane.b32.xlu0 %v125, 32
    %v2069 = vpop.permute.xlu0 %2068
    %2070 = vrot.lane.b32.xlu0 %v126, 32
    %v2071 = vpop.permute.xlu0 %2070
    %2072 = vrot.lane.b32.xlu0 %v127, 32
    %v2073 = vpop.permute.xlu0 %2072
    %2074 = vrot.lane.b32.xlu0 %v128, 32
    %v2075 = vpop.permute.xlu0 %2074
    %2076 = vrot.lane.b32.xlu0 %v129, 32
    %v2077 = vpop.permute.xlu0 %2076
    %2078 = vrot.lane.b32.xlu0 %v130, 32
    %v2079 = vpop.permute.xlu0 %2078
    %2080 = vrot.lane.b32.xlu0 %v131, 32
    %v2081 = vpop.permute.xlu0 %2080
    %2082 = vrot.lane.b32.xlu0 %v132, 32
    %v2083 = vpop.permute.xlu0 %2082
    %2084 = vrot.lane.b32.xlu0 %v133, 32
    %v2085 = vpop.permute.xlu0 %2084
    %2086 = vrot.lane.b32.xlu0 %v134, 32
    %v2087 = vpop.permute.xlu0 %2086
    %2088 = vrot.lane.b32.xlu0 %v135, 32
    %v2089 = vpop.permute.xlu0 %2088
    %2090 = vrot.lane.b32.xlu0 %v136, 32
    %v2091 = vpop.permute.xlu0 %2090
    %2092 = vrot.lane.b32.xlu0 %v137, 32
    %v2093 = vpop.permute.xlu0 %2092
    %2094 = vrot.lane.b32.xlu0 %v138, 32
    %v2095 = vpop.permute.xlu0 %2094
    %v2128 = vmul.f32 %v1345, %v2033
    %v2129 = vmul.f32 %v1347, %v2035
    %v2130 = vmul.f32 %v1349, %v2037
    %v2131 = vmul.f32 %v1351, %v2039
    %v2132 = vmul.f32 %v1353, %v2041
    %v2133 = vmul.f32 %v1355, %v2043
    %v2134 = vmul.f32 %v1357, %v2045
    %v2135 = vmul.f32 %v1359, %v2047
    %v2136 = vmul.f32 %v1361, %v2049
    %v2137 = vmul.f32 %v1363, %v2051
    %v2138 = vmul.f32 %v1365, %v2053
    %v2139 = vmul.f32 %v1367, %v2055
    %v2140 = vmul.f32 %v1369, %v2057
    %v2141 = vmul.f32 %v1371, %v2059
    %v2142 = vmul.f32 %v1373, %v2061
    %v2143 = vmul.f32 %v1375, %v2063
    %v2144 = vmul.f32 %v1377, %v2065
    %v2145 = vmul.f32 %v1379, %v2067
    %v2146 = vmul.f32 %v1381, %v2069
    %v2147 = vmul.f32 %v1383, %v2071
    %v2148 = vmul.f32 %v1385, %v2073
    %v2149 = vmul.f32 %v1387, %v2075
    %v2150 = vmul.f32 %v1389, %v2077
    %v2151 = vmul.f32 %v1391, %v2079
    %v2152 = vmul.f32 %v1393, %v2081
    %v2153 = vmul.f32 %v1395, %v2083
    %v2154 = vmul.f32 %v1397, %v2085
    %v2155 = vmul.f32 %v1399, %v2087
    %v2156 = vmul.f32 %v1401, %v2089
    %v2157 = vmul.f32 %v1403, %v2091
    %v2158 = vmul.f32 %v1405, %v2093
    %v2159 = vmul.f32 %v1407, %v2095
    %v2160 = vadd.f32 %v2000, %v2128
    %v2161 = vadd.f32 %v2001, %v2129
    %v2162 = vadd.f32 %v2002, %v2130
    %v2163 = vadd.f32 %v2003, %v2131
    %v2164 = vadd.f32 %v2004, %v2132
    %v2165 = vadd.f32 %v2005, %v2133
    %v2166 = vadd.f32 %v2006, %v2134
    %v2167 = vadd.f32 %v2007, %v2135
    %v2168 = vadd.f32 %v2008, %v2136
    %v2169 = vadd.f32 %v2009, %v2137
    %v2170 = vadd.f32 %v2010, %v2138
    %v2171 = vadd.f32 %v2011, %v2139
    %v2172 = vadd.f32 %v2012, %v2140
    %v2173 = vadd.f32 %v2013, %v2141
    %v2174 = vadd.f32 %v2014, %v2142
    %v2175 = vadd.f32 %v2015, %v2143
    %v2176 = vadd.f32 %v2016, %v2144
    %v2177 = vadd.f32 %v2017, %v2145
    %v2178 = vadd.f32 %v2018, %v2146
    %v2179 = vadd.f32 %v2019, %v2147
    %v2180 = vadd.f32 %v2020, %v2148
    %v2181 = vadd.f32 %v2021, %v2149
    %v2182 = vadd.f32 %v2022, %v2150
    %v2183 = vadd.f32 %v2023, %v2151
    %v2184 = vadd.f32 %v2024, %v2152
    %v2185 = vadd.f32 %v2025, %v2153
    %v2186 = vadd.f32 %v2026, %v2154
    %v2187 = vadd.f32 %v2027, %v2155
    %v2188 = vadd.f32 %v2028, %v2156
    %v2189 = vadd.f32 %v2029, %v2157
    %v2190 = vadd.f32 %v2030, %v2158
    %v2191 = vadd.f32 %v2031, %v2159
    %s2192 = scalar_lea.vmem %s3, 32
    %v2193 = vld [vmem:[%s2192] sm:$0xff]
    %v2194 = vld [vmem:[%s2192 + $0x8] sm:$0xff]
    %v2195 = vld [vmem:[%s2192 + $0x10] sm:$0xff]
    %v2196 = vld [vmem:[%s2192 + $0x18] sm:$0xff]
    %2229 = vrot.lane.b32.xlu0 %v2160, 96
    %v2230 = vpop.permute.xlu0 %2229
    %2231 = vrot.lane.b32.xlu0 %v2161, 96
    %v2232 = vpop.permute.xlu0 %2231
    %2233 = vrot.lane.b32.xlu0 %v2162, 96
    %v2234 = vpop.permute.xlu0 %2233
    %2235 = vrot.lane.b32.xlu0 %v2163, 96
    %v2236 = vpop.permute.xlu0 %2235
    %2237 = vrot.lane.b32.xlu0 %v2164, 96
    %v2238 = vpop.permute.xlu0 %2237
    %2239 = vrot.lane.b32.xlu0 %v2165, 96
    %v2240 = vpop.permute.xlu0 %2239
    %2241 = vrot.lane.b32.xlu0 %v2166, 96
    %v2242 = vpop.permute.xlu0 %2241
    %2243 = vrot.lane.b32.xlu0 %v2167, 96
    %v2244 = vpop.permute.xlu0 %2243
    %2245 = vrot.lane.b32.xlu0 %v2168, 96
    %v2246 = vpop.permute.xlu0 %2245
    %2247 = vrot.lane.b32.xlu0 %v2169, 96
    %v2248 = vpop.permute.xlu0 %2247
    %2249 = vrot.lane.b32.xlu0 %v2170, 96
    %v2250 = vpop.permute.xlu0 %2249
    %2251 = vrot.lane.b32.xlu0 %v2171, 96
    %v2252 = vpop.permute.xlu0 %2251
    %2253 = vrot.lane.b32.xlu0 %v2172, 96
    %v2254 = vpop.permute.xlu0 %2253
    %2255 = vrot.lane.b32.xlu0 %v2173, 96
    %v2256 = vpop.permute.xlu0 %2255
    %2257 = vrot.lane.b32.xlu0 %v2174, 96
    %v2258 = vpop.permute.xlu0 %2257
    %2259 = vrot.lane.b32.xlu0 %v2175, 96
    %v2260 = vpop.permute.xlu0 %2259
    %2261 = vrot.lane.b32.xlu0 %v2176, 96
    %v2262 = vpop.permute.xlu0 %2261
    %2263 = vrot.lane.b32.xlu0 %v2177, 96
    %v2264 = vpop.permute.xlu0 %2263
    %2265 = vrot.lane.b32.xlu0 %v2178, 96
    %v2266 = vpop.permute.xlu0 %2265
    %2267 = vrot.lane.b32.xlu0 %v2179, 96
    %v2268 = vpop.permute.xlu0 %2267
    %2269 = vrot.lane.b32.xlu0 %v2180, 96
    %v2270 = vpop.permute.xlu0 %2269
    %2271 = vrot.lane.b32.xlu0 %v2181, 96
    %v2272 = vpop.permute.xlu0 %2271
    %2273 = vrot.lane.b32.xlu0 %v2182, 96
    %v2274 = vpop.permute.xlu0 %2273
    %2275 = vrot.lane.b32.xlu0 %v2183, 96
    %v2276 = vpop.permute.xlu0 %2275
    %2277 = vrot.lane.b32.xlu0 %v2184, 96
    %v2278 = vpop.permute.xlu0 %2277
    %2279 = vrot.lane.b32.xlu0 %v2185, 96
    %v2280 = vpop.permute.xlu0 %2279
    %2281 = vrot.lane.b32.xlu0 %v2186, 96
    %v2282 = vpop.permute.xlu0 %2281
    %2283 = vrot.lane.b32.xlu0 %v2187, 96
    %v2284 = vpop.permute.xlu0 %2283
    %2285 = vrot.lane.b32.xlu0 %v2188, 96
    %v2286 = vpop.permute.xlu0 %2285
    %2287 = vrot.lane.b32.xlu0 %v2189, 96
    %v2288 = vpop.permute.xlu0 %2287
    %2289 = vrot.lane.b32.xlu0 %v2190, 96
    %v2290 = vpop.permute.xlu0 %2289
    %2291 = vrot.lane.b32.xlu0 %v2191, 96
    %v2292 = vpop.permute.xlu0 %2291
    %v2293 = vsel %vm150, %v2230, 0
    %v2295 = vsel %vm150, %v2232, 0
    %v2297 = vsel %vm150, %v2234, 0
    %v2299 = vsel %vm150, %v2236, 0
    %v2301 = vsel %vm150, %v2238, 0
    %v2303 = vsel %vm150, %v2240, 0
    %v2305 = vsel %vm150, %v2242, 0
    %v2307 = vsel %vm150, %v2244, 0
    %v2309 = vsel %vm150, %v2246, 0
    %v2311 = vsel %vm150, %v2248, 0
    %v2313 = vsel %vm150, %v2250, 0
    %v2315 = vsel %vm150, %v2252, 0
    %v2317 = vsel %vm150, %v2254, 0
    %v2319 = vsel %vm150, %v2256, 0
    %v2321 = vsel %vm150, %v2258, 0
    %v2323 = vsel %vm150, %v2260, 0
    %v2325 = vsel %vm150, %v2262, 0
    %v2327 = vsel %vm150, %v2264, 0
    %v2329 = vsel %vm150, %v2266, 0
    %v2331 = vsel %vm150, %v2268, 0
    %v2333 = vsel %vm150, %v2270, 0
    %v2335 = vsel %vm150, %v2272, 0
    %v2337 = vsel %vm150, %v2274, 0
    %v2339 = vsel %vm150, %v2276, 0
    %v2341 = vsel %vm150, %v2278, 0
    %v2343 = vsel %vm150, %v2280, 0
    %v2345 = vsel %vm150, %v2282, 0
    %v2347 = vsel %vm150, %v2284, 0
    %v2349 = vsel %vm150, %v2286, 0
    %v2351 = vsel %vm150, %v2288, 0
    %v2353 = vsel %vm150, %v2290, 0
    %v2355 = vsel %vm150, %v2292, 0
    %2357 = vmatprep.subr.mxu0 0.0
    %2358 = vmatpush1.msra.mxu0 %v2193
    %2359 = vmatprep.subr.mxu0 0.0
    %2360 = vmatpush1.msra.mxu0 %v2194
    %2361 = vmatprep.subr.mxu0 0.0
    %2362 = vmatpush1.msra.mxu0 %v2195
    %2363 = vmatprep.subr.mxu0 0.0
    %2364 = vmatpush1.msra.mxu0 %v2196
    %2365 = vmatprep.subr.mxu0 0.0
    %2366 = vmatpush1.msra.mxu0 0.0
    %2367 = vmatprep.subr.mxu0 0.0
    %2368 = vmatpush1.msra.mxu0 0.0
    %2369 = vmatprep.subr.mxu0 0.0
    %2370 = vmatpush1.msra.mxu0 0.0
    %2371 = vmatprep.subr.mxu0 0.0
    %2372 = vmatpush1.msra.mxu0 0.0
    %2373 = vmatprep.subr.mxu0 0.0
    %2374 = vmatpush1.msra.mxu0 0.0
    %2375 = vmatprep.subr.mxu0 0.0
    %2376 = vmatpush1.msra.mxu0 0.0
    %2377 = vmatprep.subr.mxu0 0.0
    %2378 = vmatpush1.msra.mxu0 0.0
    %2379 = vmatprep.subr.mxu0 0.0
    %2380 = vmatpush1.msra.mxu0 0.0
    %2381 = vmatprep.subr.mxu0 0.0
    %2382 = vmatpush1.msra.mxu0 0.0
    %2383 = vmatprep.subr.mxu0 0.0
    %2384 = vmatpush1.msra.mxu0 0.0
    %2385 = vmatprep.subr.mxu0 0.0
    %2386 = vmatpush1.msra.mxu0 0.0
    %2387 = vmatprep.subr.mxu0 0.0
    %2388 = vmatpush1.msra.mxu0 0.0
    %2389 = vmatprep.subr.mxu0 0.0
    %2390 = vmatpush1.msra.mxu0 0.0
    %2391 = vmatprep.subr.mxu0 0.0
    %2392 = vmatpush1.msra.mxu0 0.0
    %2393 = vmatprep.subr.mxu0 0.0
    %2394 = vmatpush1.msra.mxu0 0.0
    %2395 = vmatprep.subr.mxu0 0.0
    %2396 = vmatpush1.msra.mxu0 0.0
    %2397 = vmatprep.subr.mxu0 0.0
    %2398 = vmatpush1.msra.mxu0 0.0
    %2399 = vmatprep.subr.mxu0 0.0
    %2400 = vmatpush1.msra.mxu0 0.0
    %2401 = vmatprep.subr.mxu0 0.0
    %2402 = vmatpush1.msra.mxu0 0.0
    %2403 = vmatprep.subr.mxu0 0.0
    %2404 = vmatpush1.msra.mxu0 0.0
    %2405 = vmatprep.subr.mxu0 0.0
    %2406 = vmatpush1.msra.mxu0 0.0
    %2407 = vmatprep.subr.mxu0 0.0
    %2408 = vmatpush1.msra.mxu0 0.0
    %2409 = vmatprep.subr.mxu0 0.0
    %2410 = vmatpush1.msra.mxu0 0.0
    %2411 = vmatprep.subr.mxu0 0.0
    %2412 = vmatpush1.msra.mxu0 0.0
    %2413 = vmatprep.subr.mxu0 0.0
    %2414 = vmatpush1.msra.mxu0 0.0
    %2415 = vmatprep.subr.mxu0 0.0
    %2416 = vmatpush1.msra.mxu0 0.0
    %2417 = vmatprep.subr.mxu0 0.0
    %2418 = vmatpush1.msra.mxu0 0.0
    %2419 = vmatprep.subr.mxu0 0.0
    %2420 = vmatpush1.msra.mxu0 0.0
    %2421 = vmatprep.mubr.f32.mxu0 0.0
    %2422 = vmatmul.mubr.f32.gmra.mrb[0].mxu0 %v2293
    %v2423 = vpop.f32.mrb[0].mxu0
    %v2424 = vadd.f32 0.0, %v2423
    %v2425 = vpop.f32.mrb[0].mxu0
    %2426 = vmatprep.mubr.f32.mxu0 0.0
    %2427 = vmatmul.mubr.f32.gmra.mrb[0].mxu0 %v2295
    %v2428 = vpop.f32.mrb[0].mxu0
    %v2429 = vadd.f32 0.0, %v2428
    %v2430 = vpop.f32.mrb[0].mxu0
    %2431 = vmatprep.mubr.f32.mxu0 0.0
    %2432 = vmatmul.mubr.f32.gmra.mrb[0].mxu0 %v2297
    %v2433 = vpop.f32.mrb[0].mxu0
    %v2434 = vadd.f32 0.0, %v2433
    %v2435 = vpop.f32.mrb[0].mxu0
    %2436 = vmatprep.mubr.f32.mxu0 0.0
    %2437 = vmatmul.mubr.f32.gmra.mrb[0].mxu0 %v2299
    %v2438 = vpop.f32.mrb[0].mxu0
    %v2439 = vadd.f32 0.0, %v2438
    %v2440 = vpop.f32.mrb[0].mxu0
    %2441 = vmatprep.mubr.f32.mxu0 0.0
    %2442 = vmatmul.mubr.f32.gmra.mrb[0].mxu0 %v2301
    %v2443 = vpop.f32.mrb[0].mxu0
    %v2444 = vadd.f32 0.0, %v2443
    %v2445 = vpop.f32.mrb[0].mxu0
    %2446 = vmatprep.mubr.f32.mxu0 0.0
    %2447 = vmatmul.mubr.f32.gmra.mrb[0].mxu0 %v2303
    %v2448 = vpop.f32.mrb[0].mxu0
    %v2449 = vadd.f32 0.0, %v2448
    %v2450 = vpop.f32.mrb[0].mxu0
    %2451 = vmatprep.mubr.f32.mxu0 0.0
    %2452 = vmatmul.mubr.f32.gmra.mrb[0].mxu0 %v2305
    %v2453 = vpop.f32.mrb[0].mxu0
    %v2454 = vadd.f32 0.0, %v2453
    %v2455 = vpop.f32.mrb[0].mxu0
    %2456 = vmatprep.mubr.f32.mxu0 0.0
    %2457 = vmatmul.mubr.f32.gmra.mrb[0].mxu0 %v2307
    %v2458 = vpop.f32.mrb[0].mxu0
    %v2459 = vadd.f32 0.0, %v2458
    %v2460 = vpop.f32.mrb[0].mxu0
    %2461 = vmatprep.mubr.f32.mxu0 0.0
    %2462 = vmatmul.mubr.f32.gmra.mrb[0].mxu0 %v2309
    %v2463 = vpop.f32.mrb[0].mxu0
    %v2464 = vadd.f32 0.0, %v2463
    %v2465 = vpop.f32.mrb[0].mxu0
    %2466 = vmatprep.mubr.f32.mxu0 0.0
    %2467 = vmatmul.mubr.f32.gmra.mrb[0].mxu0 %v2311
    %v2468 = vpop.f32.mrb[0].mxu0
    %v2469 = vadd.f32 0.0, %v2468
    %v2470 = vpop.f32.mrb[0].mxu0
    %2471 = vmatprep.mubr.f32.mxu0 0.0
    %2472 = vmatmul.mubr.f32.gmra.mrb[0].mxu0 %v2313
    %v2473 = vpop.f32.mrb[0].mxu0
    %v2474 = vadd.f32 0.0, %v2473
    %v2475 = vpop.f32.mrb[0].mxu0
    %2476 = vmatprep.mubr.f32.mxu0 0.0
    %2477 = vmatmul.mubr.f32.gmra.mrb[0].mxu0 %v2315
    %v2478 = vpop.f32.mrb[0].mxu0
    %v2479 = vadd.f32 0.0, %v2478
    %v2480 = vpop.f32.mrb[0].mxu0
    %2481 = vmatprep.mubr.f32.mxu0 0.0
    %2482 = vmatmul.mubr.f32.gmra.mrb[0].mxu0 %v2317
    %v2483 = vpop.f32.mrb[0].mxu0
    %v2484 = vadd.f32 0.0, %v2483
    %v2485 = vpop.f32.mrb[0].mxu0
    %2486 = vmatprep.mubr.f32.mxu0 0.0
    %2487 = vmatmul.mubr.f32.gmra.mrb[0].mxu0 %v2319
    %v2488 = vpop.f32.mrb[0].mxu0
    %v2489 = vadd.f32 0.0, %v2488
    %v2490 = vpop.f32.mrb[0].mxu0
    %2491 = vmatprep.mubr.f32.mxu0 0.0
    %2492 = vmatmul.mubr.f32.gmra.mrb[0].mxu0 %v2321
    %v2493 = vpop.f32.mrb[0].mxu0
    %v2494 = vadd.f32 0.0, %v2493
    %v2495 = vpop.f32.mrb[0].mxu0
    %2496 = vmatprep.mubr.f32.mxu0 0.0
    %2497 = vmatmul.mubr.f32.gmra.mrb[0].mxu0 %v2323
    %v2498 = vpop.f32.mrb[0].mxu0
    %v2499 = vadd.f32 0.0, %v2498
    %v2500 = vpop.f32.mrb[0].mxu0
    %2501 = vmatprep.mubr.f32.mxu0 0.0
    %2502 = vmatmul.mubr.f32.gmra.mrb[0].mxu0 %v2325
    %v2503 = vpop.f32.mrb[0].mxu0
    %v2504 = vadd.f32 0.0, %v2503
    %v2505 = vpop.f32.mrb[0].mxu0
    %2506 = vmatprep.mubr.f32.mxu0 0.0
    %2507 = vmatmul.mubr.f32.gmra.mrb[0].mxu0 %v2327
    %v2508 = vpop.f32.mrb[0].mxu0
    %v2509 = vadd.f32 0.0, %v2508
    %v2510 = vpop.f32.mrb[0].mxu0
    %2511 = vmatprep.mubr.f32.mxu0 0.0
    %2512 = vmatmul.mubr.f32.gmra.mrb[0].mxu0 %v2329
    %v2513 = vpop.f32.mrb[0].mxu0
    %v2514 = vadd.f32 0.0, %v2513
    %v2515 = vpop.f32.mrb[0].mxu0
    %2516 = vmatprep.mubr.f32.mxu0 0.0
    %2517 = vmatmul.mubr.f32.gmra.mrb[0].mxu0 %v2331
    %v2518 = vpop.f32.mrb[0].mxu0
    %v2519 = vadd.f32 0.0, %v2518
    %v2520 = vpop.f32.mrb[0].mxu0
    %2521 = vmatprep.mubr.f32.mxu0 0.0
    %2522 = vmatmul.mubr.f32.gmra.mrb[0].mxu0 %v2333
    %v2523 = vpop.f32.mrb[0].mxu0
    %v2524 = vadd.f32 0.0, %v2523
    %v2525 = vpop.f32.mrb[0].mxu0
    %2526 = vmatprep.mubr.f32.mxu0 0.0
    %2527 = vmatmul.mubr.f32.gmra.mrb[0].mxu0 %v2335
    %v2528 = vpop.f32.mrb[0].mxu0
    %v2529 = vadd.f32 0.0, %v2528
    %v2530 = vpop.f32.mrb[0].mxu0
    %2531 = vmatprep.mubr.f32.mxu0 0.0
    %2532 = vmatmul.mubr.f32.gmra.mrb[0].mxu0 %v2337
    %v2533 = vpop.f32.mrb[0].mxu0
    %v2534 = vadd.f32 0.0, %v2533
    %v2535 = vpop.f32.mrb[0].mxu0
    %2536 = vmatprep.mubr.f32.mxu0 0.0
    %2537 = vmatmul.mubr.f32.gmra.mrb[0].mxu0 %v2339
    %v2538 = vpop.f32.mrb[0].mxu0
    %v2539 = vadd.f32 0.0, %v2538
    %v2540 = vpop.f32.mrb[0].mxu0
    %2541 = vmatprep.mubr.f32.mxu0 0.0
    %2542 = vmatmul.mubr.f32.gmra.mrb[0].mxu0 %v2341
    %v2543 = vpop.f32.mrb[0].mxu0
    %v2544 = vadd.f32 0.0, %v2543
    %v2545 = vpop.f32.mrb[0].mxu0
    %2546 = vmatprep.mubr.f32.mxu0 0.0
    %2547 = vmatmul.mubr.f32.gmra.mrb[0].mxu0 %v2343
    %v2548 = vpop.f32.mrb[0].mxu0
    %v2549 = vadd.f32 0.0, %v2548
    %v2550 = vpop.f32.mrb[0].mxu0
    %2551 = vmatprep.mubr.f32.mxu0 0.0
    %2552 = vmatmul.mubr.f32.gmra.mrb[0].mxu0 %v2345
    %v2553 = vpop.f32.mrb[0].mxu0
    %v2554 = vadd.f32 0.0, %v2553
    %v2555 = vpop.f32.mrb[0].mxu0
    %2556 = vmatprep.mubr.f32.mxu0 0.0
    %2557 = vmatmul.mubr.f32.gmra.mrb[0].mxu0 %v2347
    %v2558 = vpop.f32.mrb[0].mxu0
    %v2559 = vadd.f32 0.0, %v2558
    %v2560 = vpop.f32.mrb[0].mxu0
    %2561 = vmatprep.mubr.f32.mxu0 0.0
    %2562 = vmatmul.mubr.f32.gmra.mrb[0].mxu0 %v2349
    %v2563 = vpop.f32.mrb[0].mxu0
    %v2564 = vadd.f32 0.0, %v2563
    %v2565 = vpop.f32.mrb[0].mxu0
    %2566 = vmatprep.mubr.f32.mxu0 0.0
    %2567 = vmatmul.mubr.f32.gmra.mrb[0].mxu0 %v2351
    %v2568 = vpop.f32.mrb[0].mxu0
    %v2569 = vadd.f32 0.0, %v2568
    %v2570 = vpop.f32.mrb[0].mxu0
    %2571 = vmatprep.mubr.f32.mxu0 0.0
    %2572 = vmatmul.mubr.f32.gmra.mrb[0].mxu0 %v2353
    %v2573 = vpop.f32.mrb[0].mxu0
    %v2574 = vadd.f32 0.0, %v2573
    %v2575 = vpop.f32.mrb[0].mxu0
    %2576 = vmatprep.mubr.f32.mxu0 0.0
    %2577 = vmatmul.mubr.f32.gmra.mrb[0].mxu0 %v2355
    %v2578 = vpop.f32.mrb[0].mxu0
    %v2579 = vadd.f32 0.0, %v2578
    %v2580 = vpop.f32.mrb[0].mxu0
    %2581 = vdwg.mxu0
    %2582 = vmatprep.subr.mxu0 0.0
    %2583 = vmatpush1.msra.mxu0 %v2424
    %2584 = vmatprep.subr.mxu0 0.0
    %2585 = vmatpush1.msra.mxu0 %v2429
    %2586 = vmatprep.subr.mxu0 0.0
    %2587 = vmatpush1.msra.mxu0 %v2434
    %2588 = vmatprep.subr.mxu0 0.0
    %2589 = vmatpush1.msra.mxu0 %v2439
    %2590 = vmatprep.subr.mxu0 0.0
    %2591 = vmatpush1.msra.mxu0 %v2444
    %2592 = vmatprep.subr.mxu0 0.0
    %2593 = vmatpush1.msra.mxu0 %v2449
    %2594 = vmatprep.subr.mxu0 0.0
    %2595 = vmatpush1.msra.mxu0 %v2454
    %2596 = vmatprep.subr.mxu0 0.0
    %2597 = vmatpush1.msra.mxu0 %v2459
    %2598 = vmatprep.subr.mxu0 0.0
    %2599 = vmatpush1.msra.mxu0 %v2464
    %2600 = vmatprep.subr.mxu0 0.0
    %2601 = vmatpush1.msra.mxu0 %v2469
    %2602 = vmatprep.subr.mxu0 0.0
    %2603 = vmatpush1.msra.mxu0 %v2474
    %2604 = vmatprep.subr.mxu0 0.0
    %2605 = vmatpush1.msra.mxu0 %v2479
    %2606 = vmatprep.subr.mxu0 0.0
    %2607 = vmatpush1.msra.mxu0 %v2484
    %2608 = vmatprep.subr.mxu0 0.0
    %2609 = vmatpush1.msra.mxu0 %v2489
    %2610 = vmatprep.subr.mxu0 0.0
    %2611 = vmatpush1.msra.mxu0 %v2494
    %2612 = vmatprep.subr.mxu0 0.0
    %2613 = vmatpush1.msra.mxu0 %v2499
    %2614 = vmatprep.subr.mxu0 0.0
    %2615 = vmatpush1.msra.mxu0 %v2504
    %2616 = vmatprep.subr.mxu0 0.0
    %2617 = vmatpush1.msra.mxu0 %v2509
    %2618 = vmatprep.subr.mxu0 0.0
    %2619 = vmatpush1.msra.mxu0 %v2514
    %2620 = vmatprep.subr.mxu0 0.0
    %2621 = vmatpush1.msra.mxu0 %v2519
    %2622 = vmatprep.subr.mxu0 0.0
    %2623 = vmatpush1.msra.mxu0 %v2524
    %2624 = vmatprep.subr.mxu0 0.0
    %2625 = vmatpush1.msra.mxu0 %v2529
    %2626 = vmatprep.subr.mxu0 0.0
    %2627 = vmatpush1.msra.mxu0 %v2534
    %2628 = vmatprep.subr.mxu0 0.0
    %2629 = vmatpush1.msra.mxu0 %v2539
    %2630 = vmatprep.subr.mxu0 0.0
    %2631 = vmatpush1.msra.mxu0 %v2544
    %2632 = vmatprep.subr.mxu0 0.0
    %2633 = vmatpush1.msra.mxu0 %v2549
    %2634 = vmatprep.subr.mxu0 0.0
    %2635 = vmatpush1.msra.mxu0 %v2554
    %2636 = vmatprep.subr.mxu0 0.0
    %2637 = vmatpush1.msra.mxu0 %v2559
    %2638 = vmatprep.subr.mxu0 0.0
    %2639 = vmatpush1.msra.mxu0 %v2564
    %2640 = vmatprep.subr.mxu0 0.0
    %2641 = vmatpush1.msra.mxu0 %v2569
    %2642 = vmatprep.subr.mxu0 0.0
    %2643 = vmatpush1.msra.mxu0 %v2574
    %2644 = vmatprep.subr.mxu0 0.0
    %2645 = vmatpush1.msra.mxu0 %v2579
    %2646 = vmatprep.mubr.f32.mxu0 %v44
    %2647 = vmatmul.mubr.f32.gmra.mrb[0].mxu0 %v43
    %v2648 = vpop.f32.mrb[0].mxu0
    %v2649 = vadd.f32 0.0, %v2648
    %v2650 = vpop.f32.mrb[0].mxu0
    %2651 = vmatprep.mubr.f32.mxu0 %v46
    %2652 = vmatmul.mubr.f32.gmra.mrb[0].mxu0 %v45
    %v2653 = vpop.f32.mrb[0].mxu0
    %v2654 = vadd.f32 0.0, %v2653
    %v2655 = vpop.f32.mrb[0].mxu0
    %2656 = vmatprep.mubr.f32.mxu0 %v48
    %2657 = vmatmul.mubr.f32.gmra.mrb[0].mxu0 %v47
    %v2658 = vpop.f32.mrb[0].mxu0
    %v2659 = vadd.f32 0.0, %v2658
    %v2660 = vpop.f32.mrb[0].mxu0
    %2661 = vmatprep.mubr.f32.mxu0 %v50
    %2662 = vmatmul.mubr.f32.gmra.mrb[0].mxu0 %v49
    %v2663 = vpop.f32.mrb[0].mxu0
    %v2664 = vadd.f32 0.0, %v2663
    %v2665 = vpop.f32.mrb[0].mxu0
    %2666 = vmatprep.mubr.f32.mxu0 %v52
    %2667 = vmatmul.mubr.f32.gmra.mrb[0].mxu0 %v51
    %v2668 = vpop.f32.mrb[0].mxu0
    %v2669 = vadd.f32 0.0, %v2668
    %v2670 = vpop.f32.mrb[0].mxu0
    %2671 = vmatprep.mubr.f32.mxu0 %v54
    %2672 = vmatmul.mubr.f32.gmra.mrb[0].mxu0 %v53
    %v2673 = vpop.f32.mrb[0].mxu0
    %v2674 = vadd.f32 0.0, %v2673
    %v2675 = vpop.f32.mrb[0].mxu0
    %2676 = vmatprep.mubr.f32.mxu0 %v56
    %2677 = vmatmul.mubr.f32.gmra.mrb[0].mxu0 %v55
    %v2678 = vpop.f32.mrb[0].mxu0
    %v2679 = vadd.f32 0.0, %v2678
    %v2680 = vpop.f32.mrb[0].mxu0
    %2681 = vmatprep.mubr.f32.mxu0 %v58
    %2682 = vmatmul.mubr.f32.gmra.mrb[0].mxu0 %v57
    %v2683 = vpop.f32.mrb[0].mxu0
    %v2684 = vadd.f32 0.0, %v2683
    %v2685 = vpop.f32.mrb[0].mxu0
    %2686 = vmatprep.mubr.f32.mxu0 %v60
    %2687 = vmatmul.mubr.f32.gmra.mrb[0].mxu0 %v59
    %v2688 = vpop.f32.mrb[0].mxu0
    %v2689 = vadd.f32 0.0, %v2688
    %v2690 = vpop.f32.mrb[0].mxu0
    %2691 = vmatprep.mubr.f32.mxu0 %v62
    %2692 = vmatmul.mubr.f32.gmra.mrb[0].mxu0 %v61
    %v2693 = vpop.f32.mrb[0].mxu0
    %v2694 = vadd.f32 0.0, %v2693
    %v2695 = vpop.f32.mrb[0].mxu0
    %2696 = vmatprep.mubr.f32.mxu0 %v64
    %2697 = vmatmul.mubr.f32.gmra.mrb[0].mxu0 %v63
    %v2698 = vpop.f32.mrb[0].mxu0
    %v2699 = vadd.f32 0.0, %v2698
    %v2700 = vpop.f32.mrb[0].mxu0
    %2701 = vmatprep.mubr.f32.mxu0 %v66
    %2702 = vmatmul.mubr.f32.gmra.mrb[0].mxu0 %v65
    %v2703 = vpop.f32.mrb[0].mxu0
    %v2704 = vadd.f32 0.0, %v2703
    %v2705 = vpop.f32.mrb[0].mxu0
    %2706 = vmatprep.mubr.f32.mxu0 %v68
    %2707 = vmatmul.mubr.f32.gmra.mrb[0].mxu0 %v67
    %v2708 = vpop.f32.mrb[0].mxu0
    %v2709 = vadd.f32 0.0, %v2708
    %v2710 = vpop.f32.mrb[0].mxu0
    %2711 = vmatprep.mubr.f32.mxu0 %v70
    %2712 = vmatmul.mubr.f32.gmra.mrb[0].mxu0 %v69
    %v2713 = vpop.f32.mrb[0].mxu0
    %v2714 = vadd.f32 0.0, %v2713
    %v2715 = vpop.f32.mrb[0].mxu0
    %2716 = vmatprep.mubr.f32.mxu0 %v72
    %2717 = vmatmul.mubr.f32.gmra.mrb[0].mxu0 %v71
    %v2718 = vpop.f32.mrb[0].mxu0
    %v2719 = vadd.f32 0.0, %v2718
    %v2720 = vpop.f32.mrb[0].mxu0
    %2721 = vmatprep.mubr.f32.mxu0 %v74
    %2722 = vmatmul.mubr.f32.gmra.mrb[0].mxu0 %v73
    %v2723 = vpop.f32.mrb[0].mxu0
    %v2724 = vadd.f32 0.0, %v2723
    %v2725 = vpop.f32.mrb[0].mxu0
    %2726 = vmatprep.mubr.f32.mxu0 %v76
    %2727 = vmatmul.mubr.f32.gmra.mrb[0].mxu0 %v75
    %v2728 = vpop.f32.mrb[0].mxu0
    %v2729 = vadd.f32 0.0, %v2728
    %v2730 = vpop.f32.mrb[0].mxu0
    %2731 = vmatprep.mubr.f32.mxu0 %v78
    %2732 = vmatmul.mubr.f32.gmra.mrb[0].mxu0 %v77
    %v2733 = vpop.f32.mrb[0].mxu0
    %v2734 = vadd.f32 0.0, %v2733
    %v2735 = vpop.f32.mrb[0].mxu0
    %2736 = vmatprep.mubr.f32.mxu0 %v80
    %2737 = vmatmul.mubr.f32.gmra.mrb[0].mxu0 %v79
    %v2738 = vpop.f32.mrb[0].mxu0
    %v2739 = vadd.f32 0.0, %v2738
    %v2740 = vpop.f32.mrb[0].mxu0
    %2741 = vmatprep.mubr.f32.mxu0 %v82
    %2742 = vmatmul.mubr.f32.gmra.mrb[0].mxu0 %v81
    %v2743 = vpop.f32.mrb[0].mxu0
    %v2744 = vadd.f32 0.0, %v2743
    %v2745 = vpop.f32.mrb[0].mxu0
    %2746 = vmatprep.mubr.f32.mxu0 %v84
    %2747 = vmatmul.mubr.f32.gmra.mrb[0].mxu0 %v83
    %v2748 = vpop.f32.mrb[0].mxu0
    %v2749 = vadd.f32 0.0, %v2748
    %v2750 = vpop.f32.mrb[0].mxu0
    %2751 = vmatprep.mubr.f32.mxu0 %v86
    %2752 = vmatmul.mubr.f32.gmra.mrb[0].mxu0 %v85
    %v2753 = vpop.f32.mrb[0].mxu0
    %v2754 = vadd.f32 0.0, %v2753
    %v2755 = vpop.f32.mrb[0].mxu0
    %2756 = vmatprep.mubr.f32.mxu0 %v88
    %2757 = vmatmul.mubr.f32.gmra.mrb[0].mxu0 %v87
    %v2758 = vpop.f32.mrb[0].mxu0
    %v2759 = vadd.f32 0.0, %v2758
    %v2760 = vpop.f32.mrb[0].mxu0
    %2761 = vmatprep.mubr.f32.mxu0 %v90
    %2762 = vmatmul.mubr.f32.gmra.mrb[0].mxu0 %v89
    %v2763 = vpop.f32.mrb[0].mxu0
    %v2764 = vadd.f32 0.0, %v2763
    %v2765 = vpop.f32.mrb[0].mxu0
    %2766 = vmatprep.mubr.f32.mxu0 %v92
    %2767 = vmatmul.mubr.f32.gmra.mrb[0].mxu0 %v91
    %v2768 = vpop.f32.mrb[0].mxu0
    %v2769 = vadd.f32 0.0, %v2768
    %v2770 = vpop.f32.mrb[0].mxu0
    %2771 = vmatprep.mubr.f32.mxu0 %v94
    %2772 = vmatmul.mubr.f32.gmra.mrb[0].mxu0 %v93
    %v2773 = vpop.f32.mrb[0].mxu0
    %v2774 = vadd.f32 0.0, %v2773
    %v2775 = vpop.f32.mrb[0].mxu0
    %2776 = vmatprep.mubr.f32.mxu0 %v96
    %2777 = vmatmul.mubr.f32.gmra.mrb[0].mxu0 %v95
    %v2778 = vpop.f32.mrb[0].mxu0
    %v2779 = vadd.f32 0.0, %v2778
    %v2780 = vpop.f32.mrb[0].mxu0
    %2781 = vmatprep.mubr.f32.mxu0 %v98
    %2782 = vmatmul.mubr.f32.gmra.mrb[0].mxu0 %v97
    %v2783 = vpop.f32.mrb[0].mxu0
    %v2784 = vadd.f32 0.0, %v2783
    %v2785 = vpop.f32.mrb[0].mxu0
    %2786 = vmatprep.mubr.f32.mxu0 %v100
    %2787 = vmatmul.mubr.f32.gmra.mrb[0].mxu0 %v99
    %v2788 = vpop.f32.mrb[0].mxu0
    %v2789 = vadd.f32 0.0, %v2788
    %v2790 = vpop.f32.mrb[0].mxu0
    %2791 = vmatprep.mubr.f32.mxu0 %v102
    %2792 = vmatmul.mubr.f32.gmra.mrb[0].mxu0 %v101
    %v2793 = vpop.f32.mrb[0].mxu0
    %v2794 = vadd.f32 0.0, %v2793
    %v2795 = vpop.f32.mrb[0].mxu0
    %2796 = vmatprep.mubr.f32.mxu0 %v104
    %2797 = vmatmul.mubr.f32.gmra.mrb[0].mxu0 %v103
    %v2798 = vpop.f32.mrb[0].mxu0
    %v2799 = vadd.f32 0.0, %v2798
    %v2800 = vpop.f32.mrb[0].mxu0
    %2801 = vmatprep.mubr.f32.mxu0 %v106
    %2802 = vmatmul.mubr.f32.gmra.mrb[0].mxu0 %v105
    %v2803 = vpop.f32.mrb[0].mxu0
    %v2804 = vadd.f32 0.0, %v2803
    %v2805 = vpop.f32.mrb[0].mxu0
    %2806 = vdwg.mxu0
    %v2808 = vsel %vm150, %v2649, 0
    %v2811 = vsel %vm150, %v2654, 0
    %v2814 = vsel %vm150, %v2659, 0
    %v2817 = vsel %vm150, %v2664, 0
    %v2820 = vsel %vm150, %v2669, 0
    %v2823 = vsel %vm150, %v2674, 0
    %v2826 = vsel %vm150, %v2679, 0
    %v2829 = vsel %vm150, %v2684, 0
    %v2832 = vsel %vm150, %v2689, 0
    %v2835 = vsel %vm150, %v2694, 0
    %v2838 = vsel %vm150, %v2699, 0
    %v2841 = vsel %vm150, %v2704, 0
    %v2844 = vsel %vm150, %v2709, 0
    %v2847 = vsel %vm150, %v2714, 0
    %v2850 = vsel %vm150, %v2719, 0
    %v2853 = vsel %vm150, %v2724, 0
    %v2856 = vsel %vm150, %v2729, 0
    %v2859 = vsel %vm150, %v2734, 0
    %v2862 = vsel %vm150, %v2739, 0
    %v2865 = vsel %vm150, %v2744, 0
    %v2868 = vsel %vm150, %v2749, 0
    %v2871 = vsel %vm150, %v2754, 0
    %v2874 = vsel %vm150, %v2759, 0
    %v2877 = vsel %vm150, %v2764, 0
    %v2880 = vsel %vm150, %v2769, 0
    %v2883 = vsel %vm150, %v2774, 0
    %v2886 = vsel %vm150, %v2779, 0
    %v2889 = vsel %vm150, %v2784, 0
    %v2892 = vsel %vm150, %v2789, 0
    %v2895 = vsel %vm150, %v2794, 0
    %v2898 = vsel %vm150, %v2799, 0
    %v2901 = vsel %vm150, %v2804, 0
    %2903 = vmatprep.subr.mxu0 0.0
    %2904 = vmatpush1.msra.mxu0 %v139
    %2905 = vmatprep.subr.mxu0 0.0
    %2906 = vmatpush1.msra.mxu0 %v140
    %2907 = vmatprep.subr.mxu0 0.0
    %2908 = vmatpush1.msra.mxu0 %v141
    %2909 = vmatprep.subr.mxu0 0.0
    %2910 = vmatpush1.msra.mxu0 %v142
    %2911 = vmatprep.subr.mxu0 0.0
    %2912 = vmatpush1.msra.mxu0 0.0
    %2913 = vmatprep.subr.mxu0 0.0
    %2914 = vmatpush1.msra.mxu0 0.0
    %2915 = vmatprep.subr.mxu0 0.0
    %2916 = vmatpush1.msra.mxu0 0.0
    %2917 = vmatprep.subr.mxu0 0.0
    %2918 = vmatpush1.msra.mxu0 0.0
    %2919 = vmatprep.subr.mxu0 0.0
    %2920 = vmatpush1.msra.mxu0 0.0
    %2921 = vmatprep.subr.mxu0 0.0
    %2922 = vmatpush1.msra.mxu0 0.0
    %2923 = vmatprep.subr.mxu0 0.0
    %2924 = vmatpush1.msra.mxu0 0.0
    %2925 = vmatprep.subr.mxu0 0.0
    %2926 = vmatpush1.msra.mxu0 0.0
    %2927 = vmatprep.subr.mxu0 0.0
    %2928 = vmatpush1.msra.mxu0 0.0
    %2929 = vmatprep.subr.mxu0 0.0
    %2930 = vmatpush1.msra.mxu0 0.0
    %2931 = vmatprep.subr.mxu0 0.0
    %2932 = vmatpush1.msra.mxu0 0.0
    %2933 = vmatprep.subr.mxu0 0.0
    %2934 = vmatpush1.msra.mxu0 0.0
    %2935 = vmatprep.subr.mxu0 0.0
    %2936 = vmatpush1.msra.mxu0 0.0
    %2937 = vmatprep.subr.mxu0 0.0
    %2938 = vmatpush1.msra.mxu0 0.0
    %2939 = vmatprep.subr.mxu0 0.0
    %2940 = vmatpush1.msra.mxu0 0.0
    %2941 = vmatprep.subr.mxu0 0.0
    %2942 = vmatpush1.msra.mxu0 0.0
    %2943 = vmatprep.subr.mxu0 0.0
    %2944 = vmatpush1.msra.mxu0 0.0
    %2945 = vmatprep.subr.mxu0 0.0
    %2946 = vmatpush1.msra.mxu0 0.0
    %2947 = vmatprep.subr.mxu0 0.0
    %2948 = vmatpush1.msra.mxu0 0.0
    %2949 = vmatprep.subr.mxu0 0.0
    %2950 = vmatpush1.msra.mxu0 0.0
    %2951 = vmatprep.subr.mxu0 0.0
    %2952 = vmatpush1.msra.mxu0 0.0
    %2953 = vmatprep.subr.mxu0 0.0
    %2954 = vmatpush1.msra.mxu0 0.0
    %2955 = vmatprep.subr.mxu0 0.0
    %2956 = vmatpush1.msra.mxu0 0.0
    %2957 = vmatprep.subr.mxu0 0.0
    %2958 = vmatpush1.msra.mxu0 0.0
    %2959 = vmatprep.subr.mxu0 0.0
    %2960 = vmatpush1.msra.mxu0 0.0
    %2961 = vmatprep.subr.mxu0 0.0
    %2962 = vmatpush1.msra.mxu0 0.0
    %2963 = vmatprep.subr.mxu0 0.0
    %2964 = vmatpush1.msra.mxu0 0.0
    %2965 = vmatprep.subr.mxu0 0.0
    %2966 = vmatpush1.msra.mxu0 0.0
    %2967 = vmatprep.mubr.f32.mxu0 0.0
    %2968 = vmatmul.mubr.f32.gmra.mrb[0].mxu0 %v2808
    %v2969 = vpop.f32.mrb[0].mxu0
    %v2970 = vadd.f32 0.0, %v2969
    %v2971 = vpop.f32.mrb[0].mxu0
    %2972 = vmatprep.mubr.f32.mxu0 0.0
    %2973 = vmatmul.mubr.f32.gmra.mrb[0].mxu0 %v2811
    %v2974 = vpop.f32.mrb[0].mxu0
    %v2975 = vadd.f32 0.0, %v2974
    %v2976 = vpop.f32.mrb[0].mxu0
    %2977 = vmatprep.mubr.f32.mxu0 0.0
    %2978 = vmatmul.mubr.f32.gmra.mrb[0].mxu0 %v2814
    %v2979 = vpop.f32.mrb[0].mxu0
    %v2980 = vadd.f32 0.0, %v2979
    %v2981 = vpop.f32.mrb[0].mxu0
    %2982 = vmatprep.mubr.f32.mxu0 0.0
    %2983 = vmatmul.mubr.f32.gmra.mrb[0].mxu0 %v2817
    %v2984 = vpop.f32.mrb[0].mxu0
    %v2985 = vadd.f32 0.0, %v2984
    %v2986 = vpop.f32.mrb[0].mxu0
    %2987 = vmatprep.mubr.f32.mxu0 0.0
    %2988 = vmatmul.mubr.f32.gmra.mrb[0].mxu0 %v2820
    %v2989 = vpop.f32.mrb[0].mxu0
    %v2990 = vadd.f32 0.0, %v2989
    %v2991 = vpop.f32.mrb[0].mxu0
    %2992 = vmatprep.mubr.f32.mxu0 0.0
    %2993 = vmatmul.mubr.f32.gmra.mrb[0].mxu0 %v2823
    %v2994 = vpop.f32.mrb[0].mxu0
    %v2995 = vadd.f32 0.0, %v2994
    %v2996 = vpop.f32.mrb[0].mxu0
    %2997 = vmatprep.mubr.f32.mxu0 0.0
    %2998 = vmatmul.mubr.f32.gmra.mrb[0].mxu0 %v2826
    %v2999 = vpop.f32.mrb[0].mxu0
    %v3000 = vadd.f32 0.0, %v2999
    %v3001 = vpop.f32.mrb[0].mxu0
    %3002 = vmatprep.mubr.f32.mxu0 0.0
    %3003 = vmatmul.mubr.f32.gmra.mrb[0].mxu0 %v2829
    %v3004 = vpop.f32.mrb[0].mxu0
    %v3005 = vadd.f32 0.0, %v3004
    %v3006 = vpop.f32.mrb[0].mxu0
    %3007 = vmatprep.mubr.f32.mxu0 0.0
    %3008 = vmatmul.mubr.f32.gmra.mrb[0].mxu0 %v2832
    %v3009 = vpop.f32.mrb[0].mxu0
    %v3010 = vadd.f32 0.0, %v3009
    %v3011 = vpop.f32.mrb[0].mxu0
    %3012 = vmatprep.mubr.f32.mxu0 0.0
    %3013 = vmatmul.mubr.f32.gmra.mrb[0].mxu0 %v2835
    %v3014 = vpop.f32.mrb[0].mxu0
    %v3015 = vadd.f32 0.0, %v3014
    %v3016 = vpop.f32.mrb[0].mxu0
    %3017 = vmatprep.mubr.f32.mxu0 0.0
    %3018 = vmatmul.mubr.f32.gmra.mrb[0].mxu0 %v2838
    %v3019 = vpop.f32.mrb[0].mxu0
    %v3020 = vadd.f32 0.0, %v3019
    %v3021 = vpop.f32.mrb[0].mxu0
    %3022 = vmatprep.mubr.f32.mxu0 0.0
    %3023 = vmatmul.mubr.f32.gmra.mrb[0].mxu0 %v2841
    %v3024 = vpop.f32.mrb[0].mxu0
    %v3025 = vadd.f32 0.0, %v3024
    %v3026 = vpop.f32.mrb[0].mxu0
    %3027 = vmatprep.mubr.f32.mxu0 0.0
    %3028 = vmatmul.mubr.f32.gmra.mrb[0].mxu0 %v2844
    %v3029 = vpop.f32.mrb[0].mxu0
    %v3030 = vadd.f32 0.0, %v3029
    %v3031 = vpop.f32.mrb[0].mxu0
    %3032 = vmatprep.mubr.f32.mxu0 0.0
    %3033 = vmatmul.mubr.f32.gmra.mrb[0].mxu0 %v2847
    %v3034 = vpop.f32.mrb[0].mxu0
    %v3035 = vadd.f32 0.0, %v3034
    %v3036 = vpop.f32.mrb[0].mxu0
    %3037 = vmatprep.mubr.f32.mxu0 0.0
    %3038 = vmatmul.mubr.f32.gmra.mrb[0].mxu0 %v2850
    %v3039 = vpop.f32.mrb[0].mxu0
    %v3040 = vadd.f32 0.0, %v3039
    %v3041 = vpop.f32.mrb[0].mxu0
    %3042 = vmatprep.mubr.f32.mxu0 0.0
    %3043 = vmatmul.mubr.f32.gmra.mrb[0].mxu0 %v2853
    %v3044 = vpop.f32.mrb[0].mxu0
    %v3045 = vadd.f32 0.0, %v3044
    %v3046 = vpop.f32.mrb[0].mxu0
    %3047 = vmatprep.mubr.f32.mxu0 0.0
    %3048 = vmatmul.mubr.f32.gmra.mrb[0].mxu0 %v2856
    %v3049 = vpop.f32.mrb[0].mxu0
    %v3050 = vadd.f32 0.0, %v3049
    %v3051 = vpop.f32.mrb[0].mxu0
    %3052 = vmatprep.mubr.f32.mxu0 0.0
    %3053 = vmatmul.mubr.f32.gmra.mrb[0].mxu0 %v2859
    %v3054 = vpop.f32.mrb[0].mxu0
    %v3055 = vadd.f32 0.0, %v3054
    %v3056 = vpop.f32.mrb[0].mxu0
    %3057 = vmatprep.mubr.f32.mxu0 0.0
    %3058 = vmatmul.mubr.f32.gmra.mrb[0].mxu0 %v2862
    %v3059 = vpop.f32.mrb[0].mxu0
    %v3060 = vadd.f32 0.0, %v3059
    %v3061 = vpop.f32.mrb[0].mxu0
    %3062 = vmatprep.mubr.f32.mxu0 0.0
    %3063 = vmatmul.mubr.f32.gmra.mrb[0].mxu0 %v2865
    %v3064 = vpop.f32.mrb[0].mxu0
    %v3065 = vadd.f32 0.0, %v3064
    %v3066 = vpop.f32.mrb[0].mxu0
    %3067 = vmatprep.mubr.f32.mxu0 0.0
    %3068 = vmatmul.mubr.f32.gmra.mrb[0].mxu0 %v2868
    %v3069 = vpop.f32.mrb[0].mxu0
    %v3070 = vadd.f32 0.0, %v3069
    %v3071 = vpop.f32.mrb[0].mxu0
    %3072 = vmatprep.mubr.f32.mxu0 0.0
    %3073 = vmatmul.mubr.f32.gmra.mrb[0].mxu0 %v2871
    %v3074 = vpop.f32.mrb[0].mxu0
    %v3075 = vadd.f32 0.0, %v3074
    %v3076 = vpop.f32.mrb[0].mxu0
    %3077 = vmatprep.mubr.f32.mxu0 0.0
    %3078 = vmatmul.mubr.f32.gmra.mrb[0].mxu0 %v2874
    %v3079 = vpop.f32.mrb[0].mxu0
    %v3080 = vadd.f32 0.0, %v3079
    %v3081 = vpop.f32.mrb[0].mxu0
    %3082 = vmatprep.mubr.f32.mxu0 0.0
    %3083 = vmatmul.mubr.f32.gmra.mrb[0].mxu0 %v2877
    %v3084 = vpop.f32.mrb[0].mxu0
    %v3085 = vadd.f32 0.0, %v3084
    %v3086 = vpop.f32.mrb[0].mxu0
    %3087 = vmatprep.mubr.f32.mxu0 0.0
    %3088 = vmatmul.mubr.f32.gmra.mrb[0].mxu0 %v2880
    %v3089 = vpop.f32.mrb[0].mxu0
    %v3090 = vadd.f32 0.0, %v3089
    %v3091 = vpop.f32.mrb[0].mxu0
    %3092 = vmatprep.mubr.f32.mxu0 0.0
    %3093 = vmatmul.mubr.f32.gmra.mrb[0].mxu0 %v2883
    %v3094 = vpop.f32.mrb[0].mxu0
    %v3095 = vadd.f32 0.0, %v3094
    %v3096 = vpop.f32.mrb[0].mxu0
    %3097 = vmatprep.mubr.f32.mxu0 0.0
    %3098 = vmatmul.mubr.f32.gmra.mrb[0].mxu0 %v2886
    %v3099 = vpop.f32.mrb[0].mxu0
    %v3100 = vadd.f32 0.0, %v3099
    %v3101 = vpop.f32.mrb[0].mxu0
    %3102 = vmatprep.mubr.f32.mxu0 0.0
    %3103 = vmatmul.mubr.f32.gmra.mrb[0].mxu0 %v2889
    %v3104 = vpop.f32.mrb[0].mxu0
    %v3105 = vadd.f32 0.0, %v3104
    %v3106 = vpop.f32.mrb[0].mxu0
    %3107 = vmatprep.mubr.f32.mxu0 0.0
    %3108 = vmatmul.mubr.f32.gmra.mrb[0].mxu0 %v2892
    %v3109 = vpop.f32.mrb[0].mxu0
    %v3110 = vadd.f32 0.0, %v3109
    %v3111 = vpop.f32.mrb[0].mxu0
    %3112 = vmatprep.mubr.f32.mxu0 0.0
    %3113 = vmatmul.mubr.f32.gmra.mrb[0].mxu0 %v2895
    %v3114 = vpop.f32.mrb[0].mxu0
    %v3115 = vadd.f32 0.0, %v3114
    %v3116 = vpop.f32.mrb[0].mxu0
    %3117 = vmatprep.mubr.f32.mxu0 0.0
    %3118 = vmatmul.mubr.f32.gmra.mrb[0].mxu0 %v2898
    %v3119 = vpop.f32.mrb[0].mxu0
    %v3120 = vadd.f32 0.0, %v3119
    %v3121 = vpop.f32.mrb[0].mxu0
    %3122 = vmatprep.mubr.f32.mxu0 0.0
    %3123 = vmatmul.mubr.f32.gmra.mrb[0].mxu0 %v2901
    %v3124 = vpop.f32.mrb[0].mxu0
    %v3125 = vadd.f32 0.0, %v3124
    %v3126 = vpop.f32.mrb[0].mxu0
    %3127 = vdwg.mxu0
    %3160 = vrot.lane.b32.xlu0 %v2424, 96
    %v3161 = vpop.permute.xlu0 %3160
    %3162 = vrot.lane.b32.xlu0 %v2429, 96
    %v3163 = vpop.permute.xlu0 %3162
    %3164 = vrot.lane.b32.xlu0 %v2434, 96
    %v3165 = vpop.permute.xlu0 %3164
    %3166 = vrot.lane.b32.xlu0 %v2439, 96
    %v3167 = vpop.permute.xlu0 %3166
    %3168 = vrot.lane.b32.xlu0 %v2444, 96
    %v3169 = vpop.permute.xlu0 %3168
    %3170 = vrot.lane.b32.xlu0 %v2449, 96
    %v3171 = vpop.permute.xlu0 %3170
    %3172 = vrot.lane.b32.xlu0 %v2454, 96
    %v3173 = vpop.permute.xlu0 %3172
    %3174 = vrot.lane.b32.xlu0 %v2459, 96
    %v3175 = vpop.permute.xlu0 %3174
    %3176 = vrot.lane.b32.xlu0 %v2464, 96
    %v3177 = vpop.permute.xlu0 %3176
    %3178 = vrot.lane.b32.xlu0 %v2469, 96
    %v3179 = vpop.permute.xlu0 %3178
    %3180 = vrot.lane.b32.xlu0 %v2474, 96
    %v3181 = vpop.permute.xlu0 %3180
    %3182 = vrot.lane.b32.xlu0 %v2479, 96
    %v3183 = vpop.permute.xlu0 %3182
    %3184 = vrot.lane.b32.xlu0 %v2484, 96
    %v3185 = vpop.permute.xlu0 %3184
    %3186 = vrot.lane.b32.xlu0 %v2489, 96
    %v3187 = vpop.permute.xlu0 %3186
    %3188 = vrot.lane.b32.xlu0 %v2494, 96
    %v3189 = vpop.permute.xlu0 %3188
    %3190 = vrot.lane.b32.xlu0 %v2499, 96
    %v3191 = vpop.permute.xlu0 %3190
    %3192 = vrot.lane.b32.xlu0 %v2504, 96
    %v3193 = vpop.permute.xlu0 %3192
    %3194 = vrot.lane.b32.xlu0 %v2509, 96
    %v3195 = vpop.permute.xlu0 %3194
    %3196 = vrot.lane.b32.xlu0 %v2514, 96
    %v3197 = vpop.permute.xlu0 %3196
    %3198 = vrot.lane.b32.xlu0 %v2519, 96
    %v3199 = vpop.permute.xlu0 %3198
    %3200 = vrot.lane.b32.xlu0 %v2524, 96
    %v3201 = vpop.permute.xlu0 %3200
    %3202 = vrot.lane.b32.xlu0 %v2529, 96
    %v3203 = vpop.permute.xlu0 %3202
    %3204 = vrot.lane.b32.xlu0 %v2534, 96
    %v3205 = vpop.permute.xlu0 %3204
    %3206 = vrot.lane.b32.xlu0 %v2539, 96
    %v3207 = vpop.permute.xlu0 %3206
    %3208 = vrot.lane.b32.xlu0 %v2544, 96
    %v3209 = vpop.permute.xlu0 %3208
    %3210 = vrot.lane.b32.xlu0 %v2549, 96
    %v3211 = vpop.permute.xlu0 %3210
    %3212 = vrot.lane.b32.xlu0 %v2554, 96
    %v3213 = vpop.permute.xlu0 %3212
    %3214 = vrot.lane.b32.xlu0 %v2559, 96
    %v3215 = vpop.permute.xlu0 %3214
    %3216 = vrot.lane.b32.xlu0 %v2564, 96
    %v3217 = vpop.permute.xlu0 %3216
    %3218 = vrot.lane.b32.xlu0 %v2569, 96
    %v3219 = vpop.permute.xlu0 %3218
    %3220 = vrot.lane.b32.xlu0 %v2574, 96
    %v3221 = vpop.permute.xlu0 %3220
    %3222 = vrot.lane.b32.xlu0 %v2579, 96
    %v3223 = vpop.permute.xlu0 %3222
    %v3256 = vadd.f32 %v2970, %v3161
    %v3257 = vadd.f32 %v2975, %v3163
    %v3258 = vadd.f32 %v2980, %v3165
    %v3259 = vadd.f32 %v2985, %v3167
    %v3260 = vadd.f32 %v2990, %v3169
    %v3261 = vadd.f32 %v2995, %v3171
    %v3262 = vadd.f32 %v3000, %v3173
    %v3263 = vadd.f32 %v3005, %v3175
    %v3264 = vadd.f32 %v3010, %v3177
    %v3265 = vadd.f32 %v3015, %v3179
    %v3266 = vadd.f32 %v3020, %v3181
    %v3267 = vadd.f32 %v3025, %v3183
    %v3268 = vadd.f32 %v3030, %v3185
    %v3269 = vadd.f32 %v3035, %v3187
    %v3270 = vadd.f32 %v3040, %v3189
    %v3271 = vadd.f32 %v3045, %v3191
    %v3272 = vadd.f32 %v3050, %v3193
    %v3273 = vadd.f32 %v3055, %v3195
    %v3274 = vadd.f32 %v3060, %v3197
    %v3275 = vadd.f32 %v3065, %v3199
    %v3276 = vadd.f32 %v3070, %v3201
    %v3277 = vadd.f32 %v3075, %v3203
    %v3278 = vadd.f32 %v3080, %v3205
    %v3279 = vadd.f32 %v3085, %v3207
    %v3280 = vadd.f32 %v3090, %v3209
    %v3281 = vadd.f32 %v3095, %v3211
    %v3282 = vadd.f32 %v3100, %v3213
    %v3283 = vadd.f32 %v3105, %v3215
    %v3284 = vadd.f32 %v3110, %v3217
    %v3285 = vadd.f32 %v3115, %v3219
    %v3286 = vadd.f32 %v3120, %v3221
    %v3287 = vadd.f32 %v3125, %v3223
    %v3288 = vadd.f32 %v3256, %v1182
    %v3289 = vadd.f32 %v3257, %v1182
    %v3290 = vadd.f32 %v3258, %v1182
    %v3291 = vadd.f32 %v3259, %v1182
    %v3292 = vadd.f32 %v3260, %v1182
    %v3293 = vadd.f32 %v3261, %v1182
    %v3294 = vadd.f32 %v3262, %v1182
    %v3295 = vadd.f32 %v3263, %v1182
    %v3296 = vadd.f32 %v3264, %v1182
    %v3297 = vadd.f32 %v3265, %v1182
    %v3298 = vadd.f32 %v3266, %v1182
    %v3299 = vadd.f32 %v3267, %v1182
    %v3300 = vadd.f32 %v3268, %v1182
    %v3301 = vadd.f32 %v3269, %v1182
    %v3302 = vadd.f32 %v3270, %v1182
    %v3303 = vadd.f32 %v3271, %v1182
    %v3304 = vadd.f32 %v3272, %v1182
    %v3305 = vadd.f32 %v3273, %v1182
    %v3306 = vadd.f32 %v3274, %v1182
    %v3307 = vadd.f32 %v3275, %v1182
    %v3308 = vadd.f32 %v3276, %v1182
    %v3309 = vadd.f32 %v3277, %v1182
    %v3310 = vadd.f32 %v3278, %v1182
    %v3311 = vadd.f32 %v3279, %v1182
    %v3312 = vadd.f32 %v3280, %v1182
    %v3313 = vadd.f32 %v3281, %v1182
    %v3314 = vadd.f32 %v3282, %v1182
    %v3315 = vadd.f32 %v3283, %v1182
    %v3316 = vadd.f32 %v3284, %v1182
    %v3317 = vadd.f32 %v3285, %v1182
    %v3318 = vadd.f32 %v3286, %v1182
    %v3319 = vadd.f32 %v3287, %v1182
    %v3320 = vxor.u32 %v3288, 2147483648
    %v3321 = vxor.u32 %v3289, 2147483648
    %v3322 = vxor.u32 %v3290, 2147483648
    %v3323 = vxor.u32 %v3291, 2147483648
    %v3324 = vxor.u32 %v3292, 2147483648
    %v3325 = vxor.u32 %v3293, 2147483648
    %v3326 = vxor.u32 %v3294, 2147483648
    %v3327 = vxor.u32 %v3295, 2147483648
    %v3328 = vxor.u32 %v3296, 2147483648
    %v3329 = vxor.u32 %v3297, 2147483648
    %v3330 = vxor.u32 %v3298, 2147483648
    %v3331 = vxor.u32 %v3299, 2147483648
    %v3332 = vxor.u32 %v3300, 2147483648
    %v3333 = vxor.u32 %v3301, 2147483648
    %v3334 = vxor.u32 %v3302, 2147483648
    %v3335 = vxor.u32 %v3303, 2147483648
    %v3336 = vxor.u32 %v3304, 2147483648
    %v3337 = vxor.u32 %v3305, 2147483648
    %v3338 = vxor.u32 %v3306, 2147483648
    %v3339 = vxor.u32 %v3307, 2147483648
    %v3340 = vxor.u32 %v3308, 2147483648
    %v3341 = vxor.u32 %v3309, 2147483648
    %v3342 = vxor.u32 %v3310, 2147483648
    %v3343 = vxor.u32 %v3311, 2147483648
    %v3344 = vxor.u32 %v3312, 2147483648
    %v3345 = vxor.u32 %v3313, 2147483648
    %v3346 = vxor.u32 %v3314, 2147483648
    %v3347 = vxor.u32 %v3315, 2147483648
    %v3348 = vxor.u32 %v3316, 2147483648
    %v3349 = vxor.u32 %v3317, 2147483648
    %v3350 = vxor.u32 %v3318, 2147483648
    %v3351 = vxor.u32 %v3319, 2147483648
    %v3352 = vmul.f32 %v3320, 1.442695
    %v3353 = vpow.pop %v3352
    %v3354 = vmul.f32 %v3321, 1.442695
    %v3355 = vpow.pop %v3354
    %v3356 = vmul.f32 %v3322, 1.442695
    %v3357 = vpow.pop %v3356
    %v3358 = vmul.f32 %v3323, 1.442695
    %v3359 = vpow.pop %v3358
    %v3360 = vmul.f32 %v3324, 1.442695
    %v3361 = vpow.pop %v3360
    %v3362 = vmul.f32 %v3325, 1.442695
    %v3363 = vpow.pop %v3362
    %v3364 = vmul.f32 %v3326, 1.442695
    %v3365 = vpow.pop %v3364
    %v3366 = vmul.f32 %v3327, 1.442695
    %v3367 = vpow.pop %v3366
    %v3368 = vmul.f32 %v3328, 1.442695
    %v3369 = vpow.pop %v3368
    %v3370 = vmul.f32 %v3329, 1.442695
    %v3371 = vpow.pop %v3370
    %v3372 = vmul.f32 %v3330, 1.442695
    %v3373 = vpow.pop %v3372
    %v3374 = vmul.f32 %v3331, 1.442695
    %v3375 = vpow.pop %v3374
    %v3376 = vmul.f32 %v3332, 1.442695
    %v3377 = vpow.pop %v3376
    %v3378 = vmul.f32 %v3333, 1.442695
    %v3379 = vpow.pop %v3378
    %v3380 = vmul.f32 %v3334, 1.442695
    %v3381 = vpow.pop %v3380
    %v3382 = vmul.f32 %v3335, 1.442695
    %v3383 = vpow.pop %v3382
    %v3384 = vmul.f32 %v3336, 1.442695
    %v3385 = vpow.pop %v3384
    %v3386 = vmul.f32 %v3337, 1.442695
    %v3387 = vpow.pop %v3386
    %v3388 = vmul.f32 %v3338, 1.442695
    %v3389 = vpow.pop %v3388
    %v3390 = vmul.f32 %v3339, 1.442695
    %v3391 = vpow.pop %v3390
    %v3392 = vmul.f32 %v3340, 1.442695
    %v3393 = vpow.pop %v3392
    %v3394 = vmul.f32 %v3341, 1.442695
    %v3395 = vpow.pop %v3394
    %v3396 = vmul.f32 %v3342, 1.442695
    %v3397 = vpow.pop %v3396
    %v3398 = vmul.f32 %v3343, 1.442695
    %v3399 = vpow.pop %v3398
    %v3400 = vmul.f32 %v3344, 1.442695
    %v3401 = vpow.pop %v3400
    %v3402 = vmul.f32 %v3345, 1.442695
    %v3403 = vpow.pop %v3402
    %v3404 = vmul.f32 %v3346, 1.442695
    %v3405 = vpow.pop %v3404
    %v3406 = vmul.f32 %v3347, 1.442695
    %v3407 = vpow.pop %v3406
    %v3408 = vmul.f32 %v3348, 1.442695
    %v3409 = vpow.pop %v3408
    %v3410 = vmul.f32 %v3349, 1.442695
    %v3411 = vpow.pop %v3410
    %v3412 = vmul.f32 %v3350, 1.442695
    %v3413 = vpow.pop %v3412
    %v3414 = vmul.f32 %v3351, 1.442695
    %v3415 = vpow.pop %v3414
    %v3416 = vadd.f32 %v3353, 1.0
    %v3417 = vadd.f32 %v3355, 1.0
    %v3418 = vadd.f32 %v3357, 1.0
    %v3419 = vadd.f32 %v3359, 1.0
    %v3420 = vadd.f32 %v3361, 1.0
    %v3421 = vadd.f32 %v3363, 1.0
    %v3422 = vadd.f32 %v3365, 1.0
    %v3423 = vadd.f32 %v3367, 1.0
    %v3424 = vadd.f32 %v3369, 1.0
    %v3425 = vadd.f32 %v3371, 1.0
    %v3426 = vadd.f32 %v3373, 1.0
    %v3427 = vadd.f32 %v3375, 1.0
    %v3428 = vadd.f32 %v3377, 1.0
    %v3429 = vadd.f32 %v3379, 1.0
    %v3430 = vadd.f32 %v3381, 1.0
    %v3431 = vadd.f32 %v3383, 1.0
    %v3432 = vadd.f32 %v3385, 1.0
    %v3433 = vadd.f32 %v3387, 1.0
    %v3434 = vadd.f32 %v3389, 1.0
    %v3435 = vadd.f32 %v3391, 1.0
    %v3436 = vadd.f32 %v3393, 1.0
    %v3437 = vadd.f32 %v3395, 1.0
    %v3438 = vadd.f32 %v3397, 1.0
    %v3439 = vadd.f32 %v3399, 1.0
    %v3440 = vadd.f32 %v3401, 1.0
    %v3441 = vadd.f32 %v3403, 1.0
    %v3442 = vadd.f32 %v3405, 1.0
    %v3443 = vadd.f32 %v3407, 1.0
    %v3444 = vadd.f32 %v3409, 1.0
    %v3445 = vadd.f32 %v3411, 1.0
    %v3446 = vadd.f32 %v3413, 1.0
    %v3447 = vadd.f32 %v3415, 1.0
    %v3448 = vrcp.pop %v3416
    %v3449 = vmul.f32 1.0, %v3448
    %v3450 = vrcp.pop %v3417
    %v3451 = vmul.f32 1.0, %v3450
    %v3452 = vrcp.pop %v3418
    %v3453 = vmul.f32 1.0, %v3452
    %v3454 = vrcp.pop %v3419
    %v3455 = vmul.f32 1.0, %v3454
    %v3456 = vrcp.pop %v3420
    %v3457 = vmul.f32 1.0, %v3456
    %v3458 = vrcp.pop %v3421
    %v3459 = vmul.f32 1.0, %v3458
    %v3460 = vrcp.pop %v3422
    %v3461 = vmul.f32 1.0, %v3460
    %v3462 = vrcp.pop %v3423
    %v3463 = vmul.f32 1.0, %v3462
    %v3464 = vrcp.pop %v3424
    %v3465 = vmul.f32 1.0, %v3464
    %v3466 = vrcp.pop %v3425
    %v3467 = vmul.f32 1.0, %v3466
    %v3468 = vrcp.pop %v3426
    %v3469 = vmul.f32 1.0, %v3468
    %v3470 = vrcp.pop %v3427
    %v3471 = vmul.f32 1.0, %v3470
    %v3472 = vrcp.pop %v3428
    %v3473 = vmul.f32 1.0, %v3472
    %v3474 = vrcp.pop %v3429
    %v3475 = vmul.f32 1.0, %v3474
    %v3476 = vrcp.pop %v3430
    %v3477 = vmul.f32 1.0, %v3476
    %v3478 = vrcp.pop %v3431
    %v3479 = vmul.f32 1.0, %v3478
    %v3480 = vrcp.pop %v3432
    %v3481 = vmul.f32 1.0, %v3480
    %v3482 = vrcp.pop %v3433
    %v3483 = vmul.f32 1.0, %v3482
    %v3484 = vrcp.pop %v3434
    %v3485 = vmul.f32 1.0, %v3484
    %v3486 = vrcp.pop %v3435
    %v3487 = vmul.f32 1.0, %v3486
    %v3488 = vrcp.pop %v3436
    %v3489 = vmul.f32 1.0, %v3488
    %v3490 = vrcp.pop %v3437
    %v3491 = vmul.f32 1.0, %v3490
    %v3492 = vrcp.pop %v3438
    %v3493 = vmul.f32 1.0, %v3492
    %v3494 = vrcp.pop %v3439
    %v3495 = vmul.f32 1.0, %v3494
    %v3496 = vrcp.pop %v3440
    %v3497 = vmul.f32 1.0, %v3496
    %v3498 = vrcp.pop %v3441
    %v3499 = vmul.f32 1.0, %v3498
    %v3500 = vrcp.pop %v3442
    %v3501 = vmul.f32 1.0, %v3500
    %v3502 = vrcp.pop %v3443
    %v3503 = vmul.f32 1.0, %v3502
    %v3504 = vrcp.pop %v3444
    %v3505 = vmul.f32 1.0, %v3504
    %v3506 = vrcp.pop %v3445
    %v3507 = vmul.f32 1.0, %v3506
    %v3508 = vrcp.pop %v3446
    %v3509 = vmul.f32 1.0, %v3508
    %v3510 = vrcp.pop %v3447
    %v3511 = vmul.f32 1.0, %v3510
    %v3512 = vadd.f32 %v2970, %v1414
    %v3513 = vadd.f32 %v2975, %v1414
    %v3514 = vadd.f32 %v2980, %v1414
    %v3515 = vadd.f32 %v2985, %v1414
    %v3516 = vadd.f32 %v2990, %v1414
    %v3517 = vadd.f32 %v2995, %v1414
    %v3518 = vadd.f32 %v3000, %v1414
    %v3519 = vadd.f32 %v3005, %v1414
    %v3520 = vadd.f32 %v3010, %v1414
    %v3521 = vadd.f32 %v3015, %v1414
    %v3522 = vadd.f32 %v3020, %v1414
    %v3523 = vadd.f32 %v3025, %v1414
    %v3524 = vadd.f32 %v3030, %v1414
    %v3525 = vadd.f32 %v3035, %v1414
    %v3526 = vadd.f32 %v3040, %v1414
    %v3527 = vadd.f32 %v3045, %v1414
    %v3528 = vadd.f32 %v3050, %v1414
    %v3529 = vadd.f32 %v3055, %v1414
    %v3530 = vadd.f32 %v3060, %v1414
    %v3531 = vadd.f32 %v3065, %v1414
    %v3532 = vadd.f32 %v3070, %v1414
    %v3533 = vadd.f32 %v3075, %v1414
    %v3534 = vadd.f32 %v3080, %v1414
    %v3535 = vadd.f32 %v3085, %v1414
    %v3536 = vadd.f32 %v3090, %v1414
    %v3537 = vadd.f32 %v3095, %v1414
    %v3538 = vadd.f32 %v3100, %v1414
    %v3539 = vadd.f32 %v3105, %v1414
    %v3540 = vadd.f32 %v3110, %v1414
    %v3541 = vadd.f32 %v3115, %v1414
    %v3542 = vadd.f32 %v3120, %v1414
    %v3543 = vadd.f32 %v3125, %v1414
    %v3544 = vadd.f32 %v2424, %v1454
    %v3545 = vadd.f32 %v2429, %v1454
    %v3546 = vadd.f32 %v2434, %v1454
    %v3547 = vadd.f32 %v2439, %v1454
    %v3548 = vadd.f32 %v2444, %v1454
    %v3549 = vadd.f32 %v2449, %v1454
    %v3550 = vadd.f32 %v2454, %v1454
    %v3551 = vadd.f32 %v2459, %v1454
    %v3552 = vadd.f32 %v2464, %v1454
    %v3553 = vadd.f32 %v2469, %v1454
    %v3554 = vadd.f32 %v2474, %v1454
    %v3555 = vadd.f32 %v2479, %v1454
    %v3556 = vadd.f32 %v2484, %v1454
    %v3557 = vadd.f32 %v2489, %v1454
    %v3558 = vadd.f32 %v2494, %v1454
    %v3559 = vadd.f32 %v2499, %v1454
    %v3560 = vadd.f32 %v2504, %v1454
    %v3561 = vadd.f32 %v2509, %v1454
    %v3562 = vadd.f32 %v2514, %v1454
    %v3563 = vadd.f32 %v2519, %v1454
    %v3564 = vadd.f32 %v2524, %v1454
    %v3565 = vadd.f32 %v2529, %v1454
    %v3566 = vadd.f32 %v2534, %v1454
    %v3567 = vadd.f32 %v2539, %v1454
    %v3568 = vadd.f32 %v2544, %v1454
    %v3569 = vadd.f32 %v2549, %v1454
    %v3570 = vadd.f32 %v2554, %v1454
    %v3571 = vadd.f32 %v2559, %v1454
    %v3572 = vadd.f32 %v2564, %v1454
    %v3573 = vadd.f32 %v2569, %v1454
    %v3574 = vadd.f32 %v2574, %v1454
    %v3575 = vadd.f32 %v2579, %v1454
    %3608 = vrot.lane.b32.xlu0 %v3544, 32
    %v3609 = vpop.permute.xlu0 %3608
    %3610 = vrot.lane.b32.xlu0 %v3545, 32
    %v3611 = vpop.permute.xlu0 %3610
    %3612 = vrot.lane.b32.xlu0 %v3546, 32
    %v3613 = vpop.permute.xlu0 %3612
    %3614 = vrot.lane.b32.xlu0 %v3547, 32
    %v3615 = vpop.permute.xlu0 %3614
    %3616 = vrot.lane.b32.xlu0 %v3548, 32
    %v3617 = vpop.permute.xlu0 %3616
    %3618 = vrot.lane.b32.xlu0 %v3549, 32
    %v3619 = vpop.permute.xlu0 %3618
    %3620 = vrot.lane.b32.xlu0 %v3550, 32
    %v3621 = vpop.permute.xlu0 %3620
    %3622 = vrot.lane.b32.xlu0 %v3551, 32
    %v3623 = vpop.permute.xlu0 %3622
    %3624 = vrot.lane.b32.xlu0 %v3552, 32
    %v3625 = vpop.permute.xlu0 %3624
    %3626 = vrot.lane.b32.xlu0 %v3553, 32
    %v3627 = vpop.permute.xlu0 %3626
    %3628 = vrot.lane.b32.xlu0 %v3554, 32
    %v3629 = vpop.permute.xlu0 %3628
    %3630 = vrot.lane.b32.xlu0 %v3555, 32
    %v3631 = vpop.permute.xlu0 %3630
    %3632 = vrot.lane.b32.xlu0 %v3556, 32
    %v3633 = vpop.permute.xlu0 %3632
    %3634 = vrot.lane.b32.xlu0 %v3557, 32
    %v3635 = vpop.permute.xlu0 %3634
    %3636 = vrot.lane.b32.xlu0 %v3558, 32
    %v3637 = vpop.permute.xlu0 %3636
    %3638 = vrot.lane.b32.xlu0 %v3559, 32
    %v3639 = vpop.permute.xlu0 %3638
    %3640 = vrot.lane.b32.xlu0 %v3560, 32
    %v3641 = vpop.permute.xlu0 %3640
    %3642 = vrot.lane.b32.xlu0 %v3561, 32
    %v3643 = vpop.permute.xlu0 %3642
    %3644 = vrot.lane.b32.xlu0 %v3562, 32
    %v3645 = vpop.permute.xlu0 %3644
    %3646 = vrot.lane.b32.xlu0 %v3563, 32
    %v3647 = vpop.permute.xlu0 %3646
    %3648 = vrot.lane.b32.xlu0 %v3564, 32
    %v3649 = vpop.permute.xlu0 %3648
    %3650 = vrot.lane.b32.xlu0 %v3565, 32
    %v3651 = vpop.permute.xlu0 %3650
    %3652 = vrot.lane.b32.xlu0 %v3566, 32
    %v3653 = vpop.permute.xlu0 %3652
    %3654 = vrot.lane.b32.xlu0 %v3567, 32
    %v3655 = vpop.permute.xlu0 %3654
    %3656 = vrot.lane.b32.xlu0 %v3568, 32
    %v3657 = vpop.permute.xlu0 %3656
    %3658 = vrot.lane.b32.xlu0 %v3569, 32
    %v3659 = vpop.permute.xlu0 %3658
    %3660 = vrot.lane.b32.xlu0 %v3570, 32
    %v3661 = vpop.permute.xlu0 %3660
    %3662 = vrot.lane.b32.xlu0 %v3571, 32
    %v3663 = vpop.permute.xlu0 %3662
    %3664 = vrot.lane.b32.xlu0 %v3572, 32
    %v3665 = vpop.permute.xlu0 %3664
    %3666 = vrot.lane.b32.xlu0 %v3573, 32
    %v3667 = vpop.permute.xlu0 %3666
    %3668 = vrot.lane.b32.xlu0 %v3574, 32
    %v3669 = vpop.permute.xlu0 %3668
    %3670 = vrot.lane.b32.xlu0 %v3575, 32
    %v3671 = vpop.permute.xlu0 %3670
    %v3704 = vmul.f32 %v3449, %v3609
    %v3705 = vmul.f32 %v3451, %v3611
    %v3706 = vmul.f32 %v3453, %v3613
    %v3707 = vmul.f32 %v3455, %v3615
    %v3708 = vmul.f32 %v3457, %v3617
    %v3709 = vmul.f32 %v3459, %v3619
    %v3710 = vmul.f32 %v3461, %v3621
    %v3711 = vmul.f32 %v3463, %v3623
    %v3712 = vmul.f32 %v3465, %v3625
    %v3713 = vmul.f32 %v3467, %v3627
    %v3714 = vmul.f32 %v3469, %v3629
    %v3715 = vmul.f32 %v3471, %v3631
    %v3716 = vmul.f32 %v3473, %v3633
    %v3717 = vmul.f32 %v3475, %v3635
    %v3718 = vmul.f32 %v3477, %v3637
    %v3719 = vmul.f32 %v3479, %v3639
    %v3720 = vmul.f32 %v3481, %v3641
    %v3721 = vmul.f32 %v3483, %v3643
    %v3722 = vmul.f32 %v3485, %v3645
    %v3723 = vmul.f32 %v3487, %v3647
    %v3724 = vmul.f32 %v3489, %v3649
    %v3725 = vmul.f32 %v3491, %v3651
    %v3726 = vmul.f32 %v3493, %v3653
    %v3727 = vmul.f32 %v3495, %v3655
    %v3728 = vmul.f32 %v3497, %v3657
    %v3729 = vmul.f32 %v3499, %v3659
    %v3730 = vmul.f32 %v3501, %v3661
    %v3731 = vmul.f32 %v3503, %v3663
    %v3732 = vmul.f32 %v3505, %v3665
    %v3733 = vmul.f32 %v3507, %v3667
    %v3734 = vmul.f32 %v3509, %v3669
    %v3735 = vmul.f32 %v3511, %v3671
    %3768 = vrot.lane.b32.xlu0 %v3704, 64
    %v3769 = vpop.permute.xlu0 %3768
    %3770 = vrot.lane.b32.xlu0 %v3705, 64
    %v3771 = vpop.permute.xlu0 %3770
    %3772 = vrot.lane.b32.xlu0 %v3706, 64
    %v3773 = vpop.permute.xlu0 %3772
    %3774 = vrot.lane.b32.xlu0 %v3707, 64
    %v3775 = vpop.permute.xlu0 %3774
    %3776 = vrot.lane.b32.xlu0 %v3708, 64
    %v3777 = vpop.permute.xlu0 %3776
    %3778 = vrot.lane.b32.xlu0 %v3709, 64
    %v3779 = vpop.permute.xlu0 %3778
    %3780 = vrot.lane.b32.xlu0 %v3710, 64
    %v3781 = vpop.permute.xlu0 %3780
    %3782 = vrot.lane.b32.xlu0 %v3711, 64
    %v3783 = vpop.permute.xlu0 %3782
    %3784 = vrot.lane.b32.xlu0 %v3712, 64
    %v3785 = vpop.permute.xlu0 %3784
    %3786 = vrot.lane.b32.xlu0 %v3713, 64
    %v3787 = vpop.permute.xlu0 %3786
    %3788 = vrot.lane.b32.xlu0 %v3714, 64
    %v3789 = vpop.permute.xlu0 %3788
    %3790 = vrot.lane.b32.xlu0 %v3715, 64
    %v3791 = vpop.permute.xlu0 %3790
    %3792 = vrot.lane.b32.xlu0 %v3716, 64
    %v3793 = vpop.permute.xlu0 %3792
    %3794 = vrot.lane.b32.xlu0 %v3717, 64
    %v3795 = vpop.permute.xlu0 %3794
    %3796 = vrot.lane.b32.xlu0 %v3718, 64
    %v3797 = vpop.permute.xlu0 %3796
    %3798 = vrot.lane.b32.xlu0 %v3719, 64
    %v3799 = vpop.permute.xlu0 %3798
    %3800 = vrot.lane.b32.xlu0 %v3720, 64
    %v3801 = vpop.permute.xlu0 %3800
    %3802 = vrot.lane.b32.xlu0 %v3721, 64
    %v3803 = vpop.permute.xlu0 %3802
    %3804 = vrot.lane.b32.xlu0 %v3722, 64
    %v3805 = vpop.permute.xlu0 %3804
    %3806 = vrot.lane.b32.xlu0 %v3723, 64
    %v3807 = vpop.permute.xlu0 %3806
    %3808 = vrot.lane.b32.xlu0 %v3724, 64
    %v3809 = vpop.permute.xlu0 %3808
    %3810 = vrot.lane.b32.xlu0 %v3725, 64
    %v3811 = vpop.permute.xlu0 %3810
    %3812 = vrot.lane.b32.xlu0 %v3726, 64
    %v3813 = vpop.permute.xlu0 %3812
    %3814 = vrot.lane.b32.xlu0 %v3727, 64
    %v3815 = vpop.permute.xlu0 %3814
    %3816 = vrot.lane.b32.xlu0 %v3728, 64
    %v3817 = vpop.permute.xlu0 %3816
    %3818 = vrot.lane.b32.xlu0 %v3729, 64
    %v3819 = vpop.permute.xlu0 %3818
    %3820 = vrot.lane.b32.xlu0 %v3730, 64
    %v3821 = vpop.permute.xlu0 %3820
    %3822 = vrot.lane.b32.xlu0 %v3731, 64
    %v3823 = vpop.permute.xlu0 %3822
    %3824 = vrot.lane.b32.xlu0 %v3732, 64
    %v3825 = vpop.permute.xlu0 %3824
    %3826 = vrot.lane.b32.xlu0 %v3733, 64
    %v3827 = vpop.permute.xlu0 %3826
    %3828 = vrot.lane.b32.xlu0 %v3734, 64
    %v3829 = vpop.permute.xlu0 %3828
    %3830 = vrot.lane.b32.xlu0 %v3735, 64
    %v3831 = vpop.permute.xlu0 %3830
    %v3864 = vadd.f32 %v3512, %v3769
    %v3865 = vadd.f32 %v3513, %v3771
    %v3866 = vadd.f32 %v3514, %v3773
    %v3867 = vadd.f32 %v3515, %v3775
    %v3868 = vadd.f32 %v3516, %v3777
    %v3869 = vadd.f32 %v3517, %v3779
    %v3870 = vadd.f32 %v3518, %v3781
    %v3871 = vadd.f32 %v3519, %v3783
    %v3872 = vadd.f32 %v3520, %v3785
    %v3873 = vadd.f32 %v3521, %v3787
    %v3874 = vadd.f32 %v3522, %v3789
    %v3875 = vadd.f32 %v3523, %v3791
    %v3876 = vadd.f32 %v3524, %v3793
    %v3877 = vadd.f32 %v3525, %v3795
    %v3878 = vadd.f32 %v3526, %v3797
    %v3879 = vadd.f32 %v3527, %v3799
    %v3880 = vadd.f32 %v3528, %v3801
    %v3881 = vadd.f32 %v3529, %v3803
    %v3882 = vadd.f32 %v3530, %v3805
    %v3883 = vadd.f32 %v3531, %v3807
    %v3884 = vadd.f32 %v3532, %v3809
    %v3885 = vadd.f32 %v3533, %v3811
    %v3886 = vadd.f32 %v3534, %v3813
    %v3887 = vadd.f32 %v3535, %v3815
    %v3888 = vadd.f32 %v3536, %v3817
    %v3889 = vadd.f32 %v3537, %v3819
    %v3890 = vadd.f32 %v3538, %v3821
    %v3891 = vadd.f32 %v3539, %v3823
    %v3892 = vadd.f32 %v3540, %v3825
    %v3893 = vadd.f32 %v3541, %v3827
    %v3894 = vadd.f32 %v3542, %v3829
    %v3895 = vadd.f32 %v3543, %v3831
    %v3896 = vtanh.pop %v3864
    %v3897 = vtanh.pop %v3865
    %v3898 = vtanh.pop %v3866
    %v3899 = vtanh.pop %v3867
    %v3900 = vtanh.pop %v3868
    %v3901 = vtanh.pop %v3869
    %v3902 = vtanh.pop %v3870
    %v3903 = vtanh.pop %v3871
    %v3904 = vtanh.pop %v3872
    %v3905 = vtanh.pop %v3873
    %v3906 = vtanh.pop %v3874
    %v3907 = vtanh.pop %v3875
    %v3908 = vtanh.pop %v3876
    %v3909 = vtanh.pop %v3877
    %v3910 = vtanh.pop %v3878
    %v3911 = vtanh.pop %v3879
    %v3912 = vtanh.pop %v3880
    %v3913 = vtanh.pop %v3881
    %v3914 = vtanh.pop %v3882
    %v3915 = vtanh.pop %v3883
    %v3916 = vtanh.pop %v3884
    %v3917 = vtanh.pop %v3885
    %v3918 = vtanh.pop %v3886
    %v3919 = vtanh.pop %v3887
    %v3920 = vtanh.pop %v3888
    %v3921 = vtanh.pop %v3889
    %v3922 = vtanh.pop %v3890
    %v3923 = vtanh.pop %v3891
    %v3924 = vtanh.pop %v3892
    %v3925 = vtanh.pop %v3893
    %v3926 = vtanh.pop %v3894
    %v3927 = vtanh.pop %v3895
    %v3928 = vsub.f32 1.0, %v3449
    %v3929 = vsub.f32 1.0, %v3451
    %v3930 = vsub.f32 1.0, %v3453
    %v3931 = vsub.f32 1.0, %v3455
    %v3932 = vsub.f32 1.0, %v3457
    %v3933 = vsub.f32 1.0, %v3459
    %v3934 = vsub.f32 1.0, %v3461
    %v3935 = vsub.f32 1.0, %v3463
    %v3936 = vsub.f32 1.0, %v3465
    %v3937 = vsub.f32 1.0, %v3467
    %v3938 = vsub.f32 1.0, %v3469
    %v3939 = vsub.f32 1.0, %v3471
    %v3940 = vsub.f32 1.0, %v3473
    %v3941 = vsub.f32 1.0, %v3475
    %v3942 = vsub.f32 1.0, %v3477
    %v3943 = vsub.f32 1.0, %v3479
    %v3944 = vsub.f32 1.0, %v3481
    %v3945 = vsub.f32 1.0, %v3483
    %v3946 = vsub.f32 1.0, %v3485
    %v3947 = vsub.f32 1.0, %v3487
    %v3948 = vsub.f32 1.0, %v3489
    %v3949 = vsub.f32 1.0, %v3491
    %v3950 = vsub.f32 1.0, %v3493
    %v3951 = vsub.f32 1.0, %v3495
    %v3952 = vsub.f32 1.0, %v3497
    %v3953 = vsub.f32 1.0, %v3499
    %v3954 = vsub.f32 1.0, %v3501
    %v3955 = vsub.f32 1.0, %v3503
    %v3956 = vsub.f32 1.0, %v3505
    %v3957 = vsub.f32 1.0, %v3507
    %v3958 = vsub.f32 1.0, %v3509
    %v3959 = vsub.f32 1.0, %v3511
    %3992 = vrot.lane.b32.xlu0 %v3896, 96
    %v3993 = vpop.permute.xlu0 %3992
    %3994 = vrot.lane.b32.xlu0 %v3897, 96
    %v3995 = vpop.permute.xlu0 %3994
    %3996 = vrot.lane.b32.xlu0 %v3898, 96
    %v3997 = vpop.permute.xlu0 %3996
    %3998 = vrot.lane.b32.xlu0 %v3899, 96
    %v3999 = vpop.permute.xlu0 %3998
    %4000 = vrot.lane.b32.xlu0 %v3900, 96
    %v4001 = vpop.permute.xlu0 %4000
    %4002 = vrot.lane.b32.xlu0 %v3901, 96
    %v4003 = vpop.permute.xlu0 %4002
    %4004 = vrot.lane.b32.xlu0 %v3902, 96
    %v4005 = vpop.permute.xlu0 %4004
    %4006 = vrot.lane.b32.xlu0 %v3903, 96
    %v4007 = vpop.permute.xlu0 %4006
    %4008 = vrot.lane.b32.xlu0 %v3904, 96
    %v4009 = vpop.permute.xlu0 %4008
    %4010 = vrot.lane.b32.xlu0 %v3905, 96
    %v4011 = vpop.permute.xlu0 %4010
    %4012 = vrot.lane.b32.xlu0 %v3906, 96
    %v4013 = vpop.permute.xlu0 %4012
    %4014 = vrot.lane.b32.xlu0 %v3907, 96
    %v4015 = vpop.permute.xlu0 %4014
    %4016 = vrot.lane.b32.xlu0 %v3908, 96
    %v4017 = vpop.permute.xlu0 %4016
    %4018 = vrot.lane.b32.xlu0 %v3909, 96
    %v4019 = vpop.permute.xlu0 %4018
    %4020 = vrot.lane.b32.xlu0 %v3910, 96
    %v4021 = vpop.permute.xlu0 %4020
    %4022 = vrot.lane.b32.xlu0 %v3911, 96
    %v4023 = vpop.permute.xlu0 %4022
    %4024 = vrot.lane.b32.xlu0 %v3912, 96
    %v4025 = vpop.permute.xlu0 %4024
    %4026 = vrot.lane.b32.xlu0 %v3913, 96
    %v4027 = vpop.permute.xlu0 %4026
    %4028 = vrot.lane.b32.xlu0 %v3914, 96
    %v4029 = vpop.permute.xlu0 %4028
    %4030 = vrot.lane.b32.xlu0 %v3915, 96
    %v4031 = vpop.permute.xlu0 %4030
    %4032 = vrot.lane.b32.xlu0 %v3916, 96
    %v4033 = vpop.permute.xlu0 %4032
    %4034 = vrot.lane.b32.xlu0 %v3917, 96
    %v4035 = vpop.permute.xlu0 %4034
    %4036 = vrot.lane.b32.xlu0 %v3918, 96
    %v4037 = vpop.permute.xlu0 %4036
    %4038 = vrot.lane.b32.xlu0 %v3919, 96
    %v4039 = vpop.permute.xlu0 %4038
    %4040 = vrot.lane.b32.xlu0 %v3920, 96
    %v4041 = vpop.permute.xlu0 %4040
    %4042 = vrot.lane.b32.xlu0 %v3921, 96
    %v4043 = vpop.permute.xlu0 %4042
    %4044 = vrot.lane.b32.xlu0 %v3922, 96
    %v4045 = vpop.permute.xlu0 %4044
    %4046 = vrot.lane.b32.xlu0 %v3923, 96
    %v4047 = vpop.permute.xlu0 %4046
    %4048 = vrot.lane.b32.xlu0 %v3924, 96
    %v4049 = vpop.permute.xlu0 %4048
    %4050 = vrot.lane.b32.xlu0 %v3925, 96
    %v4051 = vpop.permute.xlu0 %4050
    %4052 = vrot.lane.b32.xlu0 %v3926, 96
    %v4053 = vpop.permute.xlu0 %4052
    %4054 = vrot.lane.b32.xlu0 %v3927, 96
    %v4055 = vpop.permute.xlu0 %4054
    %v4088 = vmul.f32 %v3928, %v3993
    %v4089 = vmul.f32 %v3929, %v3995
    %v4090 = vmul.f32 %v3930, %v3997
    %v4091 = vmul.f32 %v3931, %v3999
    %v4092 = vmul.f32 %v3932, %v4001
    %v4093 = vmul.f32 %v3933, %v4003
    %v4094 = vmul.f32 %v3934, %v4005
    %v4095 = vmul.f32 %v3935, %v4007
    %v4096 = vmul.f32 %v3936, %v4009
    %v4097 = vmul.f32 %v3937, %v4011
    %v4098 = vmul.f32 %v3938, %v4013
    %v4099 = vmul.f32 %v3939, %v4015
    %v4100 = vmul.f32 %v3940, %v4017
    %v4101 = vmul.f32 %v3941, %v4019
    %v4102 = vmul.f32 %v3942, %v4021
    %v4103 = vmul.f32 %v3943, %v4023
    %v4104 = vmul.f32 %v3944, %v4025
    %v4105 = vmul.f32 %v3945, %v4027
    %v4106 = vmul.f32 %v3946, %v4029
    %v4107 = vmul.f32 %v3947, %v4031
    %v4108 = vmul.f32 %v3948, %v4033
    %v4109 = vmul.f32 %v3949, %v4035
    %v4110 = vmul.f32 %v3950, %v4037
    %v4111 = vmul.f32 %v3951, %v4039
    %v4112 = vmul.f32 %v3952, %v4041
    %v4113 = vmul.f32 %v3953, %v4043
    %v4114 = vmul.f32 %v3954, %v4045
    %v4115 = vmul.f32 %v3955, %v4047
    %v4116 = vmul.f32 %v3956, %v4049
    %v4117 = vmul.f32 %v3957, %v4051
    %v4118 = vmul.f32 %v3958, %v4053
    %v4119 = vmul.f32 %v3959, %v4055
    %v4120 = vmul.f32 %v3449, %v2160
    %v4121 = vmul.f32 %v3451, %v2161
    %v4122 = vmul.f32 %v3453, %v2162
    %v4123 = vmul.f32 %v3455, %v2163
    %v4124 = vmul.f32 %v3457, %v2164
    %v4125 = vmul.f32 %v3459, %v2165
    %v4126 = vmul.f32 %v3461, %v2166
    %v4127 = vmul.f32 %v3463, %v2167
    %v4128 = vmul.f32 %v3465, %v2168
    %v4129 = vmul.f32 %v3467, %v2169
    %v4130 = vmul.f32 %v3469, %v2170
    %v4131 = vmul.f32 %v3471, %v2171
    %v4132 = vmul.f32 %v3473, %v2172
    %v4133 = vmul.f32 %v3475, %v2173
    %v4134 = vmul.f32 %v3477, %v2174
    %v4135 = vmul.f32 %v3479, %v2175
    %v4136 = vmul.f32 %v3481, %v2176
    %v4137 = vmul.f32 %v3483, %v2177
    %v4138 = vmul.f32 %v3485, %v2178
    %v4139 = vmul.f32 %v3487, %v2179
    %v4140 = vmul.f32 %v3489, %v2180
    %v4141 = vmul.f32 %v3491, %v2181
    %v4142 = vmul.f32 %v3493, %v2182
    %v4143 = vmul.f32 %v3495, %v2183
    %v4144 = vmul.f32 %v3497, %v2184
    %v4145 = vmul.f32 %v3499, %v2185
    %v4146 = vmul.f32 %v3501, %v2186
    %v4147 = vmul.f32 %v3503, %v2187
    %v4148 = vmul.f32 %v3505, %v2188
    %v4149 = vmul.f32 %v3507, %v2189
    %v4150 = vmul.f32 %v3509, %v2190
    %v4151 = vmul.f32 %v3511, %v2191
    %v4152 = vadd.f32 %v4088, %v4120
    %v4153 = vadd.f32 %v4089, %v4121
    %v4154 = vadd.f32 %v4090, %v4122
    %v4155 = vadd.f32 %v4091, %v4123
    %v4156 = vadd.f32 %v4092, %v4124
    %v4157 = vadd.f32 %v4093, %v4125
    %v4158 = vadd.f32 %v4094, %v4126
    %v4159 = vadd.f32 %v4095, %v4127
    %v4160 = vadd.f32 %v4096, %v4128
    %v4161 = vadd.f32 %v4097, %v4129
    %v4162 = vadd.f32 %v4098, %v4130
    %v4163 = vadd.f32 %v4099, %v4131
    %v4164 = vadd.f32 %v4100, %v4132
    %v4165 = vadd.f32 %v4101, %v4133
    %v4166 = vadd.f32 %v4102, %v4134
    %v4167 = vadd.f32 %v4103, %v4135
    %v4168 = vadd.f32 %v4104, %v4136
    %v4169 = vadd.f32 %v4105, %v4137
    %v4170 = vadd.f32 %v4106, %v4138
    %v4171 = vadd.f32 %v4107, %v4139
    %v4172 = vadd.f32 %v4108, %v4140
    %v4173 = vadd.f32 %v4109, %v4141
    %v4174 = vadd.f32 %v4110, %v4142
    %v4175 = vadd.f32 %v4111, %v4143
    %v4176 = vadd.f32 %v4112, %v4144
    %v4177 = vadd.f32 %v4113, %v4145
    %v4178 = vadd.f32 %v4114, %v4146
    %v4179 = vadd.f32 %v4115, %v4147
    %v4180 = vadd.f32 %v4116, %v4148
    %v4181 = vadd.f32 %v4117, %v4149
    %v4182 = vadd.f32 %v4118, %v4150
    %v4183 = vadd.f32 %v4119, %v4151
    %v4184 = vld [vmem:[%s2] sm:$0xff]
    %v4185 = vld [vmem:[%s2 + $0x8] sm:$0xff]
    %v4186 = vld [vmem:[%s2 + $0x10] sm:$0xff]
    %v4187 = vld [vmem:[%s2 + $0x18] sm:$0xff]
    %v4188 = vld [vmem:[%s2 + $0x20] sm:$0xff]
    %v4189 = vld [vmem:[%s2 + $0x28] sm:$0xff]
    %v4190 = vld [vmem:[%s2 + $0x30] sm:$0xff]
    %v4191 = vld [vmem:[%s2 + $0x38] sm:$0xff]
    %v4192 = vld [vmem:[%s2 + $0x40] sm:$0xff]
    %v4193 = vld [vmem:[%s2 + $0x48] sm:$0xff]
    %v4194 = vld [vmem:[%s2 + $0x50] sm:$0xff]
    %v4195 = vld [vmem:[%s2 + $0x58] sm:$0xff]
    %v4196 = vld [vmem:[%s2 + $0x60] sm:$0xff]
    %v4197 = vld [vmem:[%s2 + $0x68] sm:$0xff]
    %v4198 = vld [vmem:[%s2 + $0x70] sm:$0xff]
    %v4199 = vld [vmem:[%s2 + $0x78] sm:$0xff]
    %v4200 = vld [vmem:[%s2 + $0x80] sm:$0xff]
    %v4201 = vld [vmem:[%s2 + $0x88] sm:$0xff]
    %v4202 = vld [vmem:[%s2 + $0x90] sm:$0xff]
    %v4203 = vld [vmem:[%s2 + $0x98] sm:$0xff]
    %v4204 = vld [vmem:[%s2 + $0xa0] sm:$0xff]
    %v4205 = vld [vmem:[%s2 + $0xa8] sm:$0xff]
    %v4206 = vld [vmem:[%s2 + $0xb0] sm:$0xff]
    %v4207 = vld [vmem:[%s2 + $0xb8] sm:$0xff]
    %v4208 = vld [vmem:[%s2 + $0xc0] sm:$0xff]
    %v4209 = vld [vmem:[%s2 + $0xc8] sm:$0xff]
    %v4210 = vld [vmem:[%s2 + $0xd0] sm:$0xff]
    %v4211 = vld [vmem:[%s2 + $0xd8] sm:$0xff]
    %v4212 = vld [vmem:[%s2 + $0xe0] sm:$0xff]
    %v4213 = vld [vmem:[%s2 + $0xe8] sm:$0xff]
    %v4214 = vld [vmem:[%s2 + $0xf0] sm:$0xff]
    %v4215 = vld [vmem:[%s2 + $0xf8] sm:$0xff]
    %v4216 = vlaneseq
    %v4217 = vand.u32 %v4216, 127
    %v4218 = vadd.s32 %v4217, 128
    %4219 = vset.pattern.permute.xlu0 0
    %4220 = vperm.xlu0 %4219, %v4184
    %v4221 = vpop.permute.xlu0 %4220
    %4222 = vset.pattern.permute.xlu0 0
    %4223 = vperm.xlu0 %4222, %v4185
    %v4224 = vpop.permute.xlu0 %4223
    %4225 = vset.pattern.permute.xlu0 0
    %4226 = vperm.xlu0 %4225, %v4186
    %v4227 = vpop.permute.xlu0 %4226
    %4228 = vset.pattern.permute.xlu0 0
    %4229 = vperm.xlu0 %4228, %v4187
    %v4230 = vpop.permute.xlu0 %4229
    %4231 = vset.pattern.permute.xlu0 0
    %4232 = vperm.xlu0 %4231, %v4188
    %v4233 = vpop.permute.xlu0 %4232
    %4234 = vset.pattern.permute.xlu0 0
    %4235 = vperm.xlu0 %4234, %v4189
    %v4236 = vpop.permute.xlu0 %4235
    %4237 = vset.pattern.permute.xlu0 0
    %4238 = vperm.xlu0 %4237, %v4190
    %v4239 = vpop.permute.xlu0 %4238
    %4240 = vset.pattern.permute.xlu0 0
    %4241 = vperm.xlu0 %4240, %v4191
    %v4242 = vpop.permute.xlu0 %4241
    %4243 = vset.pattern.permute.xlu0 0
    %4244 = vperm.xlu0 %4243, %v4192
    %v4245 = vpop.permute.xlu0 %4244
    %4246 = vset.pattern.permute.xlu0 0
    %4247 = vperm.xlu0 %4246, %v4193
    %v4248 = vpop.permute.xlu0 %4247
    %4249 = vset.pattern.permute.xlu0 0
    %4250 = vperm.xlu0 %4249, %v4194
    %v4251 = vpop.permute.xlu0 %4250
    %4252 = vset.pattern.permute.xlu0 0
    %4253 = vperm.xlu0 %4252, %v4195
    %v4254 = vpop.permute.xlu0 %4253
    %4255 = vset.pattern.permute.xlu0 0
    %4256 = vperm.xlu0 %4255, %v4196
    %v4257 = vpop.permute.xlu0 %4256
    %4258 = vset.pattern.permute.xlu0 0
    %4259 = vperm.xlu0 %4258, %v4197
    %v4260 = vpop.permute.xlu0 %4259
    %4261 = vset.pattern.permute.xlu0 0
    %4262 = vperm.xlu0 %4261, %v4198
    %v4263 = vpop.permute.xlu0 %4262
    %4264 = vset.pattern.permute.xlu0 0
    %4265 = vperm.xlu0 %4264, %v4199
    %v4266 = vpop.permute.xlu0 %4265
    %4267 = vset.pattern.permute.xlu0 0
    %4268 = vperm.xlu0 %4267, %v4200
    %v4269 = vpop.permute.xlu0 %4268
    %4270 = vset.pattern.permute.xlu0 0
    %4271 = vperm.xlu0 %4270, %v4201
    %v4272 = vpop.permute.xlu0 %4271
    %4273 = vset.pattern.permute.xlu0 0
    %4274 = vperm.xlu0 %4273, %v4202
    %v4275 = vpop.permute.xlu0 %4274
    %4276 = vset.pattern.permute.xlu0 0
    %4277 = vperm.xlu0 %4276, %v4203
    %v4278 = vpop.permute.xlu0 %4277
    %4279 = vset.pattern.permute.xlu0 0
    %4280 = vperm.xlu0 %4279, %v4204
    %v4281 = vpop.permute.xlu0 %4280
    %4282 = vset.pattern.permute.xlu0 0
    %4283 = vperm.xlu0 %4282, %v4205
    %v4284 = vpop.permute.xlu0 %4283
    %4285 = vset.pattern.permute.xlu0 0
    %4286 = vperm.xlu0 %4285, %v4206
    %v4287 = vpop.permute.xlu0 %4286
    %4288 = vset.pattern.permute.xlu0 0
    %4289 = vperm.xlu0 %4288, %v4207
    %v4290 = vpop.permute.xlu0 %4289
    %4291 = vset.pattern.permute.xlu0 0
    %4292 = vperm.xlu0 %4291, %v4208
    %v4293 = vpop.permute.xlu0 %4292
    %4294 = vset.pattern.permute.xlu0 0
    %4295 = vperm.xlu0 %4294, %v4209
    %v4296 = vpop.permute.xlu0 %4295
    %4297 = vset.pattern.permute.xlu0 0
    %4298 = vperm.xlu0 %4297, %v4210
    %v4299 = vpop.permute.xlu0 %4298
    %4300 = vset.pattern.permute.xlu0 0
    %4301 = vperm.xlu0 %4300, %v4211
    %v4302 = vpop.permute.xlu0 %4301
    %4303 = vset.pattern.permute.xlu0 0
    %4304 = vperm.xlu0 %4303, %v4212
    %v4305 = vpop.permute.xlu0 %4304
    %4306 = vset.pattern.permute.xlu0 0
    %4307 = vperm.xlu0 %4306, %v4213
    %v4308 = vpop.permute.xlu0 %4307
    %4309 = vset.pattern.permute.xlu0 0
    %4310 = vperm.xlu0 %4309, %v4214
    %v4311 = vpop.permute.xlu0 %4310
    %4312 = vset.pattern.permute.xlu0 0
    %4313 = vperm.xlu0 %4312, %v4215
    %v4314 = vpop.permute.xlu0 %4313
    %vm4315 = vcmp.eq.s32.totalorder %v4221, %v4217
    %vm4316 = vcmp.eq.s32.totalorder %v4221, %v4218
    %vm4317 = vcmp.eq.s32.totalorder %v4224, %v4217
    %vm4318 = vcmp.eq.s32.totalorder %v4224, %v4218
    %vm4319 = vcmp.eq.s32.totalorder %v4227, %v4217
    %vm4320 = vcmp.eq.s32.totalorder %v4227, %v4218
    %vm4321 = vcmp.eq.s32.totalorder %v4230, %v4217
    %vm4322 = vcmp.eq.s32.totalorder %v4230, %v4218
    %vm4323 = vcmp.eq.s32.totalorder %v4233, %v4217
    %vm4324 = vcmp.eq.s32.totalorder %v4233, %v4218
    %vm4325 = vcmp.eq.s32.totalorder %v4236, %v4217
    %vm4326 = vcmp.eq.s32.totalorder %v4236, %v4218
    %vm4327 = vcmp.eq.s32.totalorder %v4239, %v4217
    %vm4328 = vcmp.eq.s32.totalorder %v4239, %v4218
    %vm4329 = vcmp.eq.s32.totalorder %v4242, %v4217
    %vm4330 = vcmp.eq.s32.totalorder %v4242, %v4218
    %vm4331 = vcmp.eq.s32.totalorder %v4245, %v4217
    %vm4332 = vcmp.eq.s32.totalorder %v4245, %v4218
    %vm4333 = vcmp.eq.s32.totalorder %v4248, %v4217
    %vm4334 = vcmp.eq.s32.totalorder %v4248, %v4218
    %vm4335 = vcmp.eq.s32.totalorder %v4251, %v4217
    %vm4336 = vcmp.eq.s32.totalorder %v4251, %v4218
    %vm4337 = vcmp.eq.s32.totalorder %v4254, %v4217
    %vm4338 = vcmp.eq.s32.totalorder %v4254, %v4218
    %vm4339 = vcmp.eq.s32.totalorder %v4257, %v4217
    %vm4340 = vcmp.eq.s32.totalorder %v4257, %v4218
    %vm4341 = vcmp.eq.s32.totalorder %v4260, %v4217
    %vm4342 = vcmp.eq.s32.totalorder %v4260, %v4218
    %vm4343 = vcmp.eq.s32.totalorder %v4263, %v4217
    %vm4344 = vcmp.eq.s32.totalorder %v4263, %v4218
    %vm4345 = vcmp.eq.s32.totalorder %v4266, %v4217
    %vm4346 = vcmp.eq.s32.totalorder %v4266, %v4218
    %vm4347 = vcmp.eq.s32.totalorder %v4269, %v4217
    %vm4348 = vcmp.eq.s32.totalorder %v4269, %v4218
    %vm4349 = vcmp.eq.s32.totalorder %v4272, %v4217
    %vm4350 = vcmp.eq.s32.totalorder %v4272, %v4218
    %vm4351 = vcmp.eq.s32.totalorder %v4275, %v4217
    %vm4352 = vcmp.eq.s32.totalorder %v4275, %v4218
    %vm4353 = vcmp.eq.s32.totalorder %v4278, %v4217
    %vm4354 = vcmp.eq.s32.totalorder %v4278, %v4218
    %vm4355 = vcmp.eq.s32.totalorder %v4281, %v4217
    %vm4356 = vcmp.eq.s32.totalorder %v4281, %v4218
    %vm4357 = vcmp.eq.s32.totalorder %v4284, %v4217
    %vm4358 = vcmp.eq.s32.totalorder %v4284, %v4218
    %vm4359 = vcmp.eq.s32.totalorder %v4287, %v4217
    %vm4360 = vcmp.eq.s32.totalorder %v4287, %v4218
    %vm4361 = vcmp.eq.s32.totalorder %v4290, %v4217
    %vm4362 = vcmp.eq.s32.totalorder %v4290, %v4218
    %vm4363 = vcmp.eq.s32.totalorder %v4293, %v4217
    %vm4364 = vcmp.eq.s32.totalorder %v4293, %v4218
    %vm4365 = vcmp.eq.s32.totalorder %v4296, %v4217
    %vm4366 = vcmp.eq.s32.totalorder %v4296, %v4218
    %vm4367 = vcmp.eq.s32.totalorder %v4299, %v4217
    %vm4368 = vcmp.eq.s32.totalorder %v4299, %v4218
    %vm4369 = vcmp.eq.s32.totalorder %v4302, %v4217
    %vm4370 = vcmp.eq.s32.totalorder %v4302, %v4218
    %vm4371 = vcmp.eq.s32.totalorder %v4305, %v4217
    %vm4372 = vcmp.eq.s32.totalorder %v4305, %v4218
    %vm4373 = vcmp.eq.s32.totalorder %v4308, %v4217
    %vm4374 = vcmp.eq.s32.totalorder %v4308, %v4218
    %vm4375 = vcmp.eq.s32.totalorder %v4311, %v4217
    %vm4376 = vcmp.eq.s32.totalorder %v4311, %v4218
    %vm4377 = vcmp.eq.s32.totalorder %v4314, %v4217
    %vm4378 = vcmp.eq.s32.totalorder %v4314, %v4218
    %v4379 = vsel %vm4315, 1, 0
    %v4380 = vsel %vm4316, 1, 0
    %v4381 = vsel %vm4317, 1, 0
    %v4382 = vsel %vm4318, 1, 0
    %v4383 = vsel %vm4319, 1, 0
    %v4384 = vsel %vm4320, 1, 0
    %v4385 = vsel %vm4321, 1, 0
    %v4386 = vsel %vm4322, 1, 0
    %v4387 = vsel %vm4323, 1, 0
    %v4388 = vsel %vm4324, 1, 0
    %v4389 = vsel %vm4325, 1, 0
    %v4390 = vsel %vm4326, 1, 0
    %v4391 = vsel %vm4327, 1, 0
    %v4392 = vsel %vm4328, 1, 0
    %v4393 = vsel %vm4329, 1, 0
    %v4394 = vsel %vm4330, 1, 0
    %v4395 = vsel %vm4331, 1, 0
    %v4396 = vsel %vm4332, 1, 0
    %v4397 = vsel %vm4333, 1, 0
    %v4398 = vsel %vm4334, 1, 0
    %v4399 = vsel %vm4335, 1, 0
    %v4400 = vsel %vm4336, 1, 0
    %v4401 = vsel %vm4337, 1, 0
    %v4402 = vsel %vm4338, 1, 0
    %v4403 = vsel %vm4339, 1, 0
    %v4404 = vsel %vm4340, 1, 0
    %v4405 = vsel %vm4341, 1, 0
    %v4406 = vsel %vm4342, 1, 0
    %v4407 = vsel %vm4343, 1, 0
    %v4408 = vsel %vm4344, 1, 0
    %v4409 = vsel %vm4345, 1, 0
    %v4410 = vsel %vm4346, 1, 0
    %v4411 = vsel %vm4347, 1, 0
    %v4412 = vsel %vm4348, 1, 0
    %v4413 = vsel %vm4349, 1, 0
    %v4414 = vsel %vm4350, 1, 0
    %v4415 = vsel %vm4351, 1, 0
    %v4416 = vsel %vm4352, 1, 0
    %v4417 = vsel %vm4353, 1, 0
    %v4418 = vsel %vm4354, 1, 0
    %v4419 = vsel %vm4355, 1, 0
    %v4420 = vsel %vm4356, 1, 0
    %v4421 = vsel %vm4357, 1, 0
    %v4422 = vsel %vm4358, 1, 0
    %v4423 = vsel %vm4359, 1, 0
    %v4424 = vsel %vm4360, 1, 0
    %v4425 = vsel %vm4361, 1, 0
    %v4426 = vsel %vm4362, 1, 0
    %v4427 = vsel %vm4363, 1, 0
    %v4428 = vsel %vm4364, 1, 0
    %v4429 = vsel %vm4365, 1, 0
    %v4430 = vsel %vm4366, 1, 0
    %v4431 = vsel %vm4367, 1, 0
    %v4432 = vsel %vm4368, 1, 0
    %v4433 = vsel %vm4369, 1, 0
    %v4434 = vsel %vm4370, 1, 0
    %v4435 = vsel %vm4371, 1, 0
    %v4436 = vsel %vm4372, 1, 0
    %v4437 = vsel %vm4373, 1, 0
    %v4438 = vsel %vm4374, 1, 0
    %v4439 = vsel %vm4375, 1, 0
    %v4440 = vsel %vm4376, 1, 0
    %v4441 = vsel %vm4377, 1, 0
    %v4442 = vsel %vm4378, 1, 0
    %v4443 = vcvt.s32.f32 %v4379
    %v4444 = vcvt.s32.f32 %v4380
    %v4445 = vcvt.s32.f32 %v4381
    %v4446 = vcvt.s32.f32 %v4382
    %v4447 = vcvt.s32.f32 %v4383
    %v4448 = vcvt.s32.f32 %v4384
    %v4449 = vcvt.s32.f32 %v4385
    %v4450 = vcvt.s32.f32 %v4386
    %v4451 = vcvt.s32.f32 %v4387
    %v4452 = vcvt.s32.f32 %v4388
    %v4453 = vcvt.s32.f32 %v4389
    %v4454 = vcvt.s32.f32 %v4390
    %v4455 = vcvt.s32.f32 %v4391
    %v4456 = vcvt.s32.f32 %v4392
    %v4457 = vcvt.s32.f32 %v4393
    %v4458 = vcvt.s32.f32 %v4394
    %v4459 = vcvt.s32.f32 %v4395
    %v4460 = vcvt.s32.f32 %v4396
    %v4461 = vcvt.s32.f32 %v4397
    %v4462 = vcvt.s32.f32 %v4398
    %v4463 = vcvt.s32.f32 %v4399
    %v4464 = vcvt.s32.f32 %v4400
    %v4465 = vcvt.s32.f32 %v4401
    %v4466 = vcvt.s32.f32 %v4402
    %v4467 = vcvt.s32.f32 %v4403
    %v4468 = vcvt.s32.f32 %v4404
    %v4469 = vcvt.s32.f32 %v4405
    %v4470 = vcvt.s32.f32 %v4406
    %v4471 = vcvt.s32.f32 %v4407
    %v4472 = vcvt.s32.f32 %v4408
    %v4473 = vcvt.s32.f32 %v4409
    %v4474 = vcvt.s32.f32 %v4410
    %v4475 = vcvt.s32.f32 %v4411
    %v4476 = vcvt.s32.f32 %v4412
    %v4477 = vcvt.s32.f32 %v4413
    %v4478 = vcvt.s32.f32 %v4414
    %v4479 = vcvt.s32.f32 %v4415
    %v4480 = vcvt.s32.f32 %v4416
    %v4481 = vcvt.s32.f32 %v4417
    %v4482 = vcvt.s32.f32 %v4418
    %v4483 = vcvt.s32.f32 %v4419
    %v4484 = vcvt.s32.f32 %v4420
    %v4485 = vcvt.s32.f32 %v4421
    %v4486 = vcvt.s32.f32 %v4422
    %v4487 = vcvt.s32.f32 %v4423
    %v4488 = vcvt.s32.f32 %v4424
    %v4489 = vcvt.s32.f32 %v4425
    %v4490 = vcvt.s32.f32 %v4426
    %v4491 = vcvt.s32.f32 %v4427
    %v4492 = vcvt.s32.f32 %v4428
    %v4493 = vcvt.s32.f32 %v4429
    %v4494 = vcvt.s32.f32 %v4430
    %v4495 = vcvt.s32.f32 %v4431
    %v4496 = vcvt.s32.f32 %v4432
    %v4497 = vcvt.s32.f32 %v4433
    %v4498 = vcvt.s32.f32 %v4434
    %v4499 = vcvt.s32.f32 %v4435
    %v4500 = vcvt.s32.f32 %v4436
    %v4501 = vcvt.s32.f32 %v4437
    %v4502 = vcvt.s32.f32 %v4438
    %v4503 = vcvt.s32.f32 %v4439
    %v4504 = vcvt.s32.f32 %v4440
    %v4505 = vcvt.s32.f32 %v4441
    %v4506 = vcvt.s32.f32 %v4442
    %4539 = vrot.lane.b32.xlu0 %v4152, 96
    %v4540 = vpop.permute.xlu0 %4539
    %4541 = vrot.lane.b32.xlu0 %v4153, 96
    %v4542 = vpop.permute.xlu0 %4541
    %4543 = vrot.lane.b32.xlu0 %v4154, 96
    %v4544 = vpop.permute.xlu0 %4543
    %4545 = vrot.lane.b32.xlu0 %v4155, 96
    %v4546 = vpop.permute.xlu0 %4545
    %4547 = vrot.lane.b32.xlu0 %v4156, 96
    %v4548 = vpop.permute.xlu0 %4547
    %4549 = vrot.lane.b32.xlu0 %v4157, 96
    %v4550 = vpop.permute.xlu0 %4549
    %4551 = vrot.lane.b32.xlu0 %v4158, 96
    %v4552 = vpop.permute.xlu0 %4551
    %4553 = vrot.lane.b32.xlu0 %v4159, 96
    %v4554 = vpop.permute.xlu0 %4553
    %4555 = vrot.lane.b32.xlu0 %v4160, 96
    %v4556 = vpop.permute.xlu0 %4555
    %4557 = vrot.lane.b32.xlu0 %v4161, 96
    %v4558 = vpop.permute.xlu0 %4557
    %4559 = vrot.lane.b32.xlu0 %v4162, 96
    %v4560 = vpop.permute.xlu0 %4559
    %4561 = vrot.lane.b32.xlu0 %v4163, 96
    %v4562 = vpop.permute.xlu0 %4561
    %4563 = vrot.lane.b32.xlu0 %v4164, 96
    %v4564 = vpop.permute.xlu0 %4563
    %4565 = vrot.lane.b32.xlu0 %v4165, 96
    %v4566 = vpop.permute.xlu0 %4565
    %4567 = vrot.lane.b32.xlu0 %v4166, 96
    %v4568 = vpop.permute.xlu0 %4567
    %4569 = vrot.lane.b32.xlu0 %v4167, 96
    %v4570 = vpop.permute.xlu0 %4569
    %4571 = vrot.lane.b32.xlu0 %v4168, 96
    %v4572 = vpop.permute.xlu0 %4571
    %4573 = vrot.lane.b32.xlu0 %v4169, 96
    %v4574 = vpop.permute.xlu0 %4573
    %4575 = vrot.lane.b32.xlu0 %v4170, 96
    %v4576 = vpop.permute.xlu0 %4575
    %4577 = vrot.lane.b32.xlu0 %v4171, 96
    %v4578 = vpop.permute.xlu0 %4577
    %4579 = vrot.lane.b32.xlu0 %v4172, 96
    %v4580 = vpop.permute.xlu0 %4579
    %4581 = vrot.lane.b32.xlu0 %v4173, 96
    %v4582 = vpop.permute.xlu0 %4581
    %4583 = vrot.lane.b32.xlu0 %v4174, 96
    %v4584 = vpop.permute.xlu0 %4583
    %4585 = vrot.lane.b32.xlu0 %v4175, 96
    %v4586 = vpop.permute.xlu0 %4585
    %4587 = vrot.lane.b32.xlu0 %v4176, 96
    %v4588 = vpop.permute.xlu0 %4587
    %4589 = vrot.lane.b32.xlu0 %v4177, 96
    %v4590 = vpop.permute.xlu0 %4589
    %4591 = vrot.lane.b32.xlu0 %v4178, 96
    %v4592 = vpop.permute.xlu0 %4591
    %4593 = vrot.lane.b32.xlu0 %v4179, 96
    %v4594 = vpop.permute.xlu0 %4593
    %4595 = vrot.lane.b32.xlu0 %v4180, 96
    %v4596 = vpop.permute.xlu0 %4595
    %4597 = vrot.lane.b32.xlu0 %v4181, 96
    %v4598 = vpop.permute.xlu0 %4597
    %4599 = vrot.lane.b32.xlu0 %v4182, 96
    %v4600 = vpop.permute.xlu0 %4599
    %4601 = vrot.lane.b32.xlu0 %v4183, 96
    %v4602 = vpop.permute.xlu0 %4601
    %4635 = vmatprep.subr.mxu0 0.0
    %4636 = vmatpush1.msra.mxu0 %v4540
    %4637 = vmatprep.subr.mxu0 0.0
    %4638 = vmatpush1.msra.mxu0 %v4542
    %4639 = vmatprep.subr.mxu0 0.0
    %4640 = vmatpush1.msra.mxu0 %v4544
    %4641 = vmatprep.subr.mxu0 0.0
    %4642 = vmatpush1.msra.mxu0 %v4546
    %4643 = vmatprep.subr.mxu0 0.0
    %4644 = vmatpush1.msra.mxu0 %v4548
    %4645 = vmatprep.subr.mxu0 0.0
    %4646 = vmatpush1.msra.mxu0 %v4550
    %4647 = vmatprep.subr.mxu0 0.0
    %4648 = vmatpush1.msra.mxu0 %v4552
    %4649 = vmatprep.subr.mxu0 0.0
    %4650 = vmatpush1.msra.mxu0 %v4554
    %4651 = vmatprep.subr.mxu0 0.0
    %4652 = vmatpush1.msra.mxu0 %v4556
    %4653 = vmatprep.subr.mxu0 0.0
    %4654 = vmatpush1.msra.mxu0 %v4558
    %4655 = vmatprep.subr.mxu0 0.0
    %4656 = vmatpush1.msra.mxu0 %v4560
    %4657 = vmatprep.subr.mxu0 0.0
    %4658 = vmatpush1.msra.mxu0 %v4562
    %4659 = vmatprep.subr.mxu0 0.0
    %4660 = vmatpush1.msra.mxu0 %v4564
    %4661 = vmatprep.subr.mxu0 0.0
    %4662 = vmatpush1.msra.mxu0 %v4566
    %4663 = vmatprep.subr.mxu0 0.0
    %4664 = vmatpush1.msra.mxu0 %v4568
    %4665 = vmatprep.subr.mxu0 0.0
    %4666 = vmatpush1.msra.mxu0 %v4570
    %4667 = vmatprep.subr.mxu0 0.0
    %4668 = vmatpush1.msra.mxu0 %v4572
    %4669 = vmatprep.subr.mxu0 0.0
    %4670 = vmatpush1.msra.mxu0 %v4574
    %4671 = vmatprep.subr.mxu0 0.0
    %4672 = vmatpush1.msra.mxu0 %v4576
    %4673 = vmatprep.subr.mxu0 0.0
    %4674 = vmatpush1.msra.mxu0 %v4578
    %4675 = vmatprep.subr.mxu0 0.0
    %4676 = vmatpush1.msra.mxu0 %v4580
    %4677 = vmatprep.subr.mxu0 0.0
    %4678 = vmatpush1.msra.mxu0 %v4582
    %4679 = vmatprep.subr.mxu0 0.0
    %4680 = vmatpush1.msra.mxu0 %v4584
    %4681 = vmatprep.subr.mxu0 0.0
    %4682 = vmatpush1.msra.mxu0 %v4586
    %4683 = vmatprep.subr.mxu0 0.0
    %4684 = vmatpush1.msra.mxu0 %v4588
    %4685 = vmatprep.subr.mxu0 0.0
    %4686 = vmatpush1.msra.mxu0 %v4590
    %4687 = vmatprep.subr.mxu0 0.0
    %4688 = vmatpush1.msra.mxu0 %v4592
    %4689 = vmatprep.subr.mxu0 0.0
    %4690 = vmatpush1.msra.mxu0 %v4594
    %4691 = vmatprep.subr.mxu0 0.0
    %4692 = vmatpush1.msra.mxu0 %v4596
    %4693 = vmatprep.subr.mxu0 0.0
    %4694 = vmatpush1.msra.mxu0 %v4598
    %4695 = vmatprep.subr.mxu0 0.0
    %4696 = vmatpush1.msra.mxu0 %v4600
    %4697 = vmatprep.subr.mxu0 0.0
    %4698 = vmatpush1.msra.mxu0 %v4602
    %4699 = vmatprep.mubr.f32.mxu0 %v4444
    %4700 = vmatmul.mubr.f32.gmra.mrb[0].mxu0 %v4443
    %v4701 = vpop.f32.mrb[0].mxu0
    %v4702 = vadd.f32 0.0, %v4701
    %v4703 = vpop.f32.mrb[0].mxu0
    %4704 = vmatprep.mubr.f32.mxu0 %v4446
    %4705 = vmatmul.mubr.f32.gmra.mrb[0].mxu0 %v4445
    %v4706 = vpop.f32.mrb[0].mxu0
    %v4707 = vadd.f32 0.0, %v4706
    %v4708 = vpop.f32.mrb[0].mxu0
    %4709 = vmatprep.mubr.f32.mxu0 %v4448
    %4710 = vmatmul.mubr.f32.gmra.mrb[0].mxu0 %v4447
    %v4711 = vpop.f32.mrb[0].mxu0
    %v4712 = vadd.f32 0.0, %v4711
    %v4713 = vpop.f32.mrb[0].mxu0
    %4714 = vmatprep.mubr.f32.mxu0 %v4450
    %4715 = vmatmul.mubr.f32.gmra.mrb[0].mxu0 %v4449
    %v4716 = vpop.f32.mrb[0].mxu0
    %v4717 = vadd.f32 0.0, %v4716
    %v4718 = vpop.f32.mrb[0].mxu0
    %4719 = vmatprep.mubr.f32.mxu0 %v4452
    %4720 = vmatmul.mubr.f32.gmra.mrb[0].mxu0 %v4451
    %v4721 = vpop.f32.mrb[0].mxu0
    %v4722 = vadd.f32 0.0, %v4721
    %v4723 = vpop.f32.mrb[0].mxu0
    %4724 = vmatprep.mubr.f32.mxu0 %v4454
    %4725 = vmatmul.mubr.f32.gmra.mrb[0].mxu0 %v4453
    %v4726 = vpop.f32.mrb[0].mxu0
    %v4727 = vadd.f32 0.0, %v4726
    %v4728 = vpop.f32.mrb[0].mxu0
    %4729 = vmatprep.mubr.f32.mxu0 %v4456
    %4730 = vmatmul.mubr.f32.gmra.mrb[0].mxu0 %v4455
    %v4731 = vpop.f32.mrb[0].mxu0
    %v4732 = vadd.f32 0.0, %v4731
    %v4733 = vpop.f32.mrb[0].mxu0
    %4734 = vmatprep.mubr.f32.mxu0 %v4458
    %4735 = vmatmul.mubr.f32.gmra.mrb[0].mxu0 %v4457
    %v4736 = vpop.f32.mrb[0].mxu0
    %v4737 = vadd.f32 0.0, %v4736
    %v4738 = vpop.f32.mrb[0].mxu0
    %4739 = vmatprep.mubr.f32.mxu0 %v4460
    %4740 = vmatmul.mubr.f32.gmra.mrb[0].mxu0 %v4459
    %v4741 = vpop.f32.mrb[0].mxu0
    %v4742 = vadd.f32 0.0, %v4741
    %v4743 = vpop.f32.mrb[0].mxu0
    %4744 = vmatprep.mubr.f32.mxu0 %v4462
    %4745 = vmatmul.mubr.f32.gmra.mrb[0].mxu0 %v4461
    %v4746 = vpop.f32.mrb[0].mxu0
    %v4747 = vadd.f32 0.0, %v4746
    %v4748 = vpop.f32.mrb[0].mxu0
    %4749 = vmatprep.mubr.f32.mxu0 %v4464
    %4750 = vmatmul.mubr.f32.gmra.mrb[0].mxu0 %v4463
    %v4751 = vpop.f32.mrb[0].mxu0
    %v4752 = vadd.f32 0.0, %v4751
    %v4753 = vpop.f32.mrb[0].mxu0
    %4754 = vmatprep.mubr.f32.mxu0 %v4466
    %4755 = vmatmul.mubr.f32.gmra.mrb[0].mxu0 %v4465
    %v4756 = vpop.f32.mrb[0].mxu0
    %v4757 = vadd.f32 0.0, %v4756
    %v4758 = vpop.f32.mrb[0].mxu0
    %4759 = vmatprep.mubr.f32.mxu0 %v4468
    %4760 = vmatmul.mubr.f32.gmra.mrb[0].mxu0 %v4467
    %v4761 = vpop.f32.mrb[0].mxu0
    %v4762 = vadd.f32 0.0, %v4761
    %v4763 = vpop.f32.mrb[0].mxu0
    %4764 = vmatprep.mubr.f32.mxu0 %v4470
    %4765 = vmatmul.mubr.f32.gmra.mrb[0].mxu0 %v4469
    %v4766 = vpop.f32.mrb[0].mxu0
    %v4767 = vadd.f32 0.0, %v4766
    %v4768 = vpop.f32.mrb[0].mxu0
    %4769 = vmatprep.mubr.f32.mxu0 %v4472
    %4770 = vmatmul.mubr.f32.gmra.mrb[0].mxu0 %v4471
    %v4771 = vpop.f32.mrb[0].mxu0
    %v4772 = vadd.f32 0.0, %v4771
    %v4773 = vpop.f32.mrb[0].mxu0
    %4774 = vmatprep.mubr.f32.mxu0 %v4474
    %4775 = vmatmul.mubr.f32.gmra.mrb[0].mxu0 %v4473
    %v4776 = vpop.f32.mrb[0].mxu0
    %v4777 = vadd.f32 0.0, %v4776
    %v4778 = vpop.f32.mrb[0].mxu0
    %4779 = vmatprep.mubr.f32.mxu0 %v4476
    %4780 = vmatmul.mubr.f32.gmra.mrb[0].mxu0 %v4475
    %v4781 = vpop.f32.mrb[0].mxu0
    %v4782 = vadd.f32 0.0, %v4781
    %v4783 = vpop.f32.mrb[0].mxu0
    %4784 = vmatprep.mubr.f32.mxu0 %v4478
    %4785 = vmatmul.mubr.f32.gmra.mrb[0].mxu0 %v4477
    %v4786 = vpop.f32.mrb[0].mxu0
    %v4787 = vadd.f32 0.0, %v4786
    %v4788 = vpop.f32.mrb[0].mxu0
    %4789 = vmatprep.mubr.f32.mxu0 %v4480
    %4790 = vmatmul.mubr.f32.gmra.mrb[0].mxu0 %v4479
    %v4791 = vpop.f32.mrb[0].mxu0
    %v4792 = vadd.f32 0.0, %v4791
    %v4793 = vpop.f32.mrb[0].mxu0
    %4794 = vmatprep.mubr.f32.mxu0 %v4482
    %4795 = vmatmul.mubr.f32.gmra.mrb[0].mxu0 %v4481
    %v4796 = vpop.f32.mrb[0].mxu0
    %v4797 = vadd.f32 0.0, %v4796
    %v4798 = vpop.f32.mrb[0].mxu0
    %4799 = vmatprep.mubr.f32.mxu0 %v4484
    %4800 = vmatmul.mubr.f32.gmra.mrb[0].mxu0 %v4483
    %v4801 = vpop.f32.mrb[0].mxu0
    %v4802 = vadd.f32 0.0, %v4801
    %v4803 = vpop.f32.mrb[0].mxu0
    %4804 = vmatprep.mubr.f32.mxu0 %v4486
    %4805 = vmatmul.mubr.f32.gmra.mrb[0].mxu0 %v4485
    %v4806 = vpop.f32.mrb[0].mxu0
    %v4807 = vadd.f32 0.0, %v4806
    %v4808 = vpop.f32.mrb[0].mxu0
    %4809 = vmatprep.mubr.f32.mxu0 %v4488
    %4810 = vmatmul.mubr.f32.gmra.mrb[0].mxu0 %v4487
    %v4811 = vpop.f32.mrb[0].mxu0
    %v4812 = vadd.f32 0.0, %v4811
    %v4813 = vpop.f32.mrb[0].mxu0
    %4814 = vmatprep.mubr.f32.mxu0 %v4490
    %4815 = vmatmul.mubr.f32.gmra.mrb[0].mxu0 %v4489
    %v4816 = vpop.f32.mrb[0].mxu0
    %v4817 = vadd.f32 0.0, %v4816
    %v4818 = vpop.f32.mrb[0].mxu0
    %4819 = vmatprep.mubr.f32.mxu0 %v4492
    %4820 = vmatmul.mubr.f32.gmra.mrb[0].mxu0 %v4491
    %v4821 = vpop.f32.mrb[0].mxu0
    %v4822 = vadd.f32 0.0, %v4821
    %v4823 = vpop.f32.mrb[0].mxu0
    %4824 = vmatprep.mubr.f32.mxu0 %v4494
    %4825 = vmatmul.mubr.f32.gmra.mrb[0].mxu0 %v4493
    %v4826 = vpop.f32.mrb[0].mxu0
    %v4827 = vadd.f32 0.0, %v4826
    %v4828 = vpop.f32.mrb[0].mxu0
    %4829 = vmatprep.mubr.f32.mxu0 %v4496
    %4830 = vmatmul.mubr.f32.gmra.mrb[0].mxu0 %v4495
    %v4831 = vpop.f32.mrb[0].mxu0
    %v4832 = vadd.f32 0.0, %v4831
    %v4833 = vpop.f32.mrb[0].mxu0
    %4834 = vmatprep.mubr.f32.mxu0 %v4498
    %4835 = vmatmul.mubr.f32.gmra.mrb[0].mxu0 %v4497
    %v4836 = vpop.f32.mrb[0].mxu0
    %v4837 = vadd.f32 0.0, %v4836
    %v4838 = vpop.f32.mrb[0].mxu0
    %4839 = vmatprep.mubr.f32.mxu0 %v4500
    %4840 = vmatmul.mubr.f32.gmra.mrb[0].mxu0 %v4499
    %v4841 = vpop.f32.mrb[0].mxu0
    %v4842 = vadd.f32 0.0, %v4841
    %v4843 = vpop.f32.mrb[0].mxu0
    %4844 = vmatprep.mubr.f32.mxu0 %v4502
    %4845 = vmatmul.mubr.f32.gmra.mrb[0].mxu0 %v4501
    %v4846 = vpop.f32.mrb[0].mxu0
    %v4847 = vadd.f32 0.0, %v4846
    %v4848 = vpop.f32.mrb[0].mxu0
    %4849 = vmatprep.mubr.f32.mxu0 %v4504
    %4850 = vmatmul.mubr.f32.gmra.mrb[0].mxu0 %v4503
    %v4851 = vpop.f32.mrb[0].mxu0
    %v4852 = vadd.f32 0.0, %v4851
    %v4853 = vpop.f32.mrb[0].mxu0
    %4854 = vmatprep.mubr.f32.mxu0 %v4506
    %4855 = vmatmul.mubr.f32.gmra.mrb[0].mxu0 %v4505
    %v4856 = vpop.f32.mrb[0].mxu0
    %v4857 = vadd.f32 0.0, %v4856
    %v4858 = vpop.f32.mrb[0].mxu0
    %4859 = vdwg.mxu0
    %4860 = vst.msk [vmem:[%s8] sm:$0xff] %vm150, %v4702
    %4861 = vst.msk [vmem:[%s8 + $0x8] sm:$0xff] %vm150, %v4707
    %4862 = vst.msk [vmem:[%s8 + $0x10] sm:$0xff] %vm150, %v4712
    %4863 = vst.msk [vmem:[%s8 + $0x18] sm:$0xff] %vm150, %v4717
    %4864 = vst.msk [vmem:[%s8 + $0x20] sm:$0xff] %vm150, %v4722
    %4865 = vst.msk [vmem:[%s8 + $0x28] sm:$0xff] %vm150, %v4727
    %4866 = vst.msk [vmem:[%s8 + $0x30] sm:$0xff] %vm150, %v4732
    %4867 = vst.msk [vmem:[%s8 + $0x38] sm:$0xff] %vm150, %v4737
    %4868 = vst.msk [vmem:[%s8 + $0x40] sm:$0xff] %vm150, %v4742
    %4869 = vst.msk [vmem:[%s8 + $0x48] sm:$0xff] %vm150, %v4747
    %4870 = vst.msk [vmem:[%s8 + $0x50] sm:$0xff] %vm150, %v4752
    %4871 = vst.msk [vmem:[%s8 + $0x58] sm:$0xff] %vm150, %v4757
    %4872 = vst.msk [vmem:[%s8 + $0x60] sm:$0xff] %vm150, %v4762
    %4873 = vst.msk [vmem:[%s8 + $0x68] sm:$0xff] %vm150, %v4767
    %4874 = vst.msk [vmem:[%s8 + $0x70] sm:$0xff] %vm150, %v4772
    %4875 = vst.msk [vmem:[%s8 + $0x78] sm:$0xff] %vm150, %v4777
    %4876 = vst.msk [vmem:[%s8 + $0x80] sm:$0xff] %vm150, %v4782
    %4877 = vst.msk [vmem:[%s8 + $0x88] sm:$0xff] %vm150, %v4787
    %4878 = vst.msk [vmem:[%s8 + $0x90] sm:$0xff] %vm150, %v4792
    %4879 = vst.msk [vmem:[%s8 + $0x98] sm:$0xff] %vm150, %v4797
    %4880 = vst.msk [vmem:[%s8 + $0xa0] sm:$0xff] %vm150, %v4802
    %4881 = vst.msk [vmem:[%s8 + $0xa8] sm:$0xff] %vm150, %v4807
    %4882 = vst.msk [vmem:[%s8 + $0xb0] sm:$0xff] %vm150, %v4812
    %4883 = vst.msk [vmem:[%s8 + $0xb8] sm:$0xff] %vm150, %v4817
    %4884 = vst.msk [vmem:[%s8 + $0xc0] sm:$0xff] %vm150, %v4822
    %4885 = vst.msk [vmem:[%s8 + $0xc8] sm:$0xff] %vm150, %v4827
    %4886 = vst.msk [vmem:[%s8 + $0xd0] sm:$0xff] %vm150, %v4832
    %4887 = vst.msk [vmem:[%s8 + $0xd8] sm:$0xff] %vm150, %v4837
    %4888 = vst.msk [vmem:[%s8 + $0xe0] sm:$0xff] %vm150, %v4842
    %4889 = vst.msk [vmem:[%s8 + $0xe8] sm:$0xff] %vm150, %v4847
    %4890 = vst.msk [vmem:[%s8 + $0xf0] sm:$0xff] %vm150, %v4852
    %4891 = vst.msk [vmem:[%s8 + $0xf8] sm:$0xff] %vm150, %v4857
    // Predicated region
    $region38: #{tpu_custom_call.1} parent=1 // pred_check
      _
    $region39: #{tpu_custom_call.1} parent=1 // pred_check_branch
      %4893 = sbr.rel (0) target = $region41
    $region40: #{tpu_custom_call.1} parent=1 // pred_region
      _
    $region41: #{tpu_custom_call.1} parent=1 // pred_fallthru
      _
    // Predicated region
    $region42: #{tpu_custom_call.1} parent=1 // pred_check
      _
    $region43: #{tpu_custom_call.1} parent=1 // pred_check_branch
      %4895 = sbr.rel (0) target = $region45
    $region44: #{tpu_custom_call.1} parent=1 // pred_region
      _
    $region45: #{tpu_custom_call.1} parent=1 // pred_fallthru
      _
    %4896 = vsyncpa [#allocation3], 1

</llo_original>
